<compile_context>
chip_gen: v5e
topology: v5e:2x2
jax: 0.10.0
libtpu: 0.0.40
codegen_flags: <defaults>
</compile_context>

<pallas_src>
import functools

import jax
import jax.numpy as jnp
import numpy as np
from jax.experimental import pallas as pl
from jax.experimental.pallas import tpu as pltpu


def _round_up(n, m):
    return ((n + m - 1) // m) * m


def _cdiv(a, b):
    return -(-a // b)


# ----------------------------------------------------------------------------
# Pallas kernel: full forward for a block of Bt batch elements per grid step.
# All Bt samples are flattened to M = Bt*L rows so the matmuls see a large M.
# ----------------------------------------------------------------------------
def improved_cnn_kernel(x_ref,                          # (Bt*L, 1) raw signal rows (f32)
                        w1_ref, b1_ref,                 # conv1 (BN1 folded): (5,64), (1,64) f32
                        w2a_ref, w2b_ref, w2c_ref,      # conv2 taps (BN2 folded): 3 x (64,128) bf16
                        b2_ref,                         # (1,128) f32
                        wfc1_ref, bfc1_ref,             # Linear(128,64) (+1/L fold): (128,64),(1,64) f32
                        wfc2_ref, bfc2_ref,             # Linear(64,Cp): (64,Cp),(1,Cp) f32
                        out_ref,                        # (Bt, Cp) lane-dense logits (f32)
                        *, seq_len):
    m = x_ref.shape[0]
    bt = m // seq_len

    x = x_ref[...]                                                   # (M, 1) f32
    # Position of each row within its sample.  Masks handle both conv zero
    # padding and cross-sample leakage of the flat sublane rolls.
    l_idx = jax.lax.broadcasted_iota(jnp.int32, (m, 1), 0) % seq_len

    # ---- Conv1d(1,64,k=5,pad=2) + folded BN1 --------------------------------
    # Shift/mask the 1-lane signal (cheap), then 5 broadcast-MACs on the VPU.
    x_m2 = jnp.where(l_idx >= 2, pltpu.roll(x, shift=2, axis=0), 0.0)
    x_m1 = jnp.where(l_idx >= 1, pltpu.roll(x, shift=1, axis=0), 0.0)
    x_p1 = jnp.where(l_idx <= seq_len - 2, pltpu.roll(x, shift=m - 1, axis=0), 0.0)
    x_p2 = jnp.where(l_idx <= seq_len - 3, pltpu.roll(x, shift=m - 2, axis=0), 0.0)

    w1 = w1_ref[...]                                                 # (5, 64)
    h1 = x * w1[2:3, :]                                              # accumulate in place
    h1 = h1 + x_m1 * w1[1:2, :]
    h1 = h1 + x_m2 * w1[0:1, :]
    h1 = h1 + x_p1 * w1[3:4, :]
    h1 = h1 + x_p2 * w1[4:5, :]
    h1 = jnp.maximum(h1 + b1_ref[...], 0.0)                          # (M, 64) f32

    # ---- Conv1d(64,128,k=3,pad=1) + folded BN2 -------------------------------
    # Concat-free: three accumulated K=64 matmuls, bf16 operands, f32 accum.
    h1_prev = jnp.where(l_idx == 0, 0.0,
                        pltpu.roll(h1, shift=1, axis=0)).astype(jnp.bfloat16)
    h1_next = jnp.where(l_idx == seq_len - 1, 0.0,
                        pltpu.roll(h1, shift=m - 1, axis=0)).astype(jnp.bfloat16)
    h1b = h1.astype(jnp.bfloat16)

    h2 = jnp.dot(h1_prev, w2a_ref[...], preferred_element_type=jnp.float32)
    h2 = h2 + jnp.dot(h1b, w2b_ref[...], preferred_element_type=jnp.float32)
    h2 = h2 + jnp.dot(h1_next, w2c_ref[...], preferred_element_type=jnp.float32)
    h2 = jnp.maximum(h2 + b2_ref[...], 0.0)                          # (M, 128) f32

    # ---- AdaptiveAvgPool1d(1): sum over L (1/L folded into wfc1) -------------
    pooled = jnp.sum(h2.reshape(bt, seq_len, 128), axis=1)           # (Bt, 128)

    # ---- FC head, batched over Bt (tiny -> kept f32; Dropout = identity) -----
    f1 = jnp.dot(pooled, wfc1_ref[...], preferred_element_type=jnp.float32)
    f1 = jnp.maximum(f1 + bfc1_ref[...], 0.0)                        # (Bt, 64)
    logits = jnp.dot(f1, wfc2_ref[...], preferred_element_type=jnp.float32)
    out_ref[...] = logits + bfc2_ref[...]                            # (Bt, Cp)


# ----------------------------------------------------------------------------
# Generation-aware block-size selection.
# ----------------------------------------------------------------------------
def _device_info():
    """Returns (vmem_limit_bytes, two_tensorcores)."""
    try:
        kind = jax.devices()[0].device_kind.lower()
    except Exception:  # pragma: no cover - defensive
        kind = ""
    if "v7" in kind or "7x" in kind:
        return 32 << 20, True        # v7x: 64 MiB physical -> 32 MiB scoped limit
    return 64 << 20, False           # v5e/v6e: 128 MiB physical, single TC


def _choose_block(batch, seq_len, vmem_cap, two_tc):
    """Pick (bt, n_steps) so n_steps*bt >= batch, minimizing padding and
    keeping the per-step live set inside the VMEM budget."""
    # Live-set estimate per flattened row (M = bt*L), bytes:
    #   x tile (M,1) f32 lane-padded           : 512 * 2 (double buffered)
    #   h1 f32 (M,64)                          : 256
    #   h1 / h1_prev / h1_next bf16 (M,64)     : 3 * 128
    #   h2 f32 (M,128)                         : 512
    #   temporaries / headroom                 : 512
    bytes_per_row = 2 * 512 + 256 + 3 * 128 + 512 + 512
    budget = int(vmem_cap * 0.7)
    b8 = _round_up(batch, 8)
    bt_cap = max(8, min((budget // bytes_per_row // seq_len) // 8 * 8, b8))

    # Only split the grid when there are 2 TensorCores to feed, and never
    # below ~512 flattened rows per step.
    min_steps = 1
    if two_tc:
        min_bt = _round_up(_cdiv(512, seq_len), 8)
        if b8 >= 2 * min_bt:
            min_steps = 2

    n_steps = max(min_steps, _cdiv(b8, bt_cap))
    bt = min(_round_up(_cdiv(batch, n_steps), 8), bt_cap)
    return bt, n_steps


# ----------------------------------------------------------------------------
# Wrapper: parameter folding, padding and pallas_call plumbing.
# ----------------------------------------------------------------------------
def improved_cnn_forward(x, params):
    """x: (B, 1, L) float32 (PyTorch NCL). Returns (B, num_classes) float32."""
    B, _, L = x.shape
    num_classes = params["wfc2"].shape[0]
    eps = 1e-5

    vmem_cap, two_tc = _device_info()
    bt, n_steps = _choose_block(B, L, vmem_cap, two_tc)
    b_pad = bt * n_steps
    cp = _round_up(num_classes, 128)      # lane-dense (padded) logits width

    # Input as flat (B_pad*L, 1) rows: no im2col, no HBM inflation.
    x_rows = jnp.pad(x[:, 0, :], ((0, b_pad - B), (0, 0))).reshape(b_pad * L, 1)

    # Fold BatchNorm (eval running stats) + conv bias into weights/bias.
    s1 = params["bn1_gamma"] / jnp.sqrt(params["bn1_var"] + eps)       # (64,)
    w1f = params["w1"][:, 0, :].T * s1[None, :]                        # (5, 64)  f32
    b1f = ((params["b1"] - params["bn1_mean"]) * s1 + params["bn1_beta"])[None, :]

    s2 = params["bn2_gamma"] / jnp.sqrt(params["bn2_var"] + eps)       # (128,)
    # W2 (co=128, ci=64, k=3): per-tap (ci, co) matrices, BN folded, bf16 MXU operands.
    w2a = (params["w2"][:, :, 0].T * s2[None, :]).astype(jnp.bfloat16)  # (64,128) tap k=0 (prev)
    w2b = (params["w2"][:, :, 1].T * s2[None, :]).astype(jnp.bfloat16)  # (64,128) tap k=1 (cur)
    w2c = (params["w2"][:, :, 2].T * s2[None, :]).astype(jnp.bfloat16)  # (64,128) tap k=2 (next)
    b2f = ((params["b2"] - params["bn2_mean"]) * s2 + params["bn2_beta"])[None, :]

    wfc1 = params["wfc1"].T / float(L)                                 # (128, 64), 1/L pool fold
    bfc1 = params["bfc1"][None, :]                                     # (1, 64)
    wfc2 = jnp.pad(params["wfc2"].T, ((0, 0), (0, cp - num_classes)))  # (64, Cp)
    bfc2 = jnp.pad(params["bfc2"], (0, cp - num_classes))[None, :]     # (1, Cp)

    full = lambda shape: pl.BlockSpec(shape, lambda b: (0,) * len(shape))
    m_blk = bt * L

    # Advisory cost estimate (whole call).
    flops = b_pad * (L * (2 * 5 * 64 + 2 * 3 * 64 * 128)
                     + 2 * 128 * 64 + 2 * 64 * cp)
    weight_bytes = (5 * 64 + 64 + 3 * 64 * 128 + 128
                    + 128 * 64 + 64 + 64 * cp + cp) * 4
    bytes_accessed = b_pad * L * 4 + weight_bytes + b_pad * cp * 4

    out = pl.pallas_call(
        functools.partial(improved_cnn_kernel, seq_len=L),
        out_shape=jax.ShapeDtypeStruct((b_pad, cp), jnp.float32),
        grid_spec=pltpu.PrefetchScalarGridSpec(
            num_scalar_prefetch=0,
            grid=(n_steps,),
            in_specs=[
                pl.BlockSpec((m_blk, 1), lambda b: (b, 0)),            # signal rows
                full((5, 64)), full((1, 64)),                          # conv1
                full((64, 128)), full((64, 128)), full((64, 128)),     # conv2 taps
                full((1, 128)),                                        # conv2 bias
                full((128, 64)), full((1, 64)),                        # fc1
                full((64, cp)), full((1, cp)),                         # fc2 (padded)
            ],
            out_specs=pl.BlockSpec((bt, cp), lambda b: (b, 0)),
        ),
        compiler_params=pltpu.CompilerParams(
            dimension_semantics=("parallel",),
            vmem_limit_bytes=vmem_cap),
        cost_estimate=pl.CostEstimate(flops=int(flops), transcendentals=0,
                                      bytes_accessed=int(bytes_accessed)),
    )(x_rows, w1f, b1f, w2a, w2b, w2c, b2f, wfc1, bfc1, wfc2, bfc2)

    return out[:B, :num_classes]


# ----------------------------------------------------------------------------
# Pure-JAX reference (inference semantics) for correctness checking.
# ----------------------------------------------------------------------------
def reference_forward(x, params):
    eps = 1e-5
    dn = ("NCH", "OIH", "NCH")
    h = jax.lax.conv_general_dilated(x, params["w1"], (1,), [(2, 2)],
                                     dimension_numbers=dn)
    h = h + params["b1"][None, :, None]
    h = ((h - params["bn1_mean"][None, :, None])
         / jnp.sqrt(params["bn1_var"][None, :, None] + eps)
         * params["bn1_gamma"][None, :, None] + params["bn1_beta"][None, :, None])
    h = jnp.maximum(h, 0.0)
    h = jax.lax.conv_general_dilated(h, params["w2"], (1,), [(1, 1)],
                                     dimension_numbers=dn)
    h = h + params["b2"][None, :, None]
    h = ((h - params["bn2_mean"][None, :, None])
         / jnp.sqrt(params["bn2_var"][None, :, None] + eps)
         * params["bn2_gamma"][None, :, None] + params["bn2_beta"][None, :, None])
    h = jnp.maximum(h, 0.0)
    h = jnp.mean(h, axis=-1)                              # (B, 128)
    h = jnp.maximum(h @ params["wfc1"].T + params["bfc1"], 0.0)
    return h @ params["wfc2"].T + params["bfc2"]


# ----------------------------------------------------------------------------
def init_params(key, num_classes):
    ks = jax.random.split(key, 12)
    u = lambda k, shape, fan: jax.random.uniform(
        k, shape, jnp.float32, -1.0 / np.sqrt(fan), 1.0 / np.sqrt(fan))
    return {
        "w1": u(ks[0], (64, 1, 5), 5), "b1": u(ks[1], (64,), 5),
        "bn1_gamma": jax.random.uniform(ks[2], (64,), jnp.float32, 0.5, 1.5),
        "bn1_beta": 0.1 * jax.random.normal(ks[3], (64,), jnp.float32),
        "bn1_mean": 0.1 * jax.random.normal(ks[4], (64,), jnp.float32),
        "bn1_var": jax.random.uniform(ks[5], (64,), jnp.float32, 0.5, 1.5),
        "w2": u(ks[6], (128, 64, 3), 64 * 3), "b2": u(ks[7], (128,), 64 * 3),
        "bn2_gamma": jax.random.uniform(ks[8], (128,), jnp.float32, 0.5, 1.5),
        "bn2_beta": 0.1 * jax.random.normal(ks[9], (128,), jnp.float32),
        "bn2_mean": 0.1 * jax.random.normal(ks[10], (128,), jnp.float32),
        "bn2_var": jax.random.uniform(ks[11], (128,), jnp.float32, 0.5, 1.5),
        "wfc1": u(ks[0], (64, 128), 128), "bfc1": u(ks[1], (64,), 128),
        "wfc2": u(ks[2], (num_classes, 64), 64), "bfc2": u(ks[3], (num_classes,), 64),
    }


if __name__ == "__main__":
    B, L, NUM_CLASSES = 16, 32, 7          # small synthetic shapes
    key = jax.random.PRNGKey(0)
    kx, kp = jax.random.split(key)
    x = jax.random.normal(kx, (B, 1, L), jnp.float32)     # NCL like PyTorch
    params = init_params(kp, NUM_CLASSES)

    # TODO(synk): dropout is identity (eval mode); training-mode dropout and
    # batch-statistics BatchNorm are not implemented.

    out = jax.block_until_ready(improved_cnn_forward(x, params))
    ref = jax.block_until_ready(reference_forward(x, params))

    assert out.shape == (B, NUM_CLASSES)
    # Tolerance accounts for bf16 conv2 matmul operands (f32 accumulation).
    np.testing.assert_allclose(np.asarray(out), np.asarray(ref),
                               rtol=3e-2, atol=3e-2)
    print("KERNEL_OK")
</pallas_src>

<mosaic_0001>
module attributes {stable_mosaic.version = 11 : i64} {
  func.func @improved_cnn_kernel(%arg0: i32, %arg1: memref<512x1xf32, #tpu.memory_space<vmem>>, %arg2: memref<5x64xf32, #tpu.memory_space<vmem>>, %arg3: memref<1x64xf32, #tpu.memory_space<vmem>>, %arg4: memref<64x128xbf16, #tpu.memory_space<vmem>>, %arg5: memref<64x128xbf16, #tpu.memory_space<vmem>>, %arg6: memref<64x128xbf16, #tpu.memory_space<vmem>>, %arg7: memref<1x128xf32, #tpu.memory_space<vmem>>, %arg8: memref<128x64xf32, #tpu.memory_space<vmem>>, %arg9: memref<1x64xf32, #tpu.memory_space<vmem>>, %arg10: memref<64x128xf32, #tpu.memory_space<vmem>>, %arg11: memref<1x128xf32, #tpu.memory_space<vmem>>, %arg12: memref<16x128xf32, #tpu.memory_space<vmem>>) attributes {dimension_semantics = [#tpu.dimension_semantics<parallel>], iteration_bounds = array<i64: 1>, scalar_prefetch = 0 : i64, scratch_operands = 0 : i64, tpu.core_type = #tpu.core_type<tc>, window_params = [{transform_indices = @transform_0, window_bounds = array<i64: 512, 1>}, {pipeline_mode = #tpu.pipeline_mode<synchronous>, transform_indices = @transform_1, window_bounds = array<i64: 5, 64>}, {pipeline_mode = #tpu.pipeline_mode<synchronous>, transform_indices = @transform_2, window_bounds = array<i64: 1, 64>}, {pipeline_mode = #tpu.pipeline_mode<synchronous>, transform_indices = @transform_3, window_bounds = array<i64: 64, 128>}, {pipeline_mode = #tpu.pipeline_mode<synchronous>, transform_indices = @transform_4, window_bounds = array<i64: 64, 128>}, {pipeline_mode = #tpu.pipeline_mode<synchronous>, transform_indices = @transform_5, window_bounds = array<i64: 64, 128>}, {pipeline_mode = #tpu.pipeline_mode<synchronous>, transform_indices = @transform_6, window_bounds = array<i64: 1, 128>}, {pipeline_mode = #tpu.pipeline_mode<synchronous>, transform_indices = @transform_7, window_bounds = array<i64: 128, 64>}, {pipeline_mode = #tpu.pipeline_mode<synchronous>, transform_indices = @transform_8, window_bounds = array<i64: 1, 64>}, {pipeline_mode = #tpu.pipeline_mode<synchronous>, transform_indices = @transform_9, window_bounds = array<i64: 64, 128>}, {pipeline_mode = #tpu.pipeline_mode<synchronous>, transform_indices = @transform_10, window_bounds = array<i64: 1, 128>}, {transform_indices = @transform_11, window_bounds = array<i64: 16, 128>}]} {
    %c0 = arith.constant 0 : index
    %c0_0 = arith.constant 0 : index
    %0 = vector.load %arg1[%c0, %c0_0] : memref<512x1xf32, #tpu.memory_space<vmem>>, vector<512x1xf32>
    %1 = tpu.iota {dimensions = array<i32: 0>} : vector<512x1xi32>
    %c32_i32 = arith.constant 32 : i32
    %c0_i32 = arith.constant 0 : i32
    %2 = arith.cmpi eq, %c32_i32, %c0_i32 : i32
    %c1_i32 = arith.constant 1 : i32
    %3 = arith.select %2, %c1_i32, %c32_i32 : i32
    %4 = vector.broadcast %3 : i32 to vector<512x1xi32>
    %5 = arith.remsi %1, %4 : vector<512x1xi32>
    %c0_i32_1 = arith.constant 0 : i32
    %6 = vector.broadcast %c0_i32_1 : i32 to vector<512x1xi32>
    %7 = arith.cmpi ne, %5, %6 : vector<512x1xi32>
    %c0_i32_2 = arith.constant 0 : i32
    %8 = vector.broadcast %c0_i32_2 : i32 to vector<512x1xi32>
    %9 = arith.cmpi slt, %5, %8 : vector<512x1xi32>
    %c0_i32_3 = arith.constant 0 : i32
    %10 = arith.cmpi slt, %3, %c0_i32_3 : i32
    %11 = vector.broadcast %10 : i1 to vector<512x1xi1>
    %12 = vector.broadcast %11 : vector<512x1xi1> to vector<512x1xi1>
    %13 = arith.xori %9, %12 : vector<512x1xi1>
    %14 = arith.andi %13, %7 : vector<512x1xi1>
    %15 = vector.broadcast %3 : i32 to vector<512x1xi32>
    %16 = arith.addi %5, %15 : vector<512x1xi32>
    %17 = arith.select %14, %16, %5 : vector<512x1xi1>, vector<512x1xi32>
    %c2_i32 = arith.constant 2 : i32
    %18 = vector.broadcast %c2_i32 : i32 to vector<512x1xi32>
    %19 = arith.cmpi sge, %17, %18 : vector<512x1xi32>
    %c2_i32_4 = arith.constant 2 : i32
    %20 = tpu.dynamic_rotate %0 by %c2_i32_4 dim 0 : vector<512x1xf32>, i32 -> vector<512x1xf32>
    %cst = arith.constant 0.000000e+00 : f32
    %21 = vector.broadcast %cst : f32 to vector<512x1xf32>
    %22 = arith.select %19, %20, %21 : vector<512x1xi1>, vector<512x1xf32>
    %c1_i32_5 = arith.constant 1 : i32
    %23 = vector.broadcast %c1_i32_5 : i32 to vector<512x1xi32>
    %24 = arith.cmpi sge, %17, %23 : vector<512x1xi32>
    %c1_i32_6 = arith.constant 1 : i32
    %25 = tpu.dynamic_rotate %0 by %c1_i32_6 dim 0 : vector<512x1xf32>, i32 -> vector<512x1xf32>
    %cst_7 = arith.constant 0.000000e+00 : f32
    %26 = vector.broadcast %cst_7 : f32 to vector<512x1xf32>
    %27 = arith.select %24, %25, %26 : vector<512x1xi1>, vector<512x1xf32>
    %c30_i32 = arith.constant 30 : i32
    %28 = vector.broadcast %c30_i32 : i32 to vector<512x1xi32>
    %29 = arith.cmpi sle, %17, %28 : vector<512x1xi32>
    %c511_i32 = arith.constant 511 : i32
    %30 = tpu.dynamic_rotate %0 by %c511_i32 dim 0 : vector<512x1xf32>, i32 -> vector<512x1xf32>
    %cst_8 = arith.constant 0.000000e+00 : f32
    %31 = vector.broadcast %cst_8 : f32 to vector<512x1xf32>
    %32 = arith.select %29, %30, %31 : vector<512x1xi1>, vector<512x1xf32>
    %c29_i32 = arith.constant 29 : i32
    %33 = vector.broadcast %c29_i32 : i32 to vector<512x1xi32>
    %34 = arith.cmpi sle, %17, %33 : vector<512x1xi32>
    %c510_i32 = arith.constant 510 : i32
    %35 = tpu.dynamic_rotate %0 by %c510_i32 dim 0 : vector<512x1xf32>, i32 -> vector<512x1xf32>
    %cst_9 = arith.constant 0.000000e+00 : f32
    %36 = vector.broadcast %cst_9 : f32 to vector<512x1xf32>
    %37 = arith.select %34, %35, %36 : vector<512x1xi1>, vector<512x1xf32>
    %c0_10 = arith.constant 0 : index
    %c0_11 = arith.constant 0 : index
    %38 = vector.load %arg2[%c0_10, %c0_11] : memref<5x64xf32, #tpu.memory_space<vmem>>, vector<5x64xf32>
    %39 = vector.extract_strided_slice %38 {offsets = [2, 0], sizes = [1, 64], strides = [1, 1]} : vector<5x64xf32> to vector<1x64xf32>
    %40 = vector.broadcast %0 : vector<512x1xf32> to vector<512x64xf32>
    %41 = vector.broadcast %39 : vector<1x64xf32> to vector<512x64xf32>
    %42 = arith.mulf %40, %41 : vector<512x64xf32>
    %43 = vector.extract_strided_slice %38 {offsets = [1, 0], sizes = [1, 64], strides = [1, 1]} : vector<5x64xf32> to vector<1x64xf32>
    %44 = vector.broadcast %27 : vector<512x1xf32> to vector<512x64xf32>
    %45 = vector.broadcast %43 : vector<1x64xf32> to vector<512x64xf32>
    %46 = arith.mulf %44, %45 : vector<512x64xf32>
    %47 = arith.addf %42, %46 : vector<512x64xf32>
    %48 = vector.extract_strided_slice %38 {offsets = [0, 0], sizes = [1, 64], strides = [1, 1]} : vector<5x64xf32> to vector<1x64xf32>
    %49 = vector.broadcast %22 : vector<512x1xf32> to vector<512x64xf32>
    %50 = vector.broadcast %48 : vector<1x64xf32> to vector<512x64xf32>
    %51 = arith.mulf %49, %50 : vector<512x64xf32>
    %52 = arith.addf %47, %51 : vector<512x64xf32>
    %53 = vector.extract_strided_slice %38 {offsets = [3, 0], sizes = [1, 64], strides = [1, 1]} : vector<5x64xf32> to vector<1x64xf32>
    %54 = vector.broadcast %32 : vector<512x1xf32> to vector<512x64xf32>
    %55 = vector.broadcast %53 : vector<1x64xf32> to vector<512x64xf32>
    %56 = arith.mulf %54, %55 : vector<512x64xf32>
    %57 = arith.addf %52, %56 : vector<512x64xf32>
    %58 = vector.extract_strided_slice %38 {offsets = [4, 0], sizes = [1, 64], strides = [1, 1]} : vector<5x64xf32> to vector<1x64xf32>
    %59 = vector.broadcast %37 : vector<512x1xf32> to vector<512x64xf32>
    %60 = vector.broadcast %58 : vector<1x64xf32> to vector<512x64xf32>
    %61 = arith.mulf %59, %60 : vector<512x64xf32>
    %62 = arith.addf %57, %61 : vector<512x64xf32>
    %c0_12 = arith.constant 0 : index
    %c0_13 = arith.constant 0 : index
    %63 = vector.load %arg3[%c0_12, %c0_13] : memref<1x64xf32, #tpu.memory_space<vmem>>, vector<1x64xf32>
    %64 = vector.broadcast %63 : vector<1x64xf32> to vector<512x64xf32>
    %65 = arith.addf %62, %64 : vector<512x64xf32>
    %cst_14 = arith.constant 0.000000e+00 : f32
    %66 = vector.broadcast %cst_14 : f32 to vector<512x64xf32>
    %67 = arith.maximumf %65, %66 : vector<512x64xf32>
    %c0_i32_15 = arith.constant 0 : i32
    %68 = vector.broadcast %c0_i32_15 : i32 to vector<512x1xi32>
    %69 = arith.cmpi eq, %17, %68 : vector<512x1xi32>
    %c1_i32_16 = arith.constant 1 : i32
    %70 = tpu.dynamic_rotate %67 by %c1_i32_16 dim 0 : vector<512x64xf32>, i32 -> vector<512x64xf32>
    %cst_17 = arith.constant 0.000000e+00 : f32
    %71 = vector.shape_cast %69 : vector<512x1xi1> to vector<512x1xi1>
    %72 = vector.broadcast %71 : vector<512x1xi1> to vector<512x64xi1>
    %73 = vector.broadcast %cst_17 : f32 to vector<512x64xf32>
    %74 = arith.select %72, %73, %70 : vector<512x64xi1>, vector<512x64xf32>
    %75 = arith.truncf %74 : vector<512x64xf32> to vector<512x64xbf16>
    %c31_i32 = arith.constant 31 : i32
    %76 = vector.broadcast %c31_i32 : i32 to vector<512x1xi32>
    %77 = arith.cmpi eq, %17, %76 : vector<512x1xi32>
    %c511_i32_18 = arith.constant 511 : i32
    %78 = tpu.dynamic_rotate %67 by %c511_i32_18 dim 0 : vector<512x64xf32>, i32 -> vector<512x64xf32>
    %cst_19 = arith.constant 0.000000e+00 : f32
    %79 = vector.shape_cast %77 : vector<512x1xi1> to vector<512x1xi1>
    %80 = vector.broadcast %79 : vector<512x1xi1> to vector<512x64xi1>
    %81 = vector.broadcast %cst_19 : f32 to vector<512x64xf32>
    %82 = arith.select %80, %81, %78 : vector<512x64xi1>, vector<512x64xf32>
    %83 = arith.truncf %82 : vector<512x64xf32> to vector<512x64xbf16>
    %84 = arith.truncf %67 : vector<512x64xf32> to vector<512x64xbf16>
    %c0_20 = arith.constant 0 : index
    %c0_21 = arith.constant 0 : index
    %85 = vector.load %arg4[%c0_20, %c0_21] : memref<64x128xbf16, #tpu.memory_space<vmem>>, vector<64x128xbf16>
    %cst_22 = arith.constant dense<0.000000e+00> : vector<512x128xf32>
    %86 = tpu.matmul %75, %85, %cst_22 {dimension_numbers = #tpu.dot_dimension_numbers<[1], [0], [0], [1], [0, 0, 1, 1], [], []>} : vector<512x64xbf16>, vector<64x128xbf16>, vector<512x128xf32> -> vector<512x128xf32>
    %c0_23 = arith.constant 0 : index
    %c0_24 = arith.constant 0 : index
    %87 = vector.load %arg5[%c0_23, %c0_24] : memref<64x128xbf16, #tpu.memory_space<vmem>>, vector<64x128xbf16>
    %cst_25 = arith.constant dense<0.000000e+00> : vector<512x128xf32>
    %88 = tpu.matmul %84, %87, %cst_25 {dimension_numbers = #tpu.dot_dimension_numbers<[1], [0], [0], [1], [0, 0, 1, 1], [], []>} : vector<512x64xbf16>, vector<64x128xbf16>, vector<512x128xf32> -> vector<512x128xf32>
    %89 = arith.addf %86, %88 : vector<512x128xf32>
    %c0_26 = arith.constant 0 : index
    %c0_27 = arith.constant 0 : index
    %90 = vector.load %arg6[%c0_26, %c0_27] : memref<64x128xbf16, #tpu.memory_space<vmem>>, vector<64x128xbf16>
    %cst_28 = arith.constant dense<0.000000e+00> : vector<512x128xf32>
    %91 = tpu.matmul %83, %90, %cst_28 {dimension_numbers = #tpu.dot_dimension_numbers<[1], [0], [0], [1], [0, 0, 1, 1], [], []>} : vector<512x64xbf16>, vector<64x128xbf16>, vector<512x128xf32> -> vector<512x128xf32>
    %92 = arith.addf %89, %91 : vector<512x128xf32>
    %c0_29 = arith.constant 0 : index
    %c0_30 = arith.constant 0 : index
    %93 = vector.load %arg7[%c0_29, %c0_30] : memref<1x128xf32, #tpu.memory_space<vmem>>, vector<1x128xf32>
    %94 = vector.broadcast %93 : vector<1x128xf32> to vector<512x128xf32>
    %95 = arith.addf %92, %94 : vector<512x128xf32>
    %cst_31 = arith.constant 0.000000e+00 : f32
    %96 = vector.broadcast %cst_31 : f32 to vector<512x128xf32>
    %97 = arith.maximumf %95, %96 : vector<512x128xf32>
    %98 = vector.shape_cast %97 : vector<512x128xf32> to vector<16x32x128xf32>
    %cst_32 = arith.constant dense<0.000000e+00> : vector<16x128xf32>
    %99 = vector.multi_reduction <add>, %98, %cst_32 [1] : vector<16x32x128xf32> to vector<16x128xf32>
    %c0_33 = arith.constant 0 : index
    %c0_34 = arith.constant 0 : index
    %100 = vector.load %arg8[%c0_33, %c0_34] : memref<128x64xf32, #tpu.memory_space<vmem>>, vector<128x64xf32>
    %cst_35 = arith.constant dense<0.000000e+00> : vector<16x64xf32>
    %101 = tpu.matmul %99, %100, %cst_35 {dimension_numbers = #tpu.dot_dimension_numbers<[1], [0], [0], [1], [0, 0, 1, 1], [], []>} : vector<16x128xf32>, vector<128x64xf32>, vector<16x64xf32> -> vector<16x64xf32>
    %c0_36 = arith.constant 0 : index
    %c0_37 = arith.constant 0 : index
    %102 = vector.load %arg9[%c0_36, %c0_37] : memref<1x64xf32, #tpu.memory_space<vmem>>, vector<1x64xf32>
    %103 = vector.broadcast %102 : vector<1x64xf32> to vector<16x64xf32>
    %104 = arith.addf %101, %103 : vector<16x64xf32>
    %cst_38 = arith.constant 0.000000e+00 : f32
    %105 = vector.broadcast %cst_38 : f32 to vector<16x64xf32>
    %106 = arith.maximumf %104, %105 : vector<16x64xf32>
    %c0_39 = arith.constant 0 : index
    %c0_40 = arith.constant 0 : index
    %107 = vector.load %arg10[%c0_39, %c0_40] : memref<64x128xf32, #tpu.memory_space<vmem>>, vector<64x128xf32>
    %cst_41 = arith.constant dense<0.000000e+00> : vector<16x128xf32>
    %108 = tpu.matmul %106, %107, %cst_41 {dimension_numbers = #tpu.dot_dimension_numbers<[1], [0], [0], [1], [0, 0, 1, 1], [], []>} : vector<16x64xf32>, vector<64x128xf32>, vector<16x128xf32> -> vector<16x128xf32>
    %c0_42 = arith.constant 0 : index
    %c0_43 = arith.constant 0 : index
    %109 = vector.load %arg11[%c0_42, %c0_43] : memref<1x128xf32, #tpu.memory_space<vmem>>, vector<1x128xf32>
    %110 = vector.broadcast %109 : vector<1x128xf32> to vector<16x128xf32>
    %111 = arith.addf %108, %110 : vector<16x128xf32>
    %c0_44 = arith.constant 0 : index
    %c0_45 = arith.constant 0 : index
    %112 = vector.load %arg12[%c0_44, %c0_45] : memref<16x128xf32, #tpu.memory_space<vmem>>, vector<16x128xf32>
    tpu.vector_store %arg12[%c0_44, %c0_45], %111 {strides = array<i32>} : memref<16x128xf32, #tpu.memory_space<vmem>>, vector<16x128xf32>,
    return
  }
  func.func @transform_0(%arg0: i32) -> (i32, i32) {
    %c0_i32 = arith.constant 0 : i32
    %c0_i32_0 = arith.constant 0 : i32
    return %arg0, %c0_i32 : i32, i32
  }
  func.func @transform_1(%arg0: i32) -> (i32, i32) {
    %c0_i32 = arith.constant 0 : i32
    %c0_i32_0 = arith.constant 0 : i32
    %c0_i32_1 = arith.constant 0 : i32
    return %c0_i32, %c0_i32_0 : i32, i32
  }
  func.func @transform_2(%arg0: i32) -> (i32, i32) {
    %c0_i32 = arith.constant 0 : i32
    %c0_i32_0 = arith.constant 0 : i32
    %c0_i32_1 = arith.constant 0 : i32
    return %c0_i32, %c0_i32_0 : i32, i32
  }
  func.func @transform_3(%arg0: i32) -> (i32, i32) {
    %c0_i32 = arith.constant 0 : i32
    %c0_i32_0 = arith.constant 0 : i32
    %c0_i32_1 = arith.constant 0 : i32
    return %c0_i32, %c0_i32_0 : i32, i32
  }
  func.func @transform_4(%arg0: i32) -> (i32, i32) {
    %c0_i32 = arith.constant 0 : i32
    %c0_i32_0 = arith.constant 0 : i32
    %c0_i32_1 = arith.constant 0 : i32
    return %c0_i32, %c0_i32_0 : i32, i32
  }
  func.func @transform_5(%arg0: i32) -> (i32, i32) {
    %c0_i32 = arith.constant 0 : i32
    %c0_i32_0 = arith.constant 0 : i32
    %c0_i32_1 = arith.constant 0 : i32
    return %c0_i32, %c0_i32_0 : i32, i32
  }
  func.func @transform_6(%arg0: i32) -> (i32, i32) {
    %c0_i32 = arith.constant 0 : i32
    %c0_i32_0 = arith.constant 0 : i32
    %c0_i32_1 = arith.constant 0 : i32
    return %c0_i32, %c0_i32_0 : i32, i32
  }
  func.func @transform_7(%arg0: i32) -> (i32, i32) {
    %c0_i32 = arith.constant 0 : i32
    %c0_i32_0 = arith.constant 0 : i32
    %c0_i32_1 = arith.constant 0 : i32
    return %c0_i32, %c0_i32_0 : i32, i32
  }
  func.func @transform_8(%arg0: i32) -> (i32, i32) {
    %c0_i32 = arith.constant 0 : i32
    %c0_i32_0 = arith.constant 0 : i32
    %c0_i32_1 = arith.constant 0 : i32
    return %c0_i32, %c0_i32_0 : i32, i32
  }
  func.func @transform_9(%arg0: i32) -> (i32, i32) {
    %c0_i32 = arith.constant 0 : i32
    %c0_i32_0 = arith.constant 0 : i32
    %c0_i32_1 = arith.constant 0 : i32
    return %c0_i32, %c0_i32_0 : i32, i32
  }
  func.func @transform_10(%arg0: i32) -> (i32, i32) {
    %c0_i32 = arith.constant 0 : i32
    %c0_i32_0 = arith.constant 0 : i32
    %c0_i32_1 = arith.constant 0 : i32
    return %c0_i32, %c0_i32_0 : i32, i32
  }
  func.func @transform_11(%arg0: i32) -> (i32, i32) {
    %c0_i32 = arith.constant 0 : i32
    %c0_i32_0 = arith.constant 0 : i32
    return %arg0, %c0_i32 : i32, i32
  }
}

</mosaic_0001>

<llo_original>
// kernel: tpu_custom_call.1
$region0: #{tpu_custom_call.1}
  #allocation0 [shape = 'u32[]', space=smem, size = 0x4, offset = 0x4, fixed_abs, tag = 'smem constant byte address 0x4 - core index']
  #allocation1 [shape = 'u32[72,128]{1,0:T(1,128)}', space=vmem, size = 0x9000, scoped, tag = 'internal scratch']
  %s0 = inlined_call_operand.vmem [shape: f32[512,1], index: 0, kind: input, shape index: {}]
  %s1 = inlined_call_operand.vmem [shape: f32[5,64], index: 1, kind: input, shape index: {}]
  %s2 = inlined_call_operand.vmem [shape: f32[1,64], index: 2, kind: input, shape index: {}]
  %s3 = inlined_call_operand.vmem [shape: bf16[64,128], index: 3, kind: input, shape index: {}]
  %s4 = inlined_call_operand.vmem [shape: bf16[64,128], index: 4, kind: input, shape index: {}]
  %s5 = inlined_call_operand.vmem [shape: bf16[64,128], index: 5, kind: input, shape index: {}]
  %s6 = inlined_call_operand.vmem [shape: f32[1,128], index: 6, kind: input, shape index: {}]
  %s7 = inlined_call_operand.vmem [shape: f32[128,64], index: 7, kind: input, shape index: {}]
  %s8 = inlined_call_operand.vmem [shape: f32[1,64], index: 8, kind: input, shape index: {}]
  %s9 = inlined_call_operand.vmem [shape: f32[64,128], index: 9, kind: input, shape index: {}]
  %s10 = inlined_call_operand.vmem [shape: f32[1,128], index: 10, kind: input, shape index: {}]
  %s11 = inlined_call_operand.hbm [shape: f32[16,128], index: 11, kind: output, shape index: {}]
  %s12 = sld [smem:[#allocation0]]
  $region54: #{tpu_custom_call.1} parent=0
    _
  %s14 = ssub.s32 1, %s12
  %s15 = scalar_select 0, %s14, %s12
  $region1: #{tpu_custom_call.1} parent=0
    #allocation2 [shape = 'u8[8192]{0}', space=vmem, size = 0x2000, scoped, tag = 'output window, operand 0, single buffered']
    #allocation3 [shape = 's32[1]{0}', space=sflag, size = 0x4, scoped, tag = 'scoped memory for tpu_custom_call.1']
    %16 = vsyncpa [#allocation3], 0
    // Predicated region
    $region2: #{tpu_custom_call.1} parent=1 // pred_check
      _
    $region3: #{tpu_custom_call.1} parent=1 // pred_check_branch
      %18 = sbr.rel (0) target = $region5
    $region4: #{tpu_custom_call.1} parent=1 // pred_region
      _
    $region5: #{tpu_custom_call.1} parent=1 // pred_fallthru
      _
    // Predicated region
    $region6: #{tpu_custom_call.1} parent=1 // pred_check
      _
    $region7: #{tpu_custom_call.1} parent=1 // pred_check_branch
      %20 = sbr.rel (0) target = $region9
    $region8: #{tpu_custom_call.1} parent=1 // pred_region
      _
    $region9: #{tpu_custom_call.1} parent=1 // pred_fallthru
      _
    // Predicated region
    $region10: #{tpu_custom_call.1} parent=1 // pred_check
      _
    $region11: #{tpu_custom_call.1} parent=1 // pred_check_branch
      %22 = sbr.rel (0) target = $region13
    $region12: #{tpu_custom_call.1} parent=1 // pred_region
      _
    $region13: #{tpu_custom_call.1} parent=1 // pred_fallthru
      _
    // Predicated region
    $region14: #{tpu_custom_call.1} parent=1 // pred_check
      _
    $region15: #{tpu_custom_call.1} parent=1 // pred_check_branch
      %24 = sbr.rel (0) target = $region17
    $region16: #{tpu_custom_call.1} parent=1 // pred_region
      _
    $region17: #{tpu_custom_call.1} parent=1 // pred_fallthru
      _
    // Predicated region
    $region18: #{tpu_custom_call.1} parent=1 // pred_check
      _
    $region19: #{tpu_custom_call.1} parent=1 // pred_check_branch
      %26 = sbr.rel (0) target = $region21
    $region20: #{tpu_custom_call.1} parent=1 // pred_region
      _
    $region21: #{tpu_custom_call.1} parent=1 // pred_fallthru
      _
    // Predicated region
    $region22: #{tpu_custom_call.1} parent=1 // pred_check
      _
    $region23: #{tpu_custom_call.1} parent=1 // pred_check_branch
      %28 = sbr.rel (0) target = $region25
    $region24: #{tpu_custom_call.1} parent=1 // pred_region
      _
    $region25: #{tpu_custom_call.1} parent=1 // pred_fallthru
      _
    // Predicated region
    $region26: #{tpu_custom_call.1} parent=1 // pred_check
      _
    $region27: #{tpu_custom_call.1} parent=1 // pred_check_branch
      %30 = sbr.rel (0) target = $region29
    $region28: #{tpu_custom_call.1} parent=1 // pred_region
      _
    $region29: #{tpu_custom_call.1} parent=1 // pred_fallthru
      _
    // Predicated region
    $region30: #{tpu_custom_call.1} parent=1 // pred_check
      _
    $region31: #{tpu_custom_call.1} parent=1 // pred_check_branch
      %32 = sbr.rel (0) target = $region33
    $region32: #{tpu_custom_call.1} parent=1 // pred_region
      _
    $region33: #{tpu_custom_call.1} parent=1 // pred_fallthru
      _
    // Predicated region
    $region34: #{tpu_custom_call.1} parent=1 // pred_check
      _
    $region35: #{tpu_custom_call.1} parent=1 // pred_check_branch
      %34 = sbr.rel (0) target = $region37
    $region36: #{tpu_custom_call.1} parent=1 // pred_region
      _
    $region37: #{tpu_custom_call.1} parent=1 // pred_fallthru
      _
    // Predicated region
    $region38: #{tpu_custom_call.1} parent=1 // pred_check
      _
    $region39: #{tpu_custom_call.1} parent=1 // pred_check_branch
      %36 = sbr.rel (0) target = $region41
    $region40: #{tpu_custom_call.1} parent=1 // pred_region
      _
    $region41: #{tpu_custom_call.1} parent=1 // pred_fallthru
      _
    // Predicated region
    $region42: #{tpu_custom_call.1} parent=1 // pred_check
      _
    $region43: #{tpu_custom_call.1} parent=1 // pred_check_branch
      %38 = sbr.rel (0) target = $region45
    $region44: #{tpu_custom_call.1} parent=1 // pred_region
      _
    $region45: #{tpu_custom_call.1} parent=1 // pred_fallthru
      _
    %v40 = vld [vmem:[%s0] sm:$0xff]
    %v41 = vld [vmem:[%s0 + $0x8] sm:$0xff]
    %v42 = vld [vmem:[%s0 + $0x10] sm:$0xff]
    %v43 = vld [vmem:[%s0 + $0x18] sm:$0xff]
    %v44 = vld [vmem:[%s0 + $0x20] sm:$0xff]
    %v45 = vld [vmem:[%s0 + $0x28] sm:$0xff]
    %v46 = vld [vmem:[%s0 + $0x30] sm:$0xff]
    %v47 = vld [vmem:[%s0 + $0x38] sm:$0xff]
    %v48 = vld [vmem:[%s0 + $0x40] sm:$0xff]
    %v49 = vld [vmem:[%s0 + $0x48] sm:$0xff]
    %v50 = vld [vmem:[%s0 + $0x50] sm:$0xff]
    %v51 = vld [vmem:[%s0 + $0x58] sm:$0xff]
    %v52 = vld [vmem:[%s0 + $0x60] sm:$0xff]
    %v53 = vld [vmem:[%s0 + $0x68] sm:$0xff]
    %v54 = vld [vmem:[%s0 + $0x70] sm:$0xff]
    %v55 = vld [vmem:[%s0 + $0x78] sm:$0xff]
    %v56 = vld [vmem:[%s0 + $0x80] sm:$0xff]
    %v57 = vld [vmem:[%s0 + $0x88] sm:$0xff]
    %v58 = vld [vmem:[%s0 + $0x90] sm:$0xff]
    %v59 = vld [vmem:[%s0 + $0x98] sm:$0xff]
    %v60 = vld [vmem:[%s0 + $0xa0] sm:$0xff]
    %v61 = vld [vmem:[%s0 + $0xa8] sm:$0xff]
    %v62 = vld [vmem:[%s0 + $0xb0] sm:$0xff]
    %v63 = vld [vmem:[%s0 + $0xb8] sm:$0xff]
    %v64 = vld [vmem:[%s0 + $0xc0] sm:$0xff]
    %v65 = vld [vmem:[%s0 + $0xc8] sm:$0xff]
    %v66 = vld [vmem:[%s0 + $0xd0] sm:$0xff]
    %v67 = vld [vmem:[%s0 + $0xd8] sm:$0xff]
    %v68 = vld [vmem:[%s0 + $0xe0] sm:$0xff]
    %v69 = vld [vmem:[%s0 + $0xe8] sm:$0xff]
    %v70 = vld [vmem:[%s0 + $0xf0] sm:$0xff]
    %v71 = vld [vmem:[%s0 + $0xf8] sm:$0xff]
    %v72 = vld [vmem:[%s0 + $0x100] sm:$0xff]
    %v73 = vld [vmem:[%s0 + $0x108] sm:$0xff]
    %v74 = vld [vmem:[%s0 + $0x110] sm:$0xff]
    %v75 = vld [vmem:[%s0 + $0x118] sm:$0xff]
    %v76 = vld [vmem:[%s0 + $0x120] sm:$0xff]
    %v77 = vld [vmem:[%s0 + $0x128] sm:$0xff]
    %v78 = vld [vmem:[%s0 + $0x130] sm:$0xff]
    %v79 = vld [vmem:[%s0 + $0x138] sm:$0xff]
    %v80 = vld [vmem:[%s0 + $0x140] sm:$0xff]
    %v81 = vld [vmem:[%s0 + $0x148] sm:$0xff]
    %v82 = vld [vmem:[%s0 + $0x150] sm:$0xff]
    %v83 = vld [vmem:[%s0 + $0x158] sm:$0xff]
    %v84 = vld [vmem:[%s0 + $0x160] sm:$0xff]
    %v85 = vld [vmem:[%s0 + $0x168] sm:$0xff]
    %v86 = vld [vmem:[%s0 + $0x170] sm:$0xff]
    %v87 = vld [vmem:[%s0 + $0x178] sm:$0xff]
    %v88 = vld [vmem:[%s0 + $0x180] sm:$0xff]
    %v89 = vld [vmem:[%s0 + $0x188] sm:$0xff]
    %v90 = vld [vmem:[%s0 + $0x190] sm:$0xff]
    %v91 = vld [vmem:[%s0 + $0x198] sm:$0xff]
    %v92 = vld [vmem:[%s0 + $0x1a0] sm:$0xff]
    %v93 = vld [vmem:[%s0 + $0x1a8] sm:$0xff]
    %v94 = vld [vmem:[%s0 + $0x1b0] sm:$0xff]
    %v95 = vld [vmem:[%s0 + $0x1b8] sm:$0xff]
    %v96 = vld [vmem:[%s0 + $0x1c0] sm:$0xff]
    %v97 = vld [vmem:[%s0 + $0x1c8] sm:$0xff]
    %v98 = vld [vmem:[%s0 + $0x1d0] sm:$0xff]
    %v99 = vld [vmem:[%s0 + $0x1d8] sm:$0xff]
    %v100 = vld [vmem:[%s0 + $0x1e0] sm:$0xff]
    %v101 = vld [vmem:[%s0 + $0x1e8] sm:$0xff]
    %v102 = vld [vmem:[%s0 + $0x1f0] sm:$0xff]
    %v103 = vld [vmem:[%s0 + $0x1f8] sm:$0xff]
    %v104 = vlaneseq
    %v105 = vshrl.u32 %v104, 7
    %v106 = vadd.s32 %v105, 8
    %v107 = vadd.s32 %v105, 16
    %v108 = vadd.s32 %v105, 24
    %v109 = vadd.s32 %v105, 32
    %v110 = vadd.s32 %v105, 40
    %v111 = vadd.s32 %v105, 48
    %v112 = vadd.s32 %v105, 56
    %v113 = vadd.s32 %v105, 64
    %v114 = vadd.s32 %v105, 72
    %v115 = vadd.s32 %v105, 80
    %v116 = vadd.s32 %v105, 88
    %v117 = vadd.s32 %v105, 96
    %v118 = vadd.s32 %v105, 104
    %v119 = vadd.s32 %v105, 112
    %v120 = vadd.s32 %v105, 120
    %v121 = vadd.s32 %v105, 128
    %v122 = vadd.s32 %v105, 136
    %v123 = vadd.s32 %v105, 144
    %v124 = vadd.s32 %v105, 152
    %v125 = vadd.s32 %v105, 160
    %v126 = vadd.s32 %v105, 168
    %v127 = vadd.s32 %v105, 176
    %v128 = vadd.s32 %v105, 184
    %v129 = vadd.s32 %v105, 192
    %v130 = vadd.s32 %v105, 200
    %v131 = vadd.s32 %v105, 208
    %v132 = vadd.s32 %v105, 216
    %v133 = vadd.s32 %v105, 224
    %v134 = vadd.s32 %v105, 232
    %v135 = vadd.s32 %v105, 240
    %v136 = vadd.s32 %v105, 248
    %v137 = vadd.s32 %v105, 256
    %v138 = vadd.s32 %v105, 264
    %v139 = vadd.s32 %v105, 272
    %v140 = vadd.s32 %v105, 280
    %v141 = vadd.s32 %v105, 288
    %v142 = vadd.s32 %v105, 296
    %v143 = vadd.s32 %v105, 304
    %v144 = vadd.s32 %v105, 312
    %v145 = vadd.s32 %v105, 320
    %v146 = vadd.s32 %v105, 328
    %v147 = vadd.s32 %v105, 336
    %v148 = vadd.s32 %v105, 344
    %v149 = vadd.s32 %v105, 352
    %v150 = vadd.s32 %v105, 360
    %v151 = vadd.s32 %v105, 368
    %v152 = vadd.s32 %v105, 376
    %v153 = vadd.s32 %v105, 384
    %v154 = vadd.s32 %v105, 392
    %v155 = vadd.s32 %v105, 400
    %v156 = vadd.s32 %v105, 408
    %v157 = vadd.s32 %v105, 416
    %v158 = vadd.s32 %v105, 424
    %v159 = vadd.s32 %v105, 432
    %v160 = vadd.s32 %v105, 440
    %v161 = vadd.s32 %v105, 448
    %v162 = vadd.s32 %v105, 456
    %v163 = vadd.s32 %v105, 464
    %v164 = vadd.s32 %v105, 472
    %v165 = vadd.s32 %v105, 480
    %v166 = vadd.s32 %v105, 488
    %v167 = vadd.s32 %v105, 496
    %v168 = vadd.s32 %v105, 504
    %vm169 = vcmp.lt.s32.totalorder %v105, 0
    %v170 = vsub.s32 0, %v105
    %v171 = vsel %vm169, %v170, %v105
    %v172 = vshrl.u32 %v171, 5
    %v173 = vand.u32 %v171, 31
    %v174 = vsub.s32 0, %v173
    %v175 = vsel %vm169, %v174, %v173
    %vm176 = vcmp.lt.s32.totalorder %v106, 0
    %v177 = vsub.s32 0, %v106
    %v178 = vsel %vm176, %v177, %v106
    %v179 = vshrl.u32 %v178, 5
    %v180 = vand.u32 %v178, 31
    %v181 = vsub.s32 0, %v180
    %v182 = vsel %vm176, %v181, %v180
    %vm183 = vcmp.lt.s32.totalorder %v107, 0
    %v184 = vsub.s32 0, %v107
    %v185 = vsel %vm183, %v184, %v107
    %v186 = vshrl.u32 %v185, 5
    %v187 = vand.u32 %v185, 31
    %v188 = vsub.s32 0, %v187
    %v189 = vsel %vm183, %v188, %v187
    %vm190 = vcmp.lt.s32.totalorder %v108, 0
    %v191 = vsub.s32 0, %v108
    %v192 = vsel %vm190, %v191, %v108
    %v193 = vshrl.u32 %v192, 5
    %v194 = vand.u32 %v192, 31
    %v195 = vsub.s32 0, %v194
    %v196 = vsel %vm190, %v195, %v194
    %vm197 = vcmp.lt.s32.totalorder %v109, 0
    %v198 = vsub.s32 0, %v109
    %v199 = vsel %vm197, %v198, %v109
    %v200 = vshrl.u32 %v199, 5
    %v201 = vand.u32 %v199, 31
    %v202 = vsub.s32 0, %v201
    %v203 = vsel %vm197, %v202, %v201
    %vm204 = vcmp.lt.s32.totalorder %v110, 0
    %v205 = vsub.s32 0, %v110
    %v206 = vsel %vm204, %v205, %v110
    %v207 = vshrl.u32 %v206, 5
    %v208 = vand.u32 %v206, 31
    %v209 = vsub.s32 0, %v208
    %v210 = vsel %vm204, %v209, %v208
    %vm211 = vcmp.lt.s32.totalorder %v111, 0
    %v212 = vsub.s32 0, %v111
    %v213 = vsel %vm211, %v212, %v111
    %v214 = vshrl.u32 %v213, 5
    %v215 = vand.u32 %v213, 31
    %v216 = vsub.s32 0, %v215
    %v217 = vsel %vm211, %v216, %v215
    %vm218 = vcmp.lt.s32.totalorder %v112, 0
    %v219 = vsub.s32 0, %v112
    %v220 = vsel %vm218, %v219, %v112
    %v221 = vshrl.u32 %v220, 5
    %v222 = vand.u32 %v220, 31
    %v223 = vsub.s32 0, %v222
    %v224 = vsel %vm218, %v223, %v222
    %vm225 = vcmp.lt.s32.totalorder %v113, 0
    %v226 = vsub.s32 0, %v113
    %v227 = vsel %vm225, %v226, %v113
    %v228 = vshrl.u32 %v227, 5
    %v229 = vand.u32 %v227, 31
    %v230 = vsub.s32 0, %v229
    %v231 = vsel %vm225, %v230, %v229
    %vm232 = vcmp.lt.s32.totalorder %v114, 0
    %v233 = vsub.s32 0, %v114
    %v234 = vsel %vm232, %v233, %v114
    %v235 = vshrl.u32 %v234, 5
    %v236 = vand.u32 %v234, 31
    %v237 = vsub.s32 0, %v236
    %v238 = vsel %vm232, %v237, %v236
    %vm239 = vcmp.lt.s32.totalorder %v115, 0
    %v240 = vsub.s32 0, %v115
    %v241 = vsel %vm239, %v240, %v115
    %v242 = vshrl.u32 %v241, 5
    %v243 = vand.u32 %v241, 31
    %v244 = vsub.s32 0, %v243
    %v245 = vsel %vm239, %v244, %v243
    %vm246 = vcmp.lt.s32.totalorder %v116, 0
    %v247 = vsub.s32 0, %v116
    %v248 = vsel %vm246, %v247, %v116
    %v249 = vshrl.u32 %v248, 5
    %v250 = vand.u32 %v248, 31
    %v251 = vsub.s32 0, %v250
    %v252 = vsel %vm246, %v251, %v250
    %vm253 = vcmp.lt.s32.totalorder %v117, 0
    %v254 = vsub.s32 0, %v117
    %v255 = vsel %vm253, %v254, %v117
    %v256 = vshrl.u32 %v255, 5
    %v257 = vand.u32 %v255, 31
    %v258 = vsub.s32 0, %v257
    %v259 = vsel %vm253, %v258, %v257
    %vm260 = vcmp.lt.s32.totalorder %v118, 0
    %v261 = vsub.s32 0, %v118
    %v262 = vsel %vm260, %v261, %v118
    %v263 = vshrl.u32 %v262, 5
    %v264 = vand.u32 %v262, 31
    %v265 = vsub.s32 0, %v264
    %v266 = vsel %vm260, %v265, %v264
    %vm267 = vcmp.lt.s32.totalorder %v119, 0
    %v268 = vsub.s32 0, %v119
    %v269 = vsel %vm267, %v268, %v119
    %v270 = vshrl.u32 %v269, 5
    %v271 = vand.u32 %v269, 31
    %v272 = vsub.s32 0, %v271
    %v273 = vsel %vm267, %v272, %v271
    %vm274 = vcmp.lt.s32.totalorder %v120, 0
    %v275 = vsub.s32 0, %v120
    %v276 = vsel %vm274, %v275, %v120
    %v277 = vshrl.u32 %v276, 5
    %v278 = vand.u32 %v276, 31
    %v279 = vsub.s32 0, %v278
    %v280 = vsel %vm274, %v279, %v278
    %vm281 = vcmp.lt.s32.totalorder %v121, 0
    %v282 = vsub.s32 0, %v121
    %v283 = vsel %vm281, %v282, %v121
    %v284 = vshrl.u32 %v283, 5
    %v285 = vand.u32 %v283, 31
    %v286 = vsub.s32 0, %v285
    %v287 = vsel %vm281, %v286, %v285
    %vm288 = vcmp.lt.s32.totalorder %v122, 0
    %v289 = vsub.s32 0, %v122
    %v290 = vsel %vm288, %v289, %v122
    %v291 = vshrl.u32 %v290, 5
    %v292 = vand.u32 %v290, 31
    %v293 = vsub.s32 0, %v292
    %v294 = vsel %vm288, %v293, %v292
    %vm295 = vcmp.lt.s32.totalorder %v123, 0
    %v296 = vsub.s32 0, %v123
    %v297 = vsel %vm295, %v296, %v123
    %v298 = vshrl.u32 %v297, 5
    %v299 = vand.u32 %v297, 31
    %v300 = vsub.s32 0, %v299
    %v301 = vsel %vm295, %v300, %v299
    %vm302 = vcmp.lt.s32.totalorder %v124, 0
    %v303 = vsub.s32 0, %v124
    %v304 = vsel %vm302, %v303, %v124
    %v305 = vshrl.u32 %v304, 5
    %v306 = vand.u32 %v304, 31
    %v307 = vsub.s32 0, %v306
    %v308 = vsel %vm302, %v307, %v306
    %vm309 = vcmp.lt.s32.totalorder %v125, 0
    %v310 = vsub.s32 0, %v125
    %v311 = vsel %vm309, %v310, %v125
    %v312 = vshrl.u32 %v311, 5
    %v313 = vand.u32 %v311, 31
    %v314 = vsub.s32 0, %v313
    %v315 = vsel %vm309, %v314, %v313
    %vm316 = vcmp.lt.s32.totalorder %v126, 0
    %v317 = vsub.s32 0, %v126
    %v318 = vsel %vm316, %v317, %v126
    %v319 = vshrl.u32 %v318, 5
    %v320 = vand.u32 %v318, 31
    %v321 = vsub.s32 0, %v320
    %v322 = vsel %vm316, %v321, %v320
    %vm323 = vcmp.lt.s32.totalorder %v127, 0
    %v324 = vsub.s32 0, %v127
    %v325 = vsel %vm323, %v324, %v127
    %v326 = vshrl.u32 %v325, 5
    %v327 = vand.u32 %v325, 31
    %v328 = vsub.s32 0, %v327
    %v329 = vsel %vm323, %v328, %v327
    %vm330 = vcmp.lt.s32.totalorder %v128, 0
    %v331 = vsub.s32 0, %v128
    %v332 = vsel %vm330, %v331, %v128
    %v333 = vshrl.u32 %v332, 5
    %v334 = vand.u32 %v332, 31
    %v335 = vsub.s32 0, %v334
    %v336 = vsel %vm330, %v335, %v334
    %vm337 = vcmp.lt.s32.totalorder %v129, 0
    %v338 = vsub.s32 0, %v129
    %v339 = vsel %vm337, %v338, %v129
    %v340 = vshrl.u32 %v339, 5
    %v341 = vand.u32 %v339, 31
    %v342 = vsub.s32 0, %v341
    %v343 = vsel %vm337, %v342, %v341
    %vm344 = vcmp.lt.s32.totalorder %v130, 0
    %v345 = vsub.s32 0, %v130
    %v346 = vsel %vm344, %v345, %v130
    %v347 = vshrl.u32 %v346, 5
    %v348 = vand.u32 %v346, 31
    %v349 = vsub.s32 0, %v348
    %v350 = vsel %vm344, %v349, %v348
    %vm351 = vcmp.lt.s32.totalorder %v131, 0
    %v352 = vsub.s32 0, %v131
    %v353 = vsel %vm351, %v352, %v131
    %v354 = vshrl.u32 %v353, 5
    %v355 = vand.u32 %v353, 31
    %v356 = vsub.s32 0, %v355
    %v357 = vsel %vm351, %v356, %v355
    %vm358 = vcmp.lt.s32.totalorder %v132, 0
    %v359 = vsub.s32 0, %v132
    %v360 = vsel %vm358, %v359, %v132
    %v361 = vshrl.u32 %v360, 5
    %v362 = vand.u32 %v360, 31
    %v363 = vsub.s32 0, %v362
    %v364 = vsel %vm358, %v363, %v362
    %vm365 = vcmp.lt.s32.totalorder %v133, 0
    %v366 = vsub.s32 0, %v133
    %v367 = vsel %vm365, %v366, %v133
    %v368 = vshrl.u32 %v367, 5
    %v369 = vand.u32 %v367, 31
    %v370 = vsub.s32 0, %v369
    %v371 = vsel %vm365, %v370, %v369
    %vm372 = vcmp.lt.s32.totalorder %v134, 0
    %v373 = vsub.s32 0, %v134
    %v374 = vsel %vm372, %v373, %v134
    %v375 = vshrl.u32 %v374, 5
    %v376 = vand.u32 %v374, 31
    %v377 = vsub.s32 0, %v376
    %v378 = vsel %vm372, %v377, %v376
    %vm379 = vcmp.lt.s32.totalorder %v135, 0
    %v380 = vsub.s32 0, %v135
    %v381 = vsel %vm379, %v380, %v135
    %v382 = vshrl.u32 %v381, 5
    %v383 = vand.u32 %v381, 31
    %v384 = vsub.s32 0, %v383
    %v385 = vsel %vm379, %v384, %v383
    %vm386 = vcmp.lt.s32.totalorder %v136, 0
    %v387 = vsub.s32 0, %v136
    %v388 = vsel %vm386, %v387, %v136
    %v389 = vshrl.u32 %v388, 5
    %v390 = vand.u32 %v388, 31
    %v391 = vsub.s32 0, %v390
    %v392 = vsel %vm386, %v391, %v390
    %vm393 = vcmp.lt.s32.totalorder %v137, 0
    %v394 = vsub.s32 0, %v137
    %v395 = vsel %vm393, %v394, %v137
    %v396 = vshrl.u32 %v395, 5
    %v397 = vand.u32 %v395, 31
    %v398 = vsub.s32 0, %v397
    %v399 = vsel %vm393, %v398, %v397
    %vm400 = vcmp.lt.s32.totalorder %v138, 0
    %v401 = vsub.s32 0, %v138
    %v402 = vsel %vm400, %v401, %v138
    %v403 = vshrl.u32 %v402, 5
    %v404 = vand.u32 %v402, 31
    %v405 = vsub.s32 0, %v404
    %v406 = vsel %vm400, %v405, %v404
    %vm407 = vcmp.lt.s32.totalorder %v139, 0
    %v408 = vsub.s32 0, %v139
    %v409 = vsel %vm407, %v408, %v139
    %v410 = vshrl.u32 %v409, 5
    %v411 = vand.u32 %v409, 31
    %v412 = vsub.s32 0, %v411
    %v413 = vsel %vm407, %v412, %v411
    %vm414 = vcmp.lt.s32.totalorder %v140, 0
    %v415 = vsub.s32 0, %v140
    %v416 = vsel %vm414, %v415, %v140
    %v417 = vshrl.u32 %v416, 5
    %v418 = vand.u32 %v416, 31
    %v419 = vsub.s32 0, %v418
    %v420 = vsel %vm414, %v419, %v418
    %vm421 = vcmp.lt.s32.totalorder %v141, 0
    %v422 = vsub.s32 0, %v141
    %v423 = vsel %vm421, %v422, %v141
    %v424 = vshrl.u32 %v423, 5
    %v425 = vand.u32 %v423, 31
    %v426 = vsub.s32 0, %v425
    %v427 = vsel %vm421, %v426, %v425
    %vm428 = vcmp.lt.s32.totalorder %v142, 0
    %v429 = vsub.s32 0, %v142
    %v430 = vsel %vm428, %v429, %v142
    %v431 = vshrl.u32 %v430, 5
    %v432 = vand.u32 %v430, 31
    %v433 = vsub.s32 0, %v432
    %v434 = vsel %vm428, %v433, %v432
    %vm435 = vcmp.lt.s32.totalorder %v143, 0
    %v436 = vsub.s32 0, %v143
    %v437 = vsel %vm435, %v436, %v143
    %v438 = vshrl.u32 %v437, 5
    %v439 = vand.u32 %v437, 31
    %v440 = vsub.s32 0, %v439
    %v441 = vsel %vm435, %v440, %v439
    %vm442 = vcmp.lt.s32.totalorder %v144, 0
    %v443 = vsub.s32 0, %v144
    %v444 = vsel %vm442, %v443, %v144
    %v445 = vshrl.u32 %v444, 5
    %v446 = vand.u32 %v444, 31
    %v447 = vsub.s32 0, %v446
    %v448 = vsel %vm442, %v447, %v446
    %vm449 = vcmp.lt.s32.totalorder %v145, 0
    %v450 = vsub.s32 0, %v145
    %v451 = vsel %vm449, %v450, %v145
    %v452 = vshrl.u32 %v451, 5
    %v453 = vand.u32 %v451, 31
    %v454 = vsub.s32 0, %v453
    %v455 = vsel %vm449, %v454, %v453
    %vm456 = vcmp.lt.s32.totalorder %v146, 0
    %v457 = vsub.s32 0, %v146
    %v458 = vsel %vm456, %v457, %v146
    %v459 = vshrl.u32 %v458, 5
    %v460 = vand.u32 %v458, 31
    %v461 = vsub.s32 0, %v460
    %v462 = vsel %vm456, %v461, %v460
    %vm463 = vcmp.lt.s32.totalorder %v147, 0
    %v464 = vsub.s32 0, %v147
    %v465 = vsel %vm463, %v464, %v147
    %v466 = vshrl.u32 %v465, 5
    %v467 = vand.u32 %v465, 31
    %v468 = vsub.s32 0, %v467
    %v469 = vsel %vm463, %v468, %v467
    %vm470 = vcmp.lt.s32.totalorder %v148, 0
    %v471 = vsub.s32 0, %v148
    %v472 = vsel %vm470, %v471, %v148
    %v473 = vshrl.u32 %v472, 5
    %v474 = vand.u32 %v472, 31
    %v475 = vsub.s32 0, %v474
    %v476 = vsel %vm470, %v475, %v474
    %vm477 = vcmp.lt.s32.totalorder %v149, 0
    %v478 = vsub.s32 0, %v149
    %v479 = vsel %vm477, %v478, %v149
    %v480 = vshrl.u32 %v479, 5
    %v481 = vand.u32 %v479, 31
    %v482 = vsub.s32 0, %v481
    %v483 = vsel %vm477, %v482, %v481
    %vm484 = vcmp.lt.s32.totalorder %v150, 0
    %v485 = vsub.s32 0, %v150
    %v486 = vsel %vm484, %v485, %v150
    %v487 = vshrl.u32 %v486, 5
    %v488 = vand.u32 %v486, 31
    %v489 = vsub.s32 0, %v488
    %v490 = vsel %vm484, %v489, %v488
    %vm491 = vcmp.lt.s32.totalorder %v151, 0
    %v492 = vsub.s32 0, %v151
    %v493 = vsel %vm491, %v492, %v151
    %v494 = vshrl.u32 %v493, 5
    %v495 = vand.u32 %v493, 31
    %v496 = vsub.s32 0, %v495
    %v497 = vsel %vm491, %v496, %v495
    %vm498 = vcmp.lt.s32.totalorder %v152, 0
    %v499 = vsub.s32 0, %v152
    %v500 = vsel %vm498, %v499, %v152
    %v501 = vshrl.u32 %v500, 5
    %v502 = vand.u32 %v500, 31
    %v503 = vsub.s32 0, %v502
    %v504 = vsel %vm498, %v503, %v502
    %vm505 = vcmp.lt.s32.totalorder %v153, 0
    %v506 = vsub.s32 0, %v153
    %v507 = vsel %vm505, %v506, %v153
    %v508 = vshrl.u32 %v507, 5
    %v509 = vand.u32 %v507, 31
    %v510 = vsub.s32 0, %v509
    %v511 = vsel %vm505, %v510, %v509
    %vm512 = vcmp.lt.s32.totalorder %v154, 0
    %v513 = vsub.s32 0, %v154
    %v514 = vsel %vm512, %v513, %v154
    %v515 = vshrl.u32 %v514, 5
    %v516 = vand.u32 %v514, 31
    %v517 = vsub.s32 0, %v516
    %v518 = vsel %vm512, %v517, %v516
    %vm519 = vcmp.lt.s32.totalorder %v155, 0
    %v520 = vsub.s32 0, %v155
    %v521 = vsel %vm519, %v520, %v155
    %v522 = vshrl.u32 %v521, 5
    %v523 = vand.u32 %v521, 31
    %v524 = vsub.s32 0, %v523
    %v525 = vsel %vm519, %v524, %v523
    %vm526 = vcmp.lt.s32.totalorder %v156, 0
    %v527 = vsub.s32 0, %v156
    %v528 = vsel %vm526, %v527, %v156
    %v529 = vshrl.u32 %v528, 5
    %v530 = vand.u32 %v528, 31
    %v531 = vsub.s32 0, %v530
    %v532 = vsel %vm526, %v531, %v530
    %vm533 = vcmp.lt.s32.totalorder %v157, 0
    %v534 = vsub.s32 0, %v157
    %v535 = vsel %vm533, %v534, %v157
    %v536 = vshrl.u32 %v535, 5
    %v537 = vand.u32 %v535, 31
    %v538 = vsub.s32 0, %v537
    %v539 = vsel %vm533, %v538, %v537
    %vm540 = vcmp.lt.s32.totalorder %v158, 0
    %v541 = vsub.s32 0, %v158
    %v542 = vsel %vm540, %v541, %v158
    %v543 = vshrl.u32 %v542, 5
    %v544 = vand.u32 %v542, 31
    %v545 = vsub.s32 0, %v544
    %v546 = vsel %vm540, %v545, %v544
    %vm547 = vcmp.lt.s32.totalorder %v159, 0
    %v548 = vsub.s32 0, %v159
    %v549 = vsel %vm547, %v548, %v159
    %v550 = vshrl.u32 %v549, 5
    %v551 = vand.u32 %v549, 31
    %v552 = vsub.s32 0, %v551
    %v553 = vsel %vm547, %v552, %v551
    %vm554 = vcmp.lt.s32.totalorder %v160, 0
    %v555 = vsub.s32 0, %v160
    %v556 = vsel %vm554, %v555, %v160
    %v557 = vshrl.u32 %v556, 5
    %v558 = vand.u32 %v556, 31
    %v559 = vsub.s32 0, %v558
    %v560 = vsel %vm554, %v559, %v558
    %vm561 = vcmp.lt.s32.totalorder %v161, 0
    %v562 = vsub.s32 0, %v161
    %v563 = vsel %vm561, %v562, %v161
    %v564 = vshrl.u32 %v563, 5
    %v565 = vand.u32 %v563, 31
    %v566 = vsub.s32 0, %v565
    %v567 = vsel %vm561, %v566, %v565
    %vm568 = vcmp.lt.s32.totalorder %v162, 0
    %v569 = vsub.s32 0, %v162
    %v570 = vsel %vm568, %v569, %v162
    %v571 = vshrl.u32 %v570, 5
    %v572 = vand.u32 %v570, 31
    %v573 = vsub.s32 0, %v572
    %v574 = vsel %vm568, %v573, %v572
    %vm575 = vcmp.lt.s32.totalorder %v163, 0
    %v576 = vsub.s32 0, %v163
    %v577 = vsel %vm575, %v576, %v163
    %v578 = vshrl.u32 %v577, 5
    %v579 = vand.u32 %v577, 31
    %v580 = vsub.s32 0, %v579
    %v581 = vsel %vm575, %v580, %v579
    %vm582 = vcmp.lt.s32.totalorder %v164, 0
    %v583 = vsub.s32 0, %v164
    %v584 = vsel %vm582, %v583, %v164
    %v585 = vshrl.u32 %v584, 5
    %v586 = vand.u32 %v584, 31
    %v587 = vsub.s32 0, %v586
    %v588 = vsel %vm582, %v587, %v586
    %vm589 = vcmp.lt.s32.totalorder %v165, 0
    %v590 = vsub.s32 0, %v165
    %v591 = vsel %vm589, %v590, %v165
    %v592 = vshrl.u32 %v591, 5
    %v593 = vand.u32 %v591, 31
    %v594 = vsub.s32 0, %v593
    %v595 = vsel %vm589, %v594, %v593
    %vm596 = vcmp.lt.s32.totalorder %v166, 0
    %v597 = vsub.s32 0, %v166
    %v598 = vsel %vm596, %v597, %v166
    %v599 = vshrl.u32 %v598, 5
    %v600 = vand.u32 %v598, 31
    %v601 = vsub.s32 0, %v600
    %v602 = vsel %vm596, %v601, %v600
    %vm603 = vcmp.lt.s32.totalorder %v167, 0
    %v604 = vsub.s32 0, %v167
    %v605 = vsel %vm603, %v604, %v167
    %v606 = vshrl.u32 %v605, 5
    %v607 = vand.u32 %v605, 31
    %v608 = vsub.s32 0, %v607
    %v609 = vsel %vm603, %v608, %v607
    %vm610 = vcmp.lt.s32.totalorder %v168, 0
    %v611 = vsub.s32 0, %v168
    %v612 = vsel %vm610, %v611, %v168
    %v613 = vshrl.u32 %v612, 5
    %v614 = vand.u32 %v612, 31
    %v615 = vsub.s32 0, %v614
    %v616 = vsel %vm610, %v615, %v614
    %vm617 = vcmp.ne.s32.totalorder %v175, 0
    %vm618 = vcmp.ne.s32.totalorder %v182, 0
    %vm619 = vcmp.ne.s32.totalorder %v189, 0
    %vm620 = vcmp.ne.s32.totalorder %v196, 0
    %vm621 = vcmp.ne.s32.totalorder %v203, 0
    %vm622 = vcmp.ne.s32.totalorder %v210, 0
    %vm623 = vcmp.ne.s32.totalorder %v217, 0
    %vm624 = vcmp.ne.s32.totalorder %v224, 0
    %vm625 = vcmp.ne.s32.totalorder %v231, 0
    %vm626 = vcmp.ne.s32.totalorder %v238, 0
    %vm627 = vcmp.ne.s32.totalorder %v245, 0
    %vm628 = vcmp.ne.s32.totalorder %v252, 0
    %vm629 = vcmp.ne.s32.totalorder %v259, 0
    %vm630 = vcmp.ne.s32.totalorder %v266, 0
    %vm631 = vcmp.ne.s32.totalorder %v273, 0
    %vm632 = vcmp.ne.s32.totalorder %v280, 0
    %vm633 = vcmp.ne.s32.totalorder %v287, 0
    %vm634 = vcmp.ne.s32.totalorder %v294, 0
    %vm635 = vcmp.ne.s32.totalorder %v301, 0
    %vm636 = vcmp.ne.s32.totalorder %v308, 0
    %vm637 = vcmp.ne.s32.totalorder %v315, 0
    %vm638 = vcmp.ne.s32.totalorder %v322, 0
    %vm639 = vcmp.ne.s32.totalorder %v329, 0
    %vm640 = vcmp.ne.s32.totalorder %v336, 0
    %vm641 = vcmp.ne.s32.totalorder %v343, 0
    %vm642 = vcmp.ne.s32.totalorder %v350, 0
    %vm643 = vcmp.ne.s32.totalorder %v357, 0
    %vm644 = vcmp.ne.s32.totalorder %v364, 0
    %vm645 = vcmp.ne.s32.totalorder %v371, 0
    %vm646 = vcmp.ne.s32.totalorder %v378, 0
    %vm647 = vcmp.ne.s32.totalorder %v385, 0
    %vm648 = vcmp.ne.s32.totalorder %v392, 0
    %vm649 = vcmp.ne.s32.totalorder %v399, 0
    %vm650 = vcmp.ne.s32.totalorder %v406, 0
    %vm651 = vcmp.ne.s32.totalorder %v413, 0
    %vm652 = vcmp.ne.s32.totalorder %v420, 0
    %vm653 = vcmp.ne.s32.totalorder %v427, 0
    %vm654 = vcmp.ne.s32.totalorder %v434, 0
    %vm655 = vcmp.ne.s32.totalorder %v441, 0
    %vm656 = vcmp.ne.s32.totalorder %v448, 0
    %vm657 = vcmp.ne.s32.totalorder %v455, 0
    %vm658 = vcmp.ne.s32.totalorder %v462, 0
    %vm659 = vcmp.ne.s32.totalorder %v469, 0
    %vm660 = vcmp.ne.s32.totalorder %v476, 0
    %vm661 = vcmp.ne.s32.totalorder %v483, 0
    %vm662 = vcmp.ne.s32.totalorder %v490, 0
    %vm663 = vcmp.ne.s32.totalorder %v497, 0
    %vm664 = vcmp.ne.s32.totalorder %v504, 0
    %vm665 = vcmp.ne.s32.totalorder %v511, 0
    %vm666 = vcmp.ne.s32.totalorder %v518, 0
    %vm667 = vcmp.ne.s32.totalorder %v525, 0
    %vm668 = vcmp.ne.s32.totalorder %v532, 0
    %vm669 = vcmp.ne.s32.totalorder %v539, 0
    %vm670 = vcmp.ne.s32.totalorder %v546, 0
    %vm671 = vcmp.ne.s32.totalorder %v553, 0
    %vm672 = vcmp.ne.s32.totalorder %v560, 0
    %vm673 = vcmp.ne.s32.totalorder %v567, 0
    %vm674 = vcmp.ne.s32.totalorder %v574, 0
    %vm675 = vcmp.ne.s32.totalorder %v581, 0
    %vm676 = vcmp.ne.s32.totalorder %v588, 0
    %vm677 = vcmp.ne.s32.totalorder %v595, 0
    %vm678 = vcmp.ne.s32.totalorder %v602, 0
    %vm679 = vcmp.ne.s32.totalorder %v609, 0
    %vm680 = vcmp.ne.s32.totalorder %v616, 0
    %vm681 = vcmp.lt.s32.totalorder %v175, 0
    %vm682 = vcmp.lt.s32.totalorder %v182, 0
    %vm683 = vcmp.lt.s32.totalorder %v189, 0
    %vm684 = vcmp.lt.s32.totalorder %v196, 0
    %vm685 = vcmp.lt.s32.totalorder %v203, 0
    %vm686 = vcmp.lt.s32.totalorder %v210, 0
    %vm687 = vcmp.lt.s32.totalorder %v217, 0
    %vm688 = vcmp.lt.s32.totalorder %v224, 0
    %vm689 = vcmp.lt.s32.totalorder %v231, 0
    %vm690 = vcmp.lt.s32.totalorder %v238, 0
    %vm691 = vcmp.lt.s32.totalorder %v245, 0
    %vm692 = vcmp.lt.s32.totalorder %v252, 0
    %vm693 = vcmp.lt.s32.totalorder %v259, 0
    %vm694 = vcmp.lt.s32.totalorder %v266, 0
    %vm695 = vcmp.lt.s32.totalorder %v273, 0
    %vm696 = vcmp.lt.s32.totalorder %v280, 0
    %vm697 = vcmp.lt.s32.totalorder %v287, 0
    %vm698 = vcmp.lt.s32.totalorder %v294, 0
    %vm699 = vcmp.lt.s32.totalorder %v301, 0
    %vm700 = vcmp.lt.s32.totalorder %v308, 0
    %vm701 = vcmp.lt.s32.totalorder %v315, 0
    %vm702 = vcmp.lt.s32.totalorder %v322, 0
    %vm703 = vcmp.lt.s32.totalorder %v329, 0
    %vm704 = vcmp.lt.s32.totalorder %v336, 0
    %vm705 = vcmp.lt.s32.totalorder %v343, 0
    %vm706 = vcmp.lt.s32.totalorder %v350, 0
    %vm707 = vcmp.lt.s32.totalorder %v357, 0
    %vm708 = vcmp.lt.s32.totalorder %v364, 0
    %vm709 = vcmp.lt.s32.totalorder %v371, 0
    %vm710 = vcmp.lt.s32.totalorder %v378, 0
    %vm711 = vcmp.lt.s32.totalorder %v385, 0
    %vm712 = vcmp.lt.s32.totalorder %v392, 0
    %vm713 = vcmp.lt.s32.totalorder %v399, 0
    %vm714 = vcmp.lt.s32.totalorder %v406, 0
    %vm715 = vcmp.lt.s32.totalorder %v413, 0
    %vm716 = vcmp.lt.s32.totalorder %v420, 0
    %vm717 = vcmp.lt.s32.totalorder %v427, 0
    %vm718 = vcmp.lt.s32.totalorder %v434, 0
    %vm719 = vcmp.lt.s32.totalorder %v441, 0
    %vm720 = vcmp.lt.s32.totalorder %v448, 0
    %vm721 = vcmp.lt.s32.totalorder %v455, 0
    %vm722 = vcmp.lt.s32.totalorder %v462, 0
    %vm723 = vcmp.lt.s32.totalorder %v469, 0
    %vm724 = vcmp.lt.s32.totalorder %v476, 0
    %vm725 = vcmp.lt.s32.totalorder %v483, 0
    %vm726 = vcmp.lt.s32.totalorder %v490, 0
    %vm727 = vcmp.lt.s32.totalorder %v497, 0
    %vm728 = vcmp.lt.s32.totalorder %v504, 0
    %vm729 = vcmp.lt.s32.totalorder %v511, 0
    %vm730 = vcmp.lt.s32.totalorder %v518, 0
    %vm731 = vcmp.lt.s32.totalorder %v525, 0
    %vm732 = vcmp.lt.s32.totalorder %v532, 0
    %vm733 = vcmp.lt.s32.totalorder %v539, 0
    %vm734 = vcmp.lt.s32.totalorder %v546, 0
    %vm735 = vcmp.lt.s32.totalorder %v553, 0
    %vm736 = vcmp.lt.s32.totalorder %v560, 0
    %vm737 = vcmp.lt.s32.totalorder %v567, 0
    %vm738 = vcmp.lt.s32.totalorder %v574, 0
    %vm739 = vcmp.lt.s32.totalorder %v581, 0
    %vm740 = vcmp.lt.s32.totalorder %v588, 0
    %vm741 = vcmp.lt.s32.totalorder %v595, 0
    %vm742 = vcmp.lt.s32.totalorder %v602, 0
    %vm743 = vcmp.lt.s32.totalorder %v609, 0
    %vm744 = vcmp.lt.s32.totalorder %v616, 0
    %vm745 = vmand %vm681, %vm617
    %vm746 = vmand %vm682, %vm618
    %vm747 = vmand %vm683, %vm619
    %vm748 = vmand %vm684, %vm620
    %vm749 = vmand %vm685, %vm621
    %vm750 = vmand %vm686, %vm622
    %vm751 = vmand %vm687, %vm623
    %vm752 = vmand %vm688, %vm624
    %vm753 = vmand %vm689, %vm625
    %vm754 = vmand %vm690, %vm626
    %vm755 = vmand %vm691, %vm627
    %vm756 = vmand %vm692, %vm628
    %vm757 = vmand %vm693, %vm629
    %vm758 = vmand %vm694, %vm630
    %vm759 = vmand %vm695, %vm631
    %vm760 = vmand %vm696, %vm632
    %vm761 = vmand %vm697, %vm633
    %vm762 = vmand %vm698, %vm634
    %vm763 = vmand %vm699, %vm635
    %vm764 = vmand %vm700, %vm636
    %vm765 = vmand %vm701, %vm637
    %vm766 = vmand %vm702, %vm638
    %vm767 = vmand %vm703, %vm639
    %vm768 = vmand %vm704, %vm640
    %vm769 = vmand %vm705, %vm641
    %vm770 = vmand %vm706, %vm642
    %vm771 = vmand %vm707, %vm643
    %vm772 = vmand %vm708, %vm644
    %vm773 = vmand %vm709, %vm645
    %vm774 = vmand %vm710, %vm646
    %vm775 = vmand %vm711, %vm647
    %vm776 = vmand %vm712, %vm648
    %vm777 = vmand %vm713, %vm649
    %vm778 = vmand %vm714, %vm650
    %vm779 = vmand %vm715, %vm651
    %vm780 = vmand %vm716, %vm652
    %vm781 = vmand %vm717, %vm653
    %vm782 = vmand %vm718, %vm654
    %vm783 = vmand %vm719, %vm655
    %vm784 = vmand %vm720, %vm656
    %vm785 = vmand %vm721, %vm657
    %vm786 = vmand %vm722, %vm658
    %vm787 = vmand %vm723, %vm659
    %vm788 = vmand %vm724, %vm660
    %vm789 = vmand %vm725, %vm661
    %vm790 = vmand %vm726, %vm662
    %vm791 = vmand %vm727, %vm663
    %vm792 = vmand %vm728, %vm664
    %vm793 = vmand %vm729, %vm665
    %vm794 = vmand %vm730, %vm666
    %vm795 = vmand %vm731, %vm667
    %vm796 = vmand %vm732, %vm668
    %vm797 = vmand %vm733, %vm669
    %vm798 = vmand %vm734, %vm670
    %vm799 = vmand %vm735, %vm671
    %vm800 = vmand %vm736, %vm672
    %vm801 = vmand %vm737, %vm673
    %vm802 = vmand %vm738, %vm674
    %vm803 = vmand %vm739, %vm675
    %vm804 = vmand %vm740, %vm676
    %vm805 = vmand %vm741, %vm677
    %vm806 = vmand %vm742, %vm678
    %vm807 = vmand %vm743, %vm679
    %vm808 = vmand %vm744, %vm680
    %v809 = vadd.s32 %v175, 32
    %v810 = vadd.s32 %v182, 32
    %v811 = vadd.s32 %v189, 32
    %v812 = vadd.s32 %v196, 32
    %v813 = vadd.s32 %v203, 32
    %v814 = vadd.s32 %v210, 32
    %v815 = vadd.s32 %v217, 32
    %v816 = vadd.s32 %v224, 32
    %v817 = vadd.s32 %v231, 32
    %v818 = vadd.s32 %v238, 32
    %v819 = vadd.s32 %v245, 32
    %v820 = vadd.s32 %v252, 32
    %v821 = vadd.s32 %v259, 32
    %v822 = vadd.s32 %v266, 32
    %v823 = vadd.s32 %v273, 32
    %v824 = vadd.s32 %v280, 32
    %v825 = vadd.s32 %v287, 32
    %v826 = vadd.s32 %v294, 32
    %v827 = vadd.s32 %v301, 32
    %v828 = vadd.s32 %v308, 32
    %v829 = vadd.s32 %v315, 32
    %v830 = vadd.s32 %v322, 32
    %v831 = vadd.s32 %v329, 32
    %v832 = vadd.s32 %v336, 32
    %v833 = vadd.s32 %v343, 32
    %v834 = vadd.s32 %v350, 32
    %v835 = vadd.s32 %v357, 32
    %v836 = vadd.s32 %v364, 32
    %v837 = vadd.s32 %v371, 32
    %v838 = vadd.s32 %v378, 32
    %v839 = vadd.s32 %v385, 32
    %v840 = vadd.s32 %v392, 32
    %v841 = vadd.s32 %v399, 32
    %v842 = vadd.s32 %v406, 32
    %v843 = vadd.s32 %v413, 32
    %v844 = vadd.s32 %v420, 32
    %v845 = vadd.s32 %v427, 32
    %v846 = vadd.s32 %v434, 32
    %v847 = vadd.s32 %v441, 32
    %v848 = vadd.s32 %v448, 32
    %v849 = vadd.s32 %v455, 32
    %v850 = vadd.s32 %v462, 32
    %v851 = vadd.s32 %v469, 32
    %v852 = vadd.s32 %v476, 32
    %v853 = vadd.s32 %v483, 32
    %v854 = vadd.s32 %v490, 32
    %v855 = vadd.s32 %v497, 32
    %v856 = vadd.s32 %v504, 32
    %v857 = vadd.s32 %v511, 32
    %v858 = vadd.s32 %v518, 32
    %v859 = vadd.s32 %v525, 32
    %v860 = vadd.s32 %v532, 32
    %v861 = vadd.s32 %v539, 32
    %v862 = vadd.s32 %v546, 32
    %v863 = vadd.s32 %v553, 32
    %v864 = vadd.s32 %v560, 32
    %v865 = vadd.s32 %v567, 32
    %v866 = vadd.s32 %v574, 32
    %v867 = vadd.s32 %v581, 32
    %v868 = vadd.s32 %v588, 32
    %v869 = vadd.s32 %v595, 32
    %v870 = vadd.s32 %v602, 32
    %v871 = vadd.s32 %v609, 32
    %v872 = vadd.s32 %v616, 32
    %v873 = vsel %vm745, %v809, %v175
    %v874 = vsel %vm746, %v810, %v182
    %v875 = vsel %vm747, %v811, %v189
    %v876 = vsel %vm748, %v812, %v196
    %v877 = vsel %vm749, %v813, %v203
    %v878 = vsel %vm750, %v814, %v210
    %v879 = vsel %vm751, %v815, %v217
    %v880 = vsel %vm752, %v816, %v224
    %v881 = vsel %vm753, %v817, %v231
    %v882 = vsel %vm754, %v818, %v238
    %v883 = vsel %vm755, %v819, %v245
    %v884 = vsel %vm756, %v820, %v252
    %v885 = vsel %vm757, %v821, %v259
    %v886 = vsel %vm758, %v822, %v266
    %v887 = vsel %vm759, %v823, %v273
    %v888 = vsel %vm760, %v824, %v280
    %v889 = vsel %vm761, %v825, %v287
    %v890 = vsel %vm762, %v826, %v294
    %v891 = vsel %vm763, %v827, %v301
    %v892 = vsel %vm764, %v828, %v308
    %v893 = vsel %vm765, %v829, %v315
    %v894 = vsel %vm766, %v830, %v322
    %v895 = vsel %vm767, %v831, %v329
    %v896 = vsel %vm768, %v832, %v336
    %v897 = vsel %vm769, %v833, %v343
    %v898 = vsel %vm770, %v834, %v350
    %v899 = vsel %vm771, %v835, %v357
    %v900 = vsel %vm772, %v836, %v364
    %v901 = vsel %vm773, %v837, %v371
    %v902 = vsel %vm774, %v838, %v378
    %v903 = vsel %vm775, %v839, %v385
    %v904 = vsel %vm776, %v840, %v392
    %v905 = vsel %vm777, %v841, %v399
    %v906 = vsel %vm778, %v842, %v406
    %v907 = vsel %vm779, %v843, %v413
    %v908 = vsel %vm780, %v844, %v420
    %v909 = vsel %vm781, %v845, %v427
    %v910 = vsel %vm782, %v846, %v434
    %v911 = vsel %vm783, %v847, %v441
    %v912 = vsel %vm784, %v848, %v448
    %v913 = vsel %vm785, %v849, %v455
    %v914 = vsel %vm786, %v850, %v462
    %v915 = vsel %vm787, %v851, %v469
    %v916 = vsel %vm788, %v852, %v476
    %v917 = vsel %vm789, %v853, %v483
    %v918 = vsel %vm790, %v854, %v490
    %v919 = vsel %vm791, %v855, %v497
    %v920 = vsel %vm792, %v856, %v504
    %v921 = vsel %vm793, %v857, %v511
    %v922 = vsel %vm794, %v858, %v518
    %v923 = vsel %vm795, %v859, %v525
    %v924 = vsel %vm796, %v860, %v532
    %v925 = vsel %vm797, %v861, %v539
    %v926 = vsel %vm798, %v862, %v546
    %v927 = vsel %vm799, %v863, %v553
    %v928 = vsel %vm800, %v864, %v560
    %v929 = vsel %vm801, %v865, %v567
    %v930 = vsel %vm802, %v866, %v574
    %v931 = vsel %vm803, %v867, %v581
    %v932 = vsel %vm804, %v868, %v588
    %v933 = vsel %vm805, %v869, %v595
    %v934 = vsel %vm806, %v870, %v602
    %v935 = vsel %vm807, %v871, %v609
    %v936 = vsel %vm808, %v872, %v616
    %vm937 = vcmp.ge.s32.totalorder %v873, 2
    %vm938 = vcmp.ge.s32.totalorder %v874, 2
    %vm939 = vcmp.ge.s32.totalorder %v875, 2
    %vm940 = vcmp.ge.s32.totalorder %v876, 2
    %vm941 = vcmp.ge.s32.totalorder %v877, 2
    %vm942 = vcmp.ge.s32.totalorder %v878, 2
    %vm943 = vcmp.ge.s32.totalorder %v879, 2
    %vm944 = vcmp.ge.s32.totalorder %v880, 2
    %vm945 = vcmp.ge.s32.totalorder %v881, 2
    %vm946 = vcmp.ge.s32.totalorder %v882, 2
    %vm947 = vcmp.ge.s32.totalorder %v883, 2
    %vm948 = vcmp.ge.s32.totalorder %v884, 2
    %vm949 = vcmp.ge.s32.totalorder %v885, 2
    %vm950 = vcmp.ge.s32.totalorder %v886, 2
    %vm951 = vcmp.ge.s32.totalorder %v887, 2
    %vm952 = vcmp.ge.s32.totalorder %v888, 2
    %vm953 = vcmp.ge.s32.totalorder %v889, 2
    %vm954 = vcmp.ge.s32.totalorder %v890, 2
    %vm955 = vcmp.ge.s32.totalorder %v891, 2
    %vm956 = vcmp.ge.s32.totalorder %v892, 2
    %vm957 = vcmp.ge.s32.totalorder %v893, 2
    %vm958 = vcmp.ge.s32.totalorder %v894, 2
    %vm959 = vcmp.ge.s32.totalorder %v895, 2
    %vm960 = vcmp.ge.s32.totalorder %v896, 2
    %vm961 = vcmp.ge.s32.totalorder %v897, 2
    %vm962 = vcmp.ge.s32.totalorder %v898, 2
    %vm963 = vcmp.ge.s32.totalorder %v899, 2
    %vm964 = vcmp.ge.s32.totalorder %v900, 2
    %vm965 = vcmp.ge.s32.totalorder %v901, 2
    %vm966 = vcmp.ge.s32.totalorder %v902, 2
    %vm967 = vcmp.ge.s32.totalorder %v903, 2
    %vm968 = vcmp.ge.s32.totalorder %v904, 2
    %vm969 = vcmp.ge.s32.totalorder %v905, 2
    %vm970 = vcmp.ge.s32.totalorder %v906, 2
    %vm971 = vcmp.ge.s32.totalorder %v907, 2
    %vm972 = vcmp.ge.s32.totalorder %v908, 2
    %vm973 = vcmp.ge.s32.totalorder %v909, 2
    %vm974 = vcmp.ge.s32.totalorder %v910, 2
    %vm975 = vcmp.ge.s32.totalorder %v911, 2
    %vm976 = vcmp.ge.s32.totalorder %v912, 2
    %vm977 = vcmp.ge.s32.totalorder %v913, 2
    %vm978 = vcmp.ge.s32.totalorder %v914, 2
    %vm979 = vcmp.ge.s32.totalorder %v915, 2
    %vm980 = vcmp.ge.s32.totalorder %v916, 2
    %vm981 = vcmp.ge.s32.totalorder %v917, 2
    %vm982 = vcmp.ge.s32.totalorder %v918, 2
    %vm983 = vcmp.ge.s32.totalorder %v919, 2
    %vm984 = vcmp.ge.s32.totalorder %v920, 2
    %vm985 = vcmp.ge.s32.totalorder %v921, 2
    %vm986 = vcmp.ge.s32.totalorder %v922, 2
    %vm987 = vcmp.ge.s32.totalorder %v923, 2
    %vm988 = vcmp.ge.s32.totalorder %v924, 2
    %vm989 = vcmp.ge.s32.totalorder %v925, 2
    %vm990 = vcmp.ge.s32.totalorder %v926, 2
    %vm991 = vcmp.ge.s32.totalorder %v927, 2
    %vm992 = vcmp.ge.s32.totalorder %v928, 2
    %vm993 = vcmp.ge.s32.totalorder %v929, 2
    %vm994 = vcmp.ge.s32.totalorder %v930, 2
    %vm995 = vcmp.ge.s32.totalorder %v931, 2
    %vm996 = vcmp.ge.s32.totalorder %v932, 2
    %vm997 = vcmp.ge.s32.totalorder %v933, 2
    %vm998 = vcmp.ge.s32.totalorder %v934, 2
    %vm999 = vcmp.ge.s32.totalorder %v935, 2
    %vm1000 = vcmp.ge.s32.totalorder %v936, 2
    %v1001 = vrot.slane %v40, 6
    %v1002 = vrot.slane %v41, 6
    %v1003 = vrot.slane %v42, 6
    %v1004 = vrot.slane %v43, 6
    %v1005 = vrot.slane %v44, 6
    %v1006 = vrot.slane %v45, 6
    %v1007 = vrot.slane %v46, 6
    %v1008 = vrot.slane %v47, 6
    %v1009 = vrot.slane %v48, 6
    %v1010 = vrot.slane %v49, 6
    %v1011 = vrot.slane %v50, 6
    %v1012 = vrot.slane %v51, 6
    %v1013 = vrot.slane %v52, 6
    %v1014 = vrot.slane %v53, 6
    %v1015 = vrot.slane %v54, 6
    %v1016 = vrot.slane %v55, 6
    %v1017 = vrot.slane %v56, 6
    %v1018 = vrot.slane %v57, 6
    %v1019 = vrot.slane %v58, 6
    %v1020 = vrot.slane %v59, 6
    %v1021 = vrot.slane %v60, 6
    %v1022 = vrot.slane %v61, 6
    %v1023 = vrot.slane %v62, 6
    %v1024 = vrot.slane %v63, 6
    %v1025 = vrot.slane %v64, 6
    %v1026 = vrot.slane %v65, 6
    %v1027 = vrot.slane %v66, 6
    %v1028 = vrot.slane %v67, 6
    %v1029 = vrot.slane %v68, 6
    %v1030 = vrot.slane %v69, 6
    %v1031 = vrot.slane %v70, 6
    %v1032 = vrot.slane %v71, 6
    %v1033 = vrot.slane %v72, 6
    %v1034 = vrot.slane %v73, 6
    %v1035 = vrot.slane %v74, 6
    %v1036 = vrot.slane %v75, 6
    %v1037 = vrot.slane %v76, 6
    %v1038 = vrot.slane %v77, 6
    %v1039 = vrot.slane %v78, 6
    %v1040 = vrot.slane %v79, 6
    %v1041 = vrot.slane %v80, 6
    %v1042 = vrot.slane %v81, 6
    %v1043 = vrot.slane %v82, 6
    %v1044 = vrot.slane %v83, 6
    %v1045 = vrot.slane %v84, 6
    %v1046 = vrot.slane %v85, 6
    %v1047 = vrot.slane %v86, 6
    %v1048 = vrot.slane %v87, 6
    %v1049 = vrot.slane %v88, 6
    %v1050 = vrot.slane %v89, 6
    %v1051 = vrot.slane %v90, 6
    %v1052 = vrot.slane %v91, 6
    %v1053 = vrot.slane %v92, 6
    %v1054 = vrot.slane %v93, 6
    %v1055 = vrot.slane %v94, 6
    %v1056 = vrot.slane %v95, 6
    %v1057 = vrot.slane %v96, 6
    %v1058 = vrot.slane %v97, 6
    %v1059 = vrot.slane %v98, 6
    %v1060 = vrot.slane %v99, 6
    %v1061 = vrot.slane %v100, 6
    %v1062 = vrot.slane %v101, 6
    %v1063 = vrot.slane %v102, 6
    %v1064 = vrot.slane %v103, 6
    %vm1065 = vcmp.lt.s32.totalorder %v105, 2
    %v1066 = vsel %vm1065, %v1063, %v1064
    %v1067 = vsel %vm1065, %v1062, %v1063
    %v1068 = vsel %vm1065, %v1061, %v1062
    %v1069 = vsel %vm1065, %v1060, %v1061
    %v1070 = vsel %vm1065, %v1059, %v1060
    %v1071 = vsel %vm1065, %v1058, %v1059
    %v1072 = vsel %vm1065, %v1057, %v1058
    %v1073 = vsel %vm1065, %v1056, %v1057
    %v1074 = vsel %vm1065, %v1055, %v1056
    %v1075 = vsel %vm1065, %v1054, %v1055
    %v1076 = vsel %vm1065, %v1053, %v1054
    %v1077 = vsel %vm1065, %v1052, %v1053
    %v1078 = vsel %vm1065, %v1051, %v1052
    %v1079 = vsel %vm1065, %v1050, %v1051
    %v1080 = vsel %vm1065, %v1049, %v1050
    %v1081 = vsel %vm1065, %v1048, %v1049
    %v1082 = vsel %vm1065, %v1047, %v1048
    %v1083 = vsel %vm1065, %v1046, %v1047
    %v1084 = vsel %vm1065, %v1045, %v1046
    %v1085 = vsel %vm1065, %v1044, %v1045
    %v1086 = vsel %vm1065, %v1043, %v1044
    %v1087 = vsel %vm1065, %v1042, %v1043
    %v1088 = vsel %vm1065, %v1041, %v1042
    %v1089 = vsel %vm1065, %v1040, %v1041
    %v1090 = vsel %vm1065, %v1039, %v1040
    %v1091 = vsel %vm1065, %v1038, %v1039
    %v1092 = vsel %vm1065, %v1037, %v1038
    %v1093 = vsel %vm1065, %v1036, %v1037
    %v1094 = vsel %vm1065, %v1035, %v1036
    %v1095 = vsel %vm1065, %v1034, %v1035
    %v1096 = vsel %vm1065, %v1033, %v1034
    %v1097 = vsel %vm1065, %v1032, %v1033
    %v1098 = vsel %vm1065, %v1031, %v1032
    %v1099 = vsel %vm1065, %v1030, %v1031
    %v1100 = vsel %vm1065, %v1029, %v1030
    %v1101 = vsel %vm1065, %v1028, %v1029
    %v1102 = vsel %vm1065, %v1027, %v1028
    %v1103 = vsel %vm1065, %v1026, %v1027
    %v1104 = vsel %vm1065, %v1025, %v1026
    %v1105 = vsel %vm1065, %v1024, %v1025
    %v1106 = vsel %vm1065, %v1023, %v1024
    %v1107 = vsel %vm1065, %v1022, %v1023
    %v1108 = vsel %vm1065, %v1021, %v1022
    %v1109 = vsel %vm1065, %v1020, %v1021
    %v1110 = vsel %vm1065, %v1019, %v1020
    %v1111 = vsel %vm1065, %v1018, %v1019
    %v1112 = vsel %vm1065, %v1017, %v1018
    %v1113 = vsel %vm1065, %v1016, %v1017
    %v1114 = vsel %vm1065, %v1015, %v1016
    %v1115 = vsel %vm1065, %v1014, %v1015
    %v1116 = vsel %vm1065, %v1013, %v1014
    %v1117 = vsel %vm1065, %v1012, %v1013
    %v1118 = vsel %vm1065, %v1011, %v1012
    %v1119 = vsel %vm1065, %v1010, %v1011
    %v1120 = vsel %vm1065, %v1009, %v1010
    %v1121 = vsel %vm1065, %v1008, %v1009
    %v1122 = vsel %vm1065, %v1007, %v1008
    %v1123 = vsel %vm1065, %v1006, %v1007
    %v1124 = vsel %vm1065, %v1005, %v1006
    %v1125 = vsel %vm1065, %v1004, %v1005
    %v1126 = vsel %vm1065, %v1003, %v1004
    %v1127 = vsel %vm1065, %v1002, %v1003
    %v1128 = vsel %vm1065, %v1001, %v1002
    %v1129 = vsel %vm1065, %v1064, %v1001
    %v1130 = vsel %vm937, %v1129, 0.0
    %v1131 = vsel %vm938, %v1128, 0.0
    %v1132 = vsel %vm939, %v1127, 0.0
    %v1133 = vsel %vm940, %v1126, 0.0
    %v1134 = vsel %vm941, %v1125, 0.0
    %v1135 = vsel %vm942, %v1124, 0.0
    %v1136 = vsel %vm943, %v1123, 0.0
    %v1137 = vsel %vm944, %v1122, 0.0
    %v1138 = vsel %vm945, %v1121, 0.0
    %v1139 = vsel %vm946, %v1120, 0.0
    %v1140 = vsel %vm947, %v1119, 0.0
    %v1141 = vsel %vm948, %v1118, 0.0
    %v1142 = vsel %vm949, %v1117, 0.0
    %v1143 = vsel %vm950, %v1116, 0.0
    %v1144 = vsel %vm951, %v1115, 0.0
    %v1145 = vsel %vm952, %v1114, 0.0
    %v1146 = vsel %vm953, %v1113, 0.0
    %v1147 = vsel %vm954, %v1112, 0.0
    %v1148 = vsel %vm955, %v1111, 0.0
    %v1149 = vsel %vm956, %v1110, 0.0
    %v1150 = vsel %vm957, %v1109, 0.0
    %v1151 = vsel %vm958, %v1108, 0.0
    %v1152 = vsel %vm959, %v1107, 0.0
    %v1153 = vsel %vm960, %v1106, 0.0
    %v1154 = vsel %vm961, %v1105, 0.0
    %v1155 = vsel %vm962, %v1104, 0.0
    %v1156 = vsel %vm963, %v1103, 0.0
    %v1157 = vsel %vm964, %v1102, 0.0
    %v1158 = vsel %vm965, %v1101, 0.0
    %v1159 = vsel %vm966, %v1100, 0.0
    %v1160 = vsel %vm967, %v1099, 0.0
    %v1161 = vsel %vm968, %v1098, 0.0
    %v1162 = vsel %vm969, %v1097, 0.0
    %v1163 = vsel %vm970, %v1096, 0.0
    %v1164 = vsel %vm971, %v1095, 0.0
    %v1165 = vsel %vm972, %v1094, 0.0
    %v1166 = vsel %vm973, %v1093, 0.0
    %v1167 = vsel %vm974, %v1092, 0.0
    %v1168 = vsel %vm975, %v1091, 0.0
    %v1169 = vsel %vm976, %v1090, 0.0
    %v1170 = vsel %vm977, %v1089, 0.0
    %v1171 = vsel %vm978, %v1088, 0.0
    %v1172 = vsel %vm979, %v1087, 0.0
    %v1173 = vsel %vm980, %v1086, 0.0
    %v1174 = vsel %vm981, %v1085, 0.0
    %v1175 = vsel %vm982, %v1084, 0.0
    %v1176 = vsel %vm983, %v1083, 0.0
    %v1177 = vsel %vm984, %v1082, 0.0
    %v1178 = vsel %vm985, %v1081, 0.0
    %v1179 = vsel %vm986, %v1080, 0.0
    %v1180 = vsel %vm987, %v1079, 0.0
    %v1181 = vsel %vm988, %v1078, 0.0
    %v1182 = vsel %vm989, %v1077, 0.0
    %v1183 = vsel %vm990, %v1076, 0.0
    %v1184 = vsel %vm991, %v1075, 0.0
    %v1185 = vsel %vm992, %v1074, 0.0
    %v1186 = vsel %vm993, %v1073, 0.0
    %v1187 = vsel %vm994, %v1072, 0.0
    %v1188 = vsel %vm995, %v1071, 0.0
    %v1189 = vsel %vm996, %v1070, 0.0
    %v1190 = vsel %vm997, %v1069, 0.0
    %v1191 = vsel %vm998, %v1068, 0.0
    %v1192 = vsel %vm999, %v1067, 0.0
    %v1193 = vsel %vm1000, %v1066, 0.0
    %vm1194 = vcmp.ge.s32.totalorder %v873, 1
    %vm1195 = vcmp.ge.s32.totalorder %v874, 1
    %vm1196 = vcmp.ge.s32.totalorder %v875, 1
    %vm1197 = vcmp.ge.s32.totalorder %v876, 1
    %vm1198 = vcmp.ge.s32.totalorder %v877, 1
    %vm1199 = vcmp.ge.s32.totalorder %v878, 1
    %vm1200 = vcmp.ge.s32.totalorder %v879, 1
    %vm1201 = vcmp.ge.s32.totalorder %v880, 1
    %vm1202 = vcmp.ge.s32.totalorder %v881, 1
    %vm1203 = vcmp.ge.s32.totalorder %v882, 1
    %vm1204 = vcmp.ge.s32.totalorder %v883, 1
    %vm1205 = vcmp.ge.s32.totalorder %v884, 1
    %vm1206 = vcmp.ge.s32.totalorder %v885, 1
    %vm1207 = vcmp.ge.s32.totalorder %v886, 1
    %vm1208 = vcmp.ge.s32.totalorder %v887, 1
    %vm1209 = vcmp.ge.s32.totalorder %v888, 1
    %vm1210 = vcmp.ge.s32.totalorder %v889, 1
    %vm1211 = vcmp.ge.s32.totalorder %v890, 1
    %vm1212 = vcmp.ge.s32.totalorder %v891, 1
    %vm1213 = vcmp.ge.s32.totalorder %v892, 1
    %vm1214 = vcmp.ge.s32.totalorder %v893, 1
    %vm1215 = vcmp.ge.s32.totalorder %v894, 1
    %vm1216 = vcmp.ge.s32.totalorder %v895, 1
    %vm1217 = vcmp.ge.s32.totalorder %v896, 1
    %vm1218 = vcmp.ge.s32.totalorder %v897, 1
    %vm1219 = vcmp.ge.s32.totalorder %v898, 1
    %vm1220 = vcmp.ge.s32.totalorder %v899, 1
    %vm1221 = vcmp.ge.s32.totalorder %v900, 1
    %vm1222 = vcmp.ge.s32.totalorder %v901, 1
    %vm1223 = vcmp.ge.s32.totalorder %v902, 1
    %vm1224 = vcmp.ge.s32.totalorder %v903, 1
    %vm1225 = vcmp.ge.s32.totalorder %v904, 1
    %vm1226 = vcmp.ge.s32.totalorder %v905, 1
    %vm1227 = vcmp.ge.s32.totalorder %v906, 1
    %vm1228 = vcmp.ge.s32.totalorder %v907, 1
    %vm1229 = vcmp.ge.s32.totalorder %v908, 1
    %vm1230 = vcmp.ge.s32.totalorder %v909, 1
    %vm1231 = vcmp.ge.s32.totalorder %v910, 1
    %vm1232 = vcmp.ge.s32.totalorder %v911, 1
    %vm1233 = vcmp.ge.s32.totalorder %v912, 1
    %vm1234 = vcmp.ge.s32.totalorder %v913, 1
    %vm1235 = vcmp.ge.s32.totalorder %v914, 1
    %vm1236 = vcmp.ge.s32.totalorder %v915, 1
    %vm1237 = vcmp.ge.s32.totalorder %v916, 1
    %vm1238 = vcmp.ge.s32.totalorder %v917, 1
    %vm1239 = vcmp.ge.s32.totalorder %v918, 1
    %vm1240 = vcmp.ge.s32.totalorder %v919, 1
    %vm1241 = vcmp.ge.s32.totalorder %v920, 1
    %vm1242 = vcmp.ge.s32.totalorder %v921, 1
    %vm1243 = vcmp.ge.s32.totalorder %v922, 1
    %vm1244 = vcmp.ge.s32.totalorder %v923, 1
    %vm1245 = vcmp.ge.s32.totalorder %v924, 1
    %vm1246 = vcmp.ge.s32.totalorder %v925, 1
    %vm1247 = vcmp.ge.s32.totalorder %v926, 1
    %vm1248 = vcmp.ge.s32.totalorder %v927, 1
    %vm1249 = vcmp.ge.s32.totalorder %v928, 1
    %vm1250 = vcmp.ge.s32.totalorder %v929, 1
    %vm1251 = vcmp.ge.s32.totalorder %v930, 1
    %vm1252 = vcmp.ge.s32.totalorder %v931, 1
    %vm1253 = vcmp.ge.s32.totalorder %v932, 1
    %vm1254 = vcmp.ge.s32.totalorder %v933, 1
    %vm1255 = vcmp.ge.s32.totalorder %v934, 1
    %vm1256 = vcmp.ge.s32.totalorder %v935, 1
    %vm1257 = vcmp.ge.s32.totalorder %v936, 1
    %v1258 = vrot.slane %v40, 7
    %v1259 = vrot.slane %v41, 7
    %v1260 = vrot.slane %v42, 7
    %v1261 = vrot.slane %v43, 7
    %v1262 = vrot.slane %v44, 7
    %v1263 = vrot.slane %v45, 7
    %v1264 = vrot.slane %v46, 7
    %v1265 = vrot.slane %v47, 7
    %v1266 = vrot.slane %v48, 7
    %v1267 = vrot.slane %v49, 7
    %v1268 = vrot.slane %v50, 7
    %v1269 = vrot.slane %v51, 7
    %v1270 = vrot.slane %v52, 7
    %v1271 = vrot.slane %v53, 7
    %v1272 = vrot.slane %v54, 7
    %v1273 = vrot.slane %v55, 7
    %v1274 = vrot.slane %v56, 7
    %v1275 = vrot.slane %v57, 7
    %v1276 = vrot.slane %v58, 7
    %v1277 = vrot.slane %v59, 7
    %v1278 = vrot.slane %v60, 7
    %v1279 = vrot.slane %v61, 7
    %v1280 = vrot.slane %v62, 7
    %v1281 = vrot.slane %v63, 7
    %v1282 = vrot.slane %v64, 7
    %v1283 = vrot.slane %v65, 7
    %v1284 = vrot.slane %v66, 7
    %v1285 = vrot.slane %v67, 7
    %v1286 = vrot.slane %v68, 7
    %v1287 = vrot.slane %v69, 7
    %v1288 = vrot.slane %v70, 7
    %v1289 = vrot.slane %v71, 7
    %v1290 = vrot.slane %v72, 7
    %v1291 = vrot.slane %v73, 7
    %v1292 = vrot.slane %v74, 7
    %v1293 = vrot.slane %v75, 7
    %v1294 = vrot.slane %v76, 7
    %v1295 = vrot.slane %v77, 7
    %v1296 = vrot.slane %v78, 7
    %v1297 = vrot.slane %v79, 7
    %v1298 = vrot.slane %v80, 7
    %v1299 = vrot.slane %v81, 7
    %v1300 = vrot.slane %v82, 7
    %v1301 = vrot.slane %v83, 7
    %v1302 = vrot.slane %v84, 7
    %v1303 = vrot.slane %v85, 7
    %v1304 = vrot.slane %v86, 7
    %v1305 = vrot.slane %v87, 7
    %v1306 = vrot.slane %v88, 7
    %v1307 = vrot.slane %v89, 7
    %v1308 = vrot.slane %v90, 7
    %v1309 = vrot.slane %v91, 7
    %v1310 = vrot.slane %v92, 7
    %v1311 = vrot.slane %v93, 7
    %v1312 = vrot.slane %v94, 7
    %v1313 = vrot.slane %v95, 7
    %v1314 = vrot.slane %v96, 7
    %v1315 = vrot.slane %v97, 7
    %v1316 = vrot.slane %v98, 7
    %v1317 = vrot.slane %v99, 7
    %v1318 = vrot.slane %v100, 7
    %v1319 = vrot.slane %v101, 7
    %v1320 = vrot.slane %v102, 7
    %v1321 = vrot.slane %v103, 7
    %vm1322 = vcmp.lt.s32.totalorder %v105, 1
    %v1323 = vsel %vm1322, %v1320, %v1321
    %v1324 = vsel %vm1322, %v1319, %v1320
    %v1325 = vsel %vm1322, %v1318, %v1319
    %v1326 = vsel %vm1322, %v1317, %v1318
    %v1327 = vsel %vm1322, %v1316, %v1317
    %v1328 = vsel %vm1322, %v1315, %v1316
    %v1329 = vsel %vm1322, %v1314, %v1315
    %v1330 = vsel %vm1322, %v1313, %v1314
    %v1331 = vsel %vm1322, %v1312, %v1313
    %v1332 = vsel %vm1322, %v1311, %v1312
    %v1333 = vsel %vm1322, %v1310, %v1311
    %v1334 = vsel %vm1322, %v1309, %v1310
    %v1335 = vsel %vm1322, %v1308, %v1309
    %v1336 = vsel %vm1322, %v1307, %v1308
    %v1337 = vsel %vm1322, %v1306, %v1307
    %v1338 = vsel %vm1322, %v1305, %v1306
    %v1339 = vsel %vm1322, %v1304, %v1305
    %v1340 = vsel %vm1322, %v1303, %v1304
    %v1341 = vsel %vm1322, %v1302, %v1303
    %v1342 = vsel %vm1322, %v1301, %v1302
    %v1343 = vsel %vm1322, %v1300, %v1301
    %v1344 = vsel %vm1322, %v1299, %v1300
    %v1345 = vsel %vm1322, %v1298, %v1299
    %v1346 = vsel %vm1322, %v1297, %v1298
    %v1347 = vsel %vm1322, %v1296, %v1297
    %v1348 = vsel %vm1322, %v1295, %v1296
    %v1349 = vsel %vm1322, %v1294, %v1295
    %v1350 = vsel %vm1322, %v1293, %v1294
    %v1351 = vsel %vm1322, %v1292, %v1293
    %v1352 = vsel %vm1322, %v1291, %v1292
    %v1353 = vsel %vm1322, %v1290, %v1291
    %v1354 = vsel %vm1322, %v1289, %v1290
    %v1355 = vsel %vm1322, %v1288, %v1289
    %v1356 = vsel %vm1322, %v1287, %v1288
    %v1357 = vsel %vm1322, %v1286, %v1287
    %v1358 = vsel %vm1322, %v1285, %v1286
    %v1359 = vsel %vm1322, %v1284, %v1285
    %v1360 = vsel %vm1322, %v1283, %v1284
    %v1361 = vsel %vm1322, %v1282, %v1283
    %v1362 = vsel %vm1322, %v1281, %v1282
    %v1363 = vsel %vm1322, %v1280, %v1281
    %v1364 = vsel %vm1322, %v1279, %v1280
    %v1365 = vsel %vm1322, %v1278, %v1279
    %v1366 = vsel %vm1322, %v1277, %v1278
    %v1367 = vsel %vm1322, %v1276, %v1277
    %v1368 = vsel %vm1322, %v1275, %v1276
    %v1369 = vsel %vm1322, %v1274, %v1275
    %v1370 = vsel %vm1322, %v1273, %v1274
    %v1371 = vsel %vm1322, %v1272, %v1273
    %v1372 = vsel %vm1322, %v1271, %v1272
    %v1373 = vsel %vm1322, %v1270, %v1271
    %v1374 = vsel %vm1322, %v1269, %v1270
    %v1375 = vsel %vm1322, %v1268, %v1269
    %v1376 = vsel %vm1322, %v1267, %v1268
    %v1377 = vsel %vm1322, %v1266, %v1267
    %v1378 = vsel %vm1322, %v1265, %v1266
    %v1379 = vsel %vm1322, %v1264, %v1265
    %v1380 = vsel %vm1322, %v1263, %v1264
    %v1381 = vsel %vm1322, %v1262, %v1263
    %v1382 = vsel %vm1322, %v1261, %v1262
    %v1383 = vsel %vm1322, %v1260, %v1261
    %v1384 = vsel %vm1322, %v1259, %v1260
    %v1385 = vsel %vm1322, %v1258, %v1259
    %v1386 = vsel %vm1322, %v1321, %v1258
    %v1387 = vsel %vm1194, %v1386, 0.0
    %v1388 = vsel %vm1195, %v1385, 0.0
    %v1389 = vsel %vm1196, %v1384, 0.0
    %v1390 = vsel %vm1197, %v1383, 0.0
    %v1391 = vsel %vm1198, %v1382, 0.0
    %v1392 = vsel %vm1199, %v1381, 0.0
    %v1393 = vsel %vm1200, %v1380, 0.0
    %v1394 = vsel %vm1201, %v1379, 0.0
    %v1395 = vsel %vm1202, %v1378, 0.0
    %v1396 = vsel %vm1203, %v1377, 0.0
    %v1397 = vsel %vm1204, %v1376, 0.0
    %v1398 = vsel %vm1205, %v1375, 0.0
    %v1399 = vsel %vm1206, %v1374, 0.0
    %v1400 = vsel %vm1207, %v1373, 0.0
    %v1401 = vsel %vm1208, %v1372, 0.0
    %v1402 = vsel %vm1209, %v1371, 0.0
    %v1403 = vsel %vm1210, %v1370, 0.0
    %v1404 = vsel %vm1211, %v1369, 0.0
    %v1405 = vsel %vm1212, %v1368, 0.0
    %v1406 = vsel %vm1213, %v1367, 0.0
    %v1407 = vsel %vm1214, %v1366, 0.0
    %v1408 = vsel %vm1215, %v1365, 0.0
    %v1409 = vsel %vm1216, %v1364, 0.0
    %v1410 = vsel %vm1217, %v1363, 0.0
    %v1411 = vsel %vm1218, %v1362, 0.0
    %v1412 = vsel %vm1219, %v1361, 0.0
    %v1413 = vsel %vm1220, %v1360, 0.0
    %v1414 = vsel %vm1221, %v1359, 0.0
    %v1415 = vsel %vm1222, %v1358, 0.0
    %v1416 = vsel %vm1223, %v1357, 0.0
    %v1417 = vsel %vm1224, %v1356, 0.0
    %v1418 = vsel %vm1225, %v1355, 0.0
    %v1419 = vsel %vm1226, %v1354, 0.0
    %v1420 = vsel %vm1227, %v1353, 0.0
    %v1421 = vsel %vm1228, %v1352, 0.0
    %v1422 = vsel %vm1229, %v1351, 0.0
    %v1423 = vsel %vm1230, %v1350, 0.0
    %v1424 = vsel %vm1231, %v1349, 0.0
    %v1425 = vsel %vm1232, %v1348, 0.0
    %v1426 = vsel %vm1233, %v1347, 0.0
    %v1427 = vsel %vm1234, %v1346, 0.0
    %v1428 = vsel %vm1235, %v1345, 0.0
    %v1429 = vsel %vm1236, %v1344, 0.0
    %v1430 = vsel %vm1237, %v1343, 0.0
    %v1431 = vsel %vm1238, %v1342, 0.0
    %v1432 = vsel %vm1239, %v1341, 0.0
    %v1433 = vsel %vm1240, %v1340, 0.0
    %v1434 = vsel %vm1241, %v1339, 0.0
    %v1435 = vsel %vm1242, %v1338, 0.0
    %v1436 = vsel %vm1243, %v1337, 0.0
    %v1437 = vsel %vm1244, %v1336, 0.0
    %v1438 = vsel %vm1245, %v1335, 0.0
    %v1439 = vsel %vm1246, %v1334, 0.0
    %v1440 = vsel %vm1247, %v1333, 0.0
    %v1441 = vsel %vm1248, %v1332, 0.0
    %v1442 = vsel %vm1249, %v1331, 0.0
    %v1443 = vsel %vm1250, %v1330, 0.0
    %v1444 = vsel %vm1251, %v1329, 0.0
    %v1445 = vsel %vm1252, %v1328, 0.0
    %v1446 = vsel %vm1253, %v1327, 0.0
    %v1447 = vsel %vm1254, %v1326, 0.0
    %v1448 = vsel %vm1255, %v1325, 0.0
    %v1449 = vsel %vm1256, %v1324, 0.0
    %v1450 = vsel %vm1257, %v1323, 0.0
    %vm1451 = vcmp.le.s32.totalorder %v873, 30
    %vm1452 = vcmp.le.s32.totalorder %v874, 30
    %vm1453 = vcmp.le.s32.totalorder %v875, 30
    %vm1454 = vcmp.le.s32.totalorder %v876, 30
    %vm1455 = vcmp.le.s32.totalorder %v877, 30
    %vm1456 = vcmp.le.s32.totalorder %v878, 30
    %vm1457 = vcmp.le.s32.totalorder %v879, 30
    %vm1458 = vcmp.le.s32.totalorder %v880, 30
    %vm1459 = vcmp.le.s32.totalorder %v881, 30
    %vm1460 = vcmp.le.s32.totalorder %v882, 30
    %vm1461 = vcmp.le.s32.totalorder %v883, 30
    %vm1462 = vcmp.le.s32.totalorder %v884, 30
    %vm1463 = vcmp.le.s32.totalorder %v885, 30
    %vm1464 = vcmp.le.s32.totalorder %v886, 30
    %vm1465 = vcmp.le.s32.totalorder %v887, 30
    %vm1466 = vcmp.le.s32.totalorder %v888, 30
    %vm1467 = vcmp.le.s32.totalorder %v889, 30
    %vm1468 = vcmp.le.s32.totalorder %v890, 30
    %vm1469 = vcmp.le.s32.totalorder %v891, 30
    %vm1470 = vcmp.le.s32.totalorder %v892, 30
    %vm1471 = vcmp.le.s32.totalorder %v893, 30
    %vm1472 = vcmp.le.s32.totalorder %v894, 30
    %vm1473 = vcmp.le.s32.totalorder %v895, 30
    %vm1474 = vcmp.le.s32.totalorder %v896, 30
    %vm1475 = vcmp.le.s32.totalorder %v897, 30
    %vm1476 = vcmp.le.s32.totalorder %v898, 30
    %vm1477 = vcmp.le.s32.totalorder %v899, 30
    %vm1478 = vcmp.le.s32.totalorder %v900, 30
    %vm1479 = vcmp.le.s32.totalorder %v901, 30
    %vm1480 = vcmp.le.s32.totalorder %v902, 30
    %vm1481 = vcmp.le.s32.totalorder %v903, 30
    %vm1482 = vcmp.le.s32.totalorder %v904, 30
    %vm1483 = vcmp.le.s32.totalorder %v905, 30
    %vm1484 = vcmp.le.s32.totalorder %v906, 30
    %vm1485 = vcmp.le.s32.totalorder %v907, 30
    %vm1486 = vcmp.le.s32.totalorder %v908, 30
    %vm1487 = vcmp.le.s32.totalorder %v909, 30
    %vm1488 = vcmp.le.s32.totalorder %v910, 30
    %vm1489 = vcmp.le.s32.totalorder %v911, 30
    %vm1490 = vcmp.le.s32.totalorder %v912, 30
    %vm1491 = vcmp.le.s32.totalorder %v913, 30
    %vm1492 = vcmp.le.s32.totalorder %v914, 30
    %vm1493 = vcmp.le.s32.totalorder %v915, 30
    %vm1494 = vcmp.le.s32.totalorder %v916, 30
    %vm1495 = vcmp.le.s32.totalorder %v917, 30
    %vm1496 = vcmp.le.s32.totalorder %v918, 30
    %vm1497 = vcmp.le.s32.totalorder %v919, 30
    %vm1498 = vcmp.le.s32.totalorder %v920, 30
    %vm1499 = vcmp.le.s32.totalorder %v921, 30
    %vm1500 = vcmp.le.s32.totalorder %v922, 30
    %vm1501 = vcmp.le.s32.totalorder %v923, 30
    %vm1502 = vcmp.le.s32.totalorder %v924, 30
    %vm1503 = vcmp.le.s32.totalorder %v925, 30
    %vm1504 = vcmp.le.s32.totalorder %v926, 30
    %vm1505 = vcmp.le.s32.totalorder %v927, 30
    %vm1506 = vcmp.le.s32.totalorder %v928, 30
    %vm1507 = vcmp.le.s32.totalorder %v929, 30
    %vm1508 = vcmp.le.s32.totalorder %v930, 30
    %vm1509 = vcmp.le.s32.totalorder %v931, 30
    %vm1510 = vcmp.le.s32.totalorder %v932, 30
    %vm1511 = vcmp.le.s32.totalorder %v933, 30
    %vm1512 = vcmp.le.s32.totalorder %v934, 30
    %vm1513 = vcmp.le.s32.totalorder %v935, 30
    %vm1514 = vcmp.le.s32.totalorder %v936, 30
    %v1515 = vrot.slane %v40, 1
    %v1516 = vrot.slane %v41, 1
    %v1517 = vrot.slane %v42, 1
    %v1518 = vrot.slane %v43, 1
    %v1519 = vrot.slane %v44, 1
    %v1520 = vrot.slane %v45, 1
    %v1521 = vrot.slane %v46, 1
    %v1522 = vrot.slane %v47, 1
    %v1523 = vrot.slane %v48, 1
    %v1524 = vrot.slane %v49, 1
    %v1525 = vrot.slane %v50, 1
    %v1526 = vrot.slane %v51, 1
    %v1527 = vrot.slane %v52, 1
    %v1528 = vrot.slane %v53, 1
    %v1529 = vrot.slane %v54, 1
    %v1530 = vrot.slane %v55, 1
    %v1531 = vrot.slane %v56, 1
    %v1532 = vrot.slane %v57, 1
    %v1533 = vrot.slane %v58, 1
    %v1534 = vrot.slane %v59, 1
    %v1535 = vrot.slane %v60, 1
    %v1536 = vrot.slane %v61, 1
    %v1537 = vrot.slane %v62, 1
    %v1538 = vrot.slane %v63, 1
    %v1539 = vrot.slane %v64, 1
    %v1540 = vrot.slane %v65, 1
    %v1541 = vrot.slane %v66, 1
    %v1542 = vrot.slane %v67, 1
    %v1543 = vrot.slane %v68, 1
    %v1544 = vrot.slane %v69, 1
    %v1545 = vrot.slane %v70, 1
    %v1546 = vrot.slane %v71, 1
    %v1547 = vrot.slane %v72, 1
    %v1548 = vrot.slane %v73, 1
    %v1549 = vrot.slane %v74, 1
    %v1550 = vrot.slane %v75, 1
    %v1551 = vrot.slane %v76, 1
    %v1552 = vrot.slane %v77, 1
    %v1553 = vrot.slane %v78, 1
    %v1554 = vrot.slane %v79, 1
    %v1555 = vrot.slane %v80, 1
    %v1556 = vrot.slane %v81, 1
    %v1557 = vrot.slane %v82, 1
    %v1558 = vrot.slane %v83, 1
    %v1559 = vrot.slane %v84, 1
    %v1560 = vrot.slane %v85, 1
    %v1561 = vrot.slane %v86, 1
    %v1562 = vrot.slane %v87, 1
    %v1563 = vrot.slane %v88, 1
    %v1564 = vrot.slane %v89, 1
    %v1565 = vrot.slane %v90, 1
    %v1566 = vrot.slane %v91, 1
    %v1567 = vrot.slane %v92, 1
    %v1568 = vrot.slane %v93, 1
    %v1569 = vrot.slane %v94, 1
    %v1570 = vrot.slane %v95, 1
    %v1571 = vrot.slane %v96, 1
    %v1572 = vrot.slane %v97, 1
    %v1573 = vrot.slane %v98, 1
    %v1574 = vrot.slane %v99, 1
    %v1575 = vrot.slane %v100, 1
    %v1576 = vrot.slane %v101, 1
    %v1577 = vrot.slane %v102, 1
    %v1578 = vrot.slane %v103, 1
    %vm1579 = vcmp.lt.s32.totalorder %v105, 7
    %v1580 = vsel %vm1579, %v1577, %v1578
    %v1581 = vsel %vm1579, %v1576, %v1577
    %v1582 = vsel %vm1579, %v1575, %v1576
    %v1583 = vsel %vm1579, %v1574, %v1575
    %v1584 = vsel %vm1579, %v1573, %v1574
    %v1585 = vsel %vm1579, %v1572, %v1573
    %v1586 = vsel %vm1579, %v1571, %v1572
    %v1587 = vsel %vm1579, %v1570, %v1571
    %v1588 = vsel %vm1579, %v1569, %v1570
    %v1589 = vsel %vm1579, %v1568, %v1569
    %v1590 = vsel %vm1579, %v1567, %v1568
    %v1591 = vsel %vm1579, %v1566, %v1567
    %v1592 = vsel %vm1579, %v1565, %v1566
    %v1593 = vsel %vm1579, %v1564, %v1565
    %v1594 = vsel %vm1579, %v1563, %v1564
    %v1595 = vsel %vm1579, %v1562, %v1563
    %v1596 = vsel %vm1579, %v1561, %v1562
    %v1597 = vsel %vm1579, %v1560, %v1561
    %v1598 = vsel %vm1579, %v1559, %v1560
    %v1599 = vsel %vm1579, %v1558, %v1559
    %v1600 = vsel %vm1579, %v1557, %v1558
    %v1601 = vsel %vm1579, %v1556, %v1557
    %v1602 = vsel %vm1579, %v1555, %v1556
    %v1603 = vsel %vm1579, %v1554, %v1555
    %v1604 = vsel %vm1579, %v1553, %v1554
    %v1605 = vsel %vm1579, %v1552, %v1553
    %v1606 = vsel %vm1579, %v1551, %v1552
    %v1607 = vsel %vm1579, %v1550, %v1551
    %v1608 = vsel %vm1579, %v1549, %v1550
    %v1609 = vsel %vm1579, %v1548, %v1549
    %v1610 = vsel %vm1579, %v1547, %v1548
    %v1611 = vsel %vm1579, %v1546, %v1547
    %v1612 = vsel %vm1579, %v1545, %v1546
    %v1613 = vsel %vm1579, %v1544, %v1545
    %v1614 = vsel %vm1579, %v1543, %v1544
    %v1615 = vsel %vm1579, %v1542, %v1543
    %v1616 = vsel %vm1579, %v1541, %v1542
    %v1617 = vsel %vm1579, %v1540, %v1541
    %v1618 = vsel %vm1579, %v1539, %v1540
    %v1619 = vsel %vm1579, %v1538, %v1539
    %v1620 = vsel %vm1579, %v1537, %v1538
    %v1621 = vsel %vm1579, %v1536, %v1537
    %v1622 = vsel %vm1579, %v1535, %v1536
    %v1623 = vsel %vm1579, %v1534, %v1535
    %v1624 = vsel %vm1579, %v1533, %v1534
    %v1625 = vsel %vm1579, %v1532, %v1533
    %v1626 = vsel %vm1579, %v1531, %v1532
    %v1627 = vsel %vm1579, %v1530, %v1531
    %v1628 = vsel %vm1579, %v1529, %v1530
    %v1629 = vsel %vm1579, %v1528, %v1529
    %v1630 = vsel %vm1579, %v1527, %v1528
    %v1631 = vsel %vm1579, %v1526, %v1527
    %v1632 = vsel %vm1579, %v1525, %v1526
    %v1633 = vsel %vm1579, %v1524, %v1525
    %v1634 = vsel %vm1579, %v1523, %v1524
    %v1635 = vsel %vm1579, %v1522, %v1523
    %v1636 = vsel %vm1579, %v1521, %v1522
    %v1637 = vsel %vm1579, %v1520, %v1521
    %v1638 = vsel %vm1579, %v1519, %v1520
    %v1639 = vsel %vm1579, %v1518, %v1519
    %v1640 = vsel %vm1579, %v1517, %v1518
    %v1641 = vsel %vm1579, %v1516, %v1517
    %v1642 = vsel %vm1579, %v1515, %v1516
    %v1643 = vsel %vm1579, %v1578, %v1515
    %v1644 = vsel %vm1451, %v1642, 0.0
    %v1645 = vsel %vm1452, %v1641, 0.0
    %v1646 = vsel %vm1453, %v1640, 0.0
    %v1647 = vsel %vm1454, %v1639, 0.0
    %v1648 = vsel %vm1455, %v1638, 0.0
    %v1649 = vsel %vm1456, %v1637, 0.0
    %v1650 = vsel %vm1457, %v1636, 0.0
    %v1651 = vsel %vm1458, %v1635, 0.0
    %v1652 = vsel %vm1459, %v1634, 0.0
    %v1653 = vsel %vm1460, %v1633, 0.0
    %v1654 = vsel %vm1461, %v1632, 0.0
    %v1655 = vsel %vm1462, %v1631, 0.0
    %v1656 = vsel %vm1463, %v1630, 0.0
    %v1657 = vsel %vm1464, %v1629, 0.0
    %v1658 = vsel %vm1465, %v1628, 0.0
    %v1659 = vsel %vm1466, %v1627, 0.0
    %v1660 = vsel %vm1467, %v1626, 0.0
    %v1661 = vsel %vm1468, %v1625, 0.0
    %v1662 = vsel %vm1469, %v1624, 0.0
    %v1663 = vsel %vm1470, %v1623, 0.0
    %v1664 = vsel %vm1471, %v1622, 0.0
    %v1665 = vsel %vm1472, %v1621, 0.0
    %v1666 = vsel %vm1473, %v1620, 0.0
    %v1667 = vsel %vm1474, %v1619, 0.0
    %v1668 = vsel %vm1475, %v1618, 0.0
    %v1669 = vsel %vm1476, %v1617, 0.0
    %v1670 = vsel %vm1477, %v1616, 0.0
    %v1671 = vsel %vm1478, %v1615, 0.0
    %v1672 = vsel %vm1479, %v1614, 0.0
    %v1673 = vsel %vm1480, %v1613, 0.0
    %v1674 = vsel %vm1481, %v1612, 0.0
    %v1675 = vsel %vm1482, %v1611, 0.0
    %v1676 = vsel %vm1483, %v1610, 0.0
    %v1677 = vsel %vm1484, %v1609, 0.0
    %v1678 = vsel %vm1485, %v1608, 0.0
    %v1679 = vsel %vm1486, %v1607, 0.0
    %v1680 = vsel %vm1487, %v1606, 0.0
    %v1681 = vsel %vm1488, %v1605, 0.0
    %v1682 = vsel %vm1489, %v1604, 0.0
    %v1683 = vsel %vm1490, %v1603, 0.0
    %v1684 = vsel %vm1491, %v1602, 0.0
    %v1685 = vsel %vm1492, %v1601, 0.0
    %v1686 = vsel %vm1493, %v1600, 0.0
    %v1687 = vsel %vm1494, %v1599, 0.0
    %v1688 = vsel %vm1495, %v1598, 0.0
    %v1689 = vsel %vm1496, %v1597, 0.0
    %v1690 = vsel %vm1497, %v1596, 0.0
    %v1691 = vsel %vm1498, %v1595, 0.0
    %v1692 = vsel %vm1499, %v1594, 0.0
    %v1693 = vsel %vm1500, %v1593, 0.0
    %v1694 = vsel %vm1501, %v1592, 0.0
    %v1695 = vsel %vm1502, %v1591, 0.0
    %v1696 = vsel %vm1503, %v1590, 0.0
    %v1697 = vsel %vm1504, %v1589, 0.0
    %v1698 = vsel %vm1505, %v1588, 0.0
    %v1699 = vsel %vm1506, %v1587, 0.0
    %v1700 = vsel %vm1507, %v1586, 0.0
    %v1701 = vsel %vm1508, %v1585, 0.0
    %v1702 = vsel %vm1509, %v1584, 0.0
    %v1703 = vsel %vm1510, %v1583, 0.0
    %v1704 = vsel %vm1511, %v1582, 0.0
    %v1705 = vsel %vm1512, %v1581, 0.0
    %v1706 = vsel %vm1513, %v1580, 0.0
    %v1707 = vsel %vm1514, %v1643, 0.0
    %vm1708 = vcmp.le.s32.totalorder %v873, 29
    %vm1709 = vcmp.le.s32.totalorder %v874, 29
    %vm1710 = vcmp.le.s32.totalorder %v875, 29
    %vm1711 = vcmp.le.s32.totalorder %v876, 29
    %vm1712 = vcmp.le.s32.totalorder %v877, 29
    %vm1713 = vcmp.le.s32.totalorder %v878, 29
    %vm1714 = vcmp.le.s32.totalorder %v879, 29
    %vm1715 = vcmp.le.s32.totalorder %v880, 29
    %vm1716 = vcmp.le.s32.totalorder %v881, 29
    %vm1717 = vcmp.le.s32.totalorder %v882, 29
    %vm1718 = vcmp.le.s32.totalorder %v883, 29
    %vm1719 = vcmp.le.s32.totalorder %v884, 29
    %vm1720 = vcmp.le.s32.totalorder %v885, 29
    %vm1721 = vcmp.le.s32.totalorder %v886, 29
    %vm1722 = vcmp.le.s32.totalorder %v887, 29
    %vm1723 = vcmp.le.s32.totalorder %v888, 29
    %vm1724 = vcmp.le.s32.totalorder %v889, 29
    %vm1725 = vcmp.le.s32.totalorder %v890, 29
    %vm1726 = vcmp.le.s32.totalorder %v891, 29
    %vm1727 = vcmp.le.s32.totalorder %v892, 29
    %vm1728 = vcmp.le.s32.totalorder %v893, 29
    %vm1729 = vcmp.le.s32.totalorder %v894, 29
    %vm1730 = vcmp.le.s32.totalorder %v895, 29
    %vm1731 = vcmp.le.s32.totalorder %v896, 29
    %vm1732 = vcmp.le.s32.totalorder %v897, 29
    %vm1733 = vcmp.le.s32.totalorder %v898, 29
    %vm1734 = vcmp.le.s32.totalorder %v899, 29
    %vm1735 = vcmp.le.s32.totalorder %v900, 29
    %vm1736 = vcmp.le.s32.totalorder %v901, 29
    %vm1737 = vcmp.le.s32.totalorder %v902, 29
    %vm1738 = vcmp.le.s32.totalorder %v903, 29
    %vm1739 = vcmp.le.s32.totalorder %v904, 29
    %vm1740 = vcmp.le.s32.totalorder %v905, 29
    %vm1741 = vcmp.le.s32.totalorder %v906, 29
    %vm1742 = vcmp.le.s32.totalorder %v907, 29
    %vm1743 = vcmp.le.s32.totalorder %v908, 29
    %vm1744 = vcmp.le.s32.totalorder %v909, 29
    %vm1745 = vcmp.le.s32.totalorder %v910, 29
    %vm1746 = vcmp.le.s32.totalorder %v911, 29
    %vm1747 = vcmp.le.s32.totalorder %v912, 29
    %vm1748 = vcmp.le.s32.totalorder %v913, 29
    %vm1749 = vcmp.le.s32.totalorder %v914, 29
    %vm1750 = vcmp.le.s32.totalorder %v915, 29
    %vm1751 = vcmp.le.s32.totalorder %v916, 29
    %vm1752 = vcmp.le.s32.totalorder %v917, 29
    %vm1753 = vcmp.le.s32.totalorder %v918, 29
    %vm1754 = vcmp.le.s32.totalorder %v919, 29
    %vm1755 = vcmp.le.s32.totalorder %v920, 29
    %vm1756 = vcmp.le.s32.totalorder %v921, 29
    %vm1757 = vcmp.le.s32.totalorder %v922, 29
    %vm1758 = vcmp.le.s32.totalorder %v923, 29
    %vm1759 = vcmp.le.s32.totalorder %v924, 29
    %vm1760 = vcmp.le.s32.totalorder %v925, 29
    %vm1761 = vcmp.le.s32.totalorder %v926, 29
    %vm1762 = vcmp.le.s32.totalorder %v927, 29
    %vm1763 = vcmp.le.s32.totalorder %v928, 29
    %vm1764 = vcmp.le.s32.totalorder %v929, 29
    %vm1765 = vcmp.le.s32.totalorder %v930, 29
    %vm1766 = vcmp.le.s32.totalorder %v931, 29
    %vm1767 = vcmp.le.s32.totalorder %v932, 29
    %vm1768 = vcmp.le.s32.totalorder %v933, 29
    %vm1769 = vcmp.le.s32.totalorder %v934, 29
    %vm1770 = vcmp.le.s32.totalorder %v935, 29
    %vm1771 = vcmp.le.s32.totalorder %v936, 29
    %v1772 = vrot.slane %v40, 2
    %v1773 = vrot.slane %v41, 2
    %v1774 = vrot.slane %v42, 2
    %v1775 = vrot.slane %v43, 2
    %v1776 = vrot.slane %v44, 2
    %v1777 = vrot.slane %v45, 2
    %v1778 = vrot.slane %v46, 2
    %v1779 = vrot.slane %v47, 2
    %v1780 = vrot.slane %v48, 2
    %v1781 = vrot.slane %v49, 2
    %v1782 = vrot.slane %v50, 2
    %v1783 = vrot.slane %v51, 2
    %v1784 = vrot.slane %v52, 2
    %v1785 = vrot.slane %v53, 2
    %v1786 = vrot.slane %v54, 2
    %v1787 = vrot.slane %v55, 2
    %v1788 = vrot.slane %v56, 2
    %v1789 = vrot.slane %v57, 2
    %v1790 = vrot.slane %v58, 2
    %v1791 = vrot.slane %v59, 2
    %v1792 = vrot.slane %v60, 2
    %v1793 = vrot.slane %v61, 2
    %v1794 = vrot.slane %v62, 2
    %v1795 = vrot.slane %v63, 2
    %v1796 = vrot.slane %v64, 2
    %v1797 = vrot.slane %v65, 2
    %v1798 = vrot.slane %v66, 2
    %v1799 = vrot.slane %v67, 2
    %v1800 = vrot.slane %v68, 2
    %v1801 = vrot.slane %v69, 2
    %v1802 = vrot.slane %v70, 2
    %v1803 = vrot.slane %v71, 2
    %v1804 = vrot.slane %v72, 2
    %v1805 = vrot.slane %v73, 2
    %v1806 = vrot.slane %v74, 2
    %v1807 = vrot.slane %v75, 2
    %v1808 = vrot.slane %v76, 2
    %v1809 = vrot.slane %v77, 2
    %v1810 = vrot.slane %v78, 2
    %v1811 = vrot.slane %v79, 2
    %v1812 = vrot.slane %v80, 2
    %v1813 = vrot.slane %v81, 2
    %v1814 = vrot.slane %v82, 2
    %v1815 = vrot.slane %v83, 2
    %v1816 = vrot.slane %v84, 2
    %v1817 = vrot.slane %v85, 2
    %v1818 = vrot.slane %v86, 2
    %v1819 = vrot.slane %v87, 2
    %v1820 = vrot.slane %v88, 2
    %v1821 = vrot.slane %v89, 2
    %v1822 = vrot.slane %v90, 2
    %v1823 = vrot.slane %v91, 2
    %v1824 = vrot.slane %v92, 2
    %v1825 = vrot.slane %v93, 2
    %v1826 = vrot.slane %v94, 2
    %v1827 = vrot.slane %v95, 2
    %v1828 = vrot.slane %v96, 2
    %v1829 = vrot.slane %v97, 2
    %v1830 = vrot.slane %v98, 2
    %v1831 = vrot.slane %v99, 2
    %v1832 = vrot.slane %v100, 2
    %v1833 = vrot.slane %v101, 2
    %v1834 = vrot.slane %v102, 2
    %v1835 = vrot.slane %v103, 2
    %vm1836 = vcmp.lt.s32.totalorder %v105, 6
    %v1837 = vsel %vm1836, %v1834, %v1835
    %v1838 = vsel %vm1836, %v1833, %v1834
    %v1839 = vsel %vm1836, %v1832, %v1833
    %v1840 = vsel %vm1836, %v1831, %v1832
    %v1841 = vsel %vm1836, %v1830, %v1831
    %v1842 = vsel %vm1836, %v1829, %v1830
    %v1843 = vsel %vm1836, %v1828, %v1829
    %v1844 = vsel %vm1836, %v1827, %v1828
    %v1845 = vsel %vm1836, %v1826, %v1827
    %v1846 = vsel %vm1836, %v1825, %v1826
    %v1847 = vsel %vm1836, %v1824, %v1825
    %v1848 = vsel %vm1836, %v1823, %v1824
    %v1849 = vsel %vm1836, %v1822, %v1823
    %v1850 = vsel %vm1836, %v1821, %v1822
    %v1851 = vsel %vm1836, %v1820, %v1821
    %v1852 = vsel %vm1836, %v1819, %v1820
    %v1853 = vsel %vm1836, %v1818, %v1819
    %v1854 = vsel %vm1836, %v1817, %v1818
    %v1855 = vsel %vm1836, %v1816, %v1817
    %v1856 = vsel %vm1836, %v1815, %v1816
    %v1857 = vsel %vm1836, %v1814, %v1815
    %v1858 = vsel %vm1836, %v1813, %v1814
    %v1859 = vsel %vm1836, %v1812, %v1813
    %v1860 = vsel %vm1836, %v1811, %v1812
    %v1861 = vsel %vm1836, %v1810, %v1811
    %v1862 = vsel %vm1836, %v1809, %v1810
    %v1863 = vsel %vm1836, %v1808, %v1809
    %v1864 = vsel %vm1836, %v1807, %v1808
    %v1865 = vsel %vm1836, %v1806, %v1807
    %v1866 = vsel %vm1836, %v1805, %v1806
    %v1867 = vsel %vm1836, %v1804, %v1805
    %v1868 = vsel %vm1836, %v1803, %v1804
    %v1869 = vsel %vm1836, %v1802, %v1803
    %v1870 = vsel %vm1836, %v1801, %v1802
    %v1871 = vsel %vm1836, %v1800, %v1801
    %v1872 = vsel %vm1836, %v1799, %v1800
    %v1873 = vsel %vm1836, %v1798, %v1799
    %v1874 = vsel %vm1836, %v1797, %v1798
    %v1875 = vsel %vm1836, %v1796, %v1797
    %v1876 = vsel %vm1836, %v1795, %v1796
    %v1877 = vsel %vm1836, %v1794, %v1795
    %v1878 = vsel %vm1836, %v1793, %v1794
    %v1879 = vsel %vm1836, %v1792, %v1793
    %v1880 = vsel %vm1836, %v1791, %v1792
    %v1881 = vsel %vm1836, %v1790, %v1791
    %v1882 = vsel %vm1836, %v1789, %v1790
    %v1883 = vsel %vm1836, %v1788, %v1789
    %v1884 = vsel %vm1836, %v1787, %v1788
    %v1885 = vsel %vm1836, %v1786, %v1787
    %v1886 = vsel %vm1836, %v1785, %v1786
    %v1887 = vsel %vm1836, %v1784, %v1785
    %v1888 = vsel %vm1836, %v1783, %v1784
    %v1889 = vsel %vm1836, %v1782, %v1783
    %v1890 = vsel %vm1836, %v1781, %v1782
    %v1891 = vsel %vm1836, %v1780, %v1781
    %v1892 = vsel %vm1836, %v1779, %v1780
    %v1893 = vsel %vm1836, %v1778, %v1779
    %v1894 = vsel %vm1836, %v1777, %v1778
    %v1895 = vsel %vm1836, %v1776, %v1777
    %v1896 = vsel %vm1836, %v1775, %v1776
    %v1897 = vsel %vm1836, %v1774, %v1775
    %v1898 = vsel %vm1836, %v1773, %v1774
    %v1899 = vsel %vm1836, %v1772, %v1773
    %v1900 = vsel %vm1836, %v1835, %v1772
    %v1901 = vsel %vm1708, %v1899, 0.0
    %v1902 = vsel %vm1709, %v1898, 0.0
    %v1903 = vsel %vm1710, %v1897, 0.0
    %v1904 = vsel %vm1711, %v1896, 0.0
    %v1905 = vsel %vm1712, %v1895, 0.0
    %v1906 = vsel %vm1713, %v1894, 0.0
    %v1907 = vsel %vm1714, %v1893, 0.0
    %v1908 = vsel %vm1715, %v1892, 0.0
    %v1909 = vsel %vm1716, %v1891, 0.0
    %v1910 = vsel %vm1717, %v1890, 0.0
    %v1911 = vsel %vm1718, %v1889, 0.0
    %v1912 = vsel %vm1719, %v1888, 0.0
    %v1913 = vsel %vm1720, %v1887, 0.0
    %v1914 = vsel %vm1721, %v1886, 0.0
    %v1915 = vsel %vm1722, %v1885, 0.0
    %v1916 = vsel %vm1723, %v1884, 0.0
    %v1917 = vsel %vm1724, %v1883, 0.0
    %v1918 = vsel %vm1725, %v1882, 0.0
    %v1919 = vsel %vm1726, %v1881, 0.0
    %v1920 = vsel %vm1727, %v1880, 0.0
    %v1921 = vsel %vm1728, %v1879, 0.0
    %v1922 = vsel %vm1729, %v1878, 0.0
    %v1923 = vsel %vm1730, %v1877, 0.0
    %v1924 = vsel %vm1731, %v1876, 0.0
    %v1925 = vsel %vm1732, %v1875, 0.0
    %v1926 = vsel %vm1733, %v1874, 0.0
    %v1927 = vsel %vm1734, %v1873, 0.0
    %v1928 = vsel %vm1735, %v1872, 0.0
    %v1929 = vsel %vm1736, %v1871, 0.0
    %v1930 = vsel %vm1737, %v1870, 0.0
    %v1931 = vsel %vm1738, %v1869, 0.0
    %v1932 = vsel %vm1739, %v1868, 0.0
    %v1933 = vsel %vm1740, %v1867, 0.0
    %v1934 = vsel %vm1741, %v1866, 0.0
    %v1935 = vsel %vm1742, %v1865, 0.0
    %v1936 = vsel %vm1743, %v1864, 0.0
    %v1937 = vsel %vm1744, %v1863, 0.0
    %v1938 = vsel %vm1745, %v1862, 0.0
    %v1939 = vsel %vm1746, %v1861, 0.0
    %v1940 = vsel %vm1747, %v1860, 0.0
    %v1941 = vsel %vm1748, %v1859, 0.0
    %v1942 = vsel %vm1749, %v1858, 0.0
    %v1943 = vsel %vm1750, %v1857, 0.0
    %v1944 = vsel %vm1751, %v1856, 0.0
    %v1945 = vsel %vm1752, %v1855, 0.0
    %v1946 = vsel %vm1753, %v1854, 0.0
    %v1947 = vsel %vm1754, %v1853, 0.0
    %v1948 = vsel %vm1755, %v1852, 0.0
    %v1949 = vsel %vm1756, %v1851, 0.0
    %v1950 = vsel %vm1757, %v1850, 0.0
    %v1951 = vsel %vm1758, %v1849, 0.0
    %v1952 = vsel %vm1759, %v1848, 0.0
    %v1953 = vsel %vm1760, %v1847, 0.0
    %v1954 = vsel %vm1761, %v1846, 0.0
    %v1955 = vsel %vm1762, %v1845, 0.0
    %v1956 = vsel %vm1763, %v1844, 0.0
    %v1957 = vsel %vm1764, %v1843, 0.0
    %v1958 = vsel %vm1765, %v1842, 0.0
    %v1959 = vsel %vm1766, %v1841, 0.0
    %v1960 = vsel %vm1767, %v1840, 0.0
    %v1961 = vsel %vm1768, %v1839, 0.0
    %v1962 = vsel %vm1769, %v1838, 0.0
    %v1963 = vsel %vm1770, %v1837, 0.0
    %v1964 = vsel %vm1771, %v1900, 0.0
    %v1965 = vld [vmem:[%s1] sm:$0x1f]
    %1967 = vset.pattern.permute.xlu0 0
    %1968 = vperm.xlu0 %1967, %v40
    %v1969 = vpop.permute.xlu0 %1968
    %1972 = vset.pattern.permute.xlu0 0
    %1973 = vperm.xlu0 %1972, %v41
    %v1974 = vpop.permute.xlu0 %1973
    %1977 = vset.pattern.permute.xlu0 0
    %1978 = vperm.xlu0 %1977, %v42
    %v1979 = vpop.permute.xlu0 %1978
    %1982 = vset.pattern.permute.xlu0 0
    %1983 = vperm.xlu0 %1982, %v43
    %v1984 = vpop.permute.xlu0 %1983
    %1987 = vset.pattern.permute.xlu0 0
    %1988 = vperm.xlu0 %1987, %v44
    %v1989 = vpop.permute.xlu0 %1988
    %1992 = vset.pattern.permute.xlu0 0
    %1993 = vperm.xlu0 %1992, %v45
    %v1994 = vpop.permute.xlu0 %1993
    %1997 = vset.pattern.permute.xlu0 0
    %1998 = vperm.xlu0 %1997, %v46
    %v1999 = vpop.permute.xlu0 %1998
    %2002 = vset.pattern.permute.xlu0 0
    %2003 = vperm.xlu0 %2002, %v47
    %v2004 = vpop.permute.xlu0 %2003
    %2007 = vset.pattern.permute.xlu0 0
    %2008 = vperm.xlu0 %2007, %v48
    %v2009 = vpop.permute.xlu0 %2008
    %2012 = vset.pattern.permute.xlu0 0
    %2013 = vperm.xlu0 %2012, %v49
    %v2014 = vpop.permute.xlu0 %2013
    %2017 = vset.pattern.permute.xlu0 0
    %2018 = vperm.xlu0 %2017, %v50
    %v2019 = vpop.permute.xlu0 %2018
    %2022 = vset.pattern.permute.xlu0 0
    %2023 = vperm.xlu0 %2022, %v51
    %v2024 = vpop.permute.xlu0 %2023
    %2027 = vset.pattern.permute.xlu0 0
    %2028 = vperm.xlu0 %2027, %v52
    %v2029 = vpop.permute.xlu0 %2028
    %2032 = vset.pattern.permute.xlu0 0
    %2033 = vperm.xlu0 %2032, %v53
    %v2034 = vpop.permute.xlu0 %2033
    %2037 = vset.pattern.permute.xlu0 0
    %2038 = vperm.xlu0 %2037, %v54
    %v2039 = vpop.permute.xlu0 %2038
    %2042 = vset.pattern.permute.xlu0 0
    %2043 = vperm.xlu0 %2042, %v55
    %v2044 = vpop.permute.xlu0 %2043
    %2047 = vset.pattern.permute.xlu0 0
    %2048 = vperm.xlu0 %2047, %v56
    %v2049 = vpop.permute.xlu0 %2048
    %2052 = vset.pattern.permute.xlu0 0
    %2053 = vperm.xlu0 %2052, %v57
    %v2054 = vpop.permute.xlu0 %2053
    %2057 = vset.pattern.permute.xlu0 0
    %2058 = vperm.xlu0 %2057, %v58
    %v2059 = vpop.permute.xlu0 %2058
    %2062 = vset.pattern.permute.xlu0 0
    %2063 = vperm.xlu0 %2062, %v59
    %v2064 = vpop.permute.xlu0 %2063
    %2067 = vset.pattern.permute.xlu0 0
    %2068 = vperm.xlu0 %2067, %v60
    %v2069 = vpop.permute.xlu0 %2068
    %2072 = vset.pattern.permute.xlu0 0
    %2073 = vperm.xlu0 %2072, %v61
    %v2074 = vpop.permute.xlu0 %2073
    %2077 = vset.pattern.permute.xlu0 0
    %2078 = vperm.xlu0 %2077, %v62
    %v2079 = vpop.permute.xlu0 %2078
    %2082 = vset.pattern.permute.xlu0 0
    %2083 = vperm.xlu0 %2082, %v63
    %v2084 = vpop.permute.xlu0 %2083
    %2087 = vset.pattern.permute.xlu0 0
    %2088 = vperm.xlu0 %2087, %v64
    %v2089 = vpop.permute.xlu0 %2088
    %2092 = vset.pattern.permute.xlu0 0
    %2093 = vperm.xlu0 %2092, %v65
    %v2094 = vpop.permute.xlu0 %2093
    %2097 = vset.pattern.permute.xlu0 0
    %2098 = vperm.xlu0 %2097, %v66
    %v2099 = vpop.permute.xlu0 %2098
    %2102 = vset.pattern.permute.xlu0 0
    %2103 = vperm.xlu0 %2102, %v67
    %v2104 = vpop.permute.xlu0 %2103
    %2107 = vset.pattern.permute.xlu0 0
    %2108 = vperm.xlu0 %2107, %v68
    %v2109 = vpop.permute.xlu0 %2108
    %2112 = vset.pattern.permute.xlu0 0
    %2113 = vperm.xlu0 %2112, %v69
    %v2114 = vpop.permute.xlu0 %2113
    %2117 = vset.pattern.permute.xlu0 0
    %2118 = vperm.xlu0 %2117, %v70
    %v2119 = vpop.permute.xlu0 %2118
    %2122 = vset.pattern.permute.xlu0 0
    %2123 = vperm.xlu0 %2122, %v71
    %v2124 = vpop.permute.xlu0 %2123
    %2127 = vset.pattern.permute.xlu0 0
    %2128 = vperm.xlu0 %2127, %v72
    %v2129 = vpop.permute.xlu0 %2128
    %2132 = vset.pattern.permute.xlu0 0
    %2133 = vperm.xlu0 %2132, %v73
    %v2134 = vpop.permute.xlu0 %2133
    %2137 = vset.pattern.permute.xlu0 0
    %2138 = vperm.xlu0 %2137, %v74
    %v2139 = vpop.permute.xlu0 %2138
    %2142 = vset.pattern.permute.xlu0 0
    %2143 = vperm.xlu0 %2142, %v75
    %v2144 = vpop.permute.xlu0 %2143
    %2147 = vset.pattern.permute.xlu0 0
    %2148 = vperm.xlu0 %2147, %v76
    %v2149 = vpop.permute.xlu0 %2148
    %2152 = vset.pattern.permute.xlu0 0
    %2153 = vperm.xlu0 %2152, %v77
    %v2154 = vpop.permute.xlu0 %2153
    %2157 = vset.pattern.permute.xlu0 0
    %2158 = vperm.xlu0 %2157, %v78
    %v2159 = vpop.permute.xlu0 %2158
    %2162 = vset.pattern.permute.xlu0 0
    %2163 = vperm.xlu0 %2162, %v79
    %v2164 = vpop.permute.xlu0 %2163
    %2167 = vset.pattern.permute.xlu0 0
    %2168 = vperm.xlu0 %2167, %v80
    %v2169 = vpop.permute.xlu0 %2168
    %2172 = vset.pattern.permute.xlu0 0
    %2173 = vperm.xlu0 %2172, %v81
    %v2174 = vpop.permute.xlu0 %2173
    %2177 = vset.pattern.permute.xlu0 0
    %2178 = vperm.xlu0 %2177, %v82
    %v2179 = vpop.permute.xlu0 %2178
    %2182 = vset.pattern.permute.xlu0 0
    %2183 = vperm.xlu0 %2182, %v83
    %v2184 = vpop.permute.xlu0 %2183
    %2187 = vset.pattern.permute.xlu0 0
    %2188 = vperm.xlu0 %2187, %v84
    %v2189 = vpop.permute.xlu0 %2188
    %2192 = vset.pattern.permute.xlu0 0
    %2193 = vperm.xlu0 %2192, %v85
    %v2194 = vpop.permute.xlu0 %2193
    %2197 = vset.pattern.permute.xlu0 0
    %2198 = vperm.xlu0 %2197, %v86
    %v2199 = vpop.permute.xlu0 %2198
    %2202 = vset.pattern.permute.xlu0 0
    %2203 = vperm.xlu0 %2202, %v87
    %v2204 = vpop.permute.xlu0 %2203
    %2207 = vset.pattern.permute.xlu0 0
    %2208 = vperm.xlu0 %2207, %v88
    %v2209 = vpop.permute.xlu0 %2208
    %2212 = vset.pattern.permute.xlu0 0
    %2213 = vperm.xlu0 %2212, %v89
    %v2214 = vpop.permute.xlu0 %2213
    %2217 = vset.pattern.permute.xlu0 0
    %2218 = vperm.xlu0 %2217, %v90
    %v2219 = vpop.permute.xlu0 %2218
    %2222 = vset.pattern.permute.xlu0 0
    %2223 = vperm.xlu0 %2222, %v91
    %v2224 = vpop.permute.xlu0 %2223
    %2227 = vset.pattern.permute.xlu0 0
    %2228 = vperm.xlu0 %2227, %v92
    %v2229 = vpop.permute.xlu0 %2228
    %2232 = vset.pattern.permute.xlu0 0
    %2233 = vperm.xlu0 %2232, %v93
    %v2234 = vpop.permute.xlu0 %2233
    %2237 = vset.pattern.permute.xlu0 0
    %2238 = vperm.xlu0 %2237, %v94
    %v2239 = vpop.permute.xlu0 %2238
    %2242 = vset.pattern.permute.xlu0 0
    %2243 = vperm.xlu0 %2242, %v95
    %v2244 = vpop.permute.xlu0 %2243
    %2247 = vset.pattern.permute.xlu0 0
    %2248 = vperm.xlu0 %2247, %v96
    %v2249 = vpop.permute.xlu0 %2248
    %2252 = vset.pattern.permute.xlu0 0
    %2253 = vperm.xlu0 %2252, %v97
    %v2254 = vpop.permute.xlu0 %2253
    %2257 = vset.pattern.permute.xlu0 0
    %2258 = vperm.xlu0 %2257, %v98
    %v2259 = vpop.permute.xlu0 %2258
    %2262 = vset.pattern.permute.xlu0 0
    %2263 = vperm.xlu0 %2262, %v99
    %v2264 = vpop.permute.xlu0 %2263
    %2267 = vset.pattern.permute.xlu0 0
    %2268 = vperm.xlu0 %2267, %v100
    %v2269 = vpop.permute.xlu0 %2268
    %2272 = vset.pattern.permute.xlu0 0
    %2273 = vperm.xlu0 %2272, %v101
    %v2274 = vpop.permute.xlu0 %2273
    %2277 = vset.pattern.permute.xlu0 0
    %2278 = vperm.xlu0 %2277, %v102
    %v2279 = vpop.permute.xlu0 %2278
    %2282 = vset.pattern.permute.xlu0 0
    %2283 = vperm.xlu0 %2282, %v103
    %v2284 = vpop.permute.xlu0 %2283
    %v2286 = vperm.slane %v1965, 2
    %v2287 = vmul.f32 %v1969, %v2286
    %v2288 = vmul.f32 %v1974, %v2286
    %v2289 = vmul.f32 %v1979, %v2286
    %v2290 = vmul.f32 %v1984, %v2286
    %v2291 = vmul.f32 %v1989, %v2286
    %v2292 = vmul.f32 %v1994, %v2286
    %v2293 = vmul.f32 %v1999, %v2286
    %v2294 = vmul.f32 %v2004, %v2286
    %v2295 = vmul.f32 %v2009, %v2286
    %v2296 = vmul.f32 %v2014, %v2286
    %v2297 = vmul.f32 %v2019, %v2286
    %v2298 = vmul.f32 %v2024, %v2286
    %v2299 = vmul.f32 %v2029, %v2286
    %v2300 = vmul.f32 %v2034, %v2286
    %v2301 = vmul.f32 %v2039, %v2286
    %v2302 = vmul.f32 %v2044, %v2286
    %v2303 = vmul.f32 %v2049, %v2286
    %v2304 = vmul.f32 %v2054, %v2286
    %v2305 = vmul.f32 %v2059, %v2286
    %v2306 = vmul.f32 %v2064, %v2286
    %v2307 = vmul.f32 %v2069, %v2286
    %v2308 = vmul.f32 %v2074, %v2286
    %v2309 = vmul.f32 %v2079, %v2286
    %v2310 = vmul.f32 %v2084, %v2286
    %v2311 = vmul.f32 %v2089, %v2286
    %v2312 = vmul.f32 %v2094, %v2286
    %v2313 = vmul.f32 %v2099, %v2286
    %v2314 = vmul.f32 %v2104, %v2286
    %v2315 = vmul.f32 %v2109, %v2286
    %v2316 = vmul.f32 %v2114, %v2286
    %v2317 = vmul.f32 %v2119, %v2286
    %v2318 = vmul.f32 %v2124, %v2286
    %v2319 = vmul.f32 %v2129, %v2286
    %v2320 = vmul.f32 %v2134, %v2286
    %v2321 = vmul.f32 %v2139, %v2286
    %v2322 = vmul.f32 %v2144, %v2286
    %v2323 = vmul.f32 %v2149, %v2286
    %v2324 = vmul.f32 %v2154, %v2286
    %v2325 = vmul.f32 %v2159, %v2286
    %v2326 = vmul.f32 %v2164, %v2286
    %v2327 = vmul.f32 %v2169, %v2286
    %v2328 = vmul.f32 %v2174, %v2286
    %v2329 = vmul.f32 %v2179, %v2286
    %v2330 = vmul.f32 %v2184, %v2286
    %v2331 = vmul.f32 %v2189, %v2286
    %v2332 = vmul.f32 %v2194, %v2286
    %v2333 = vmul.f32 %v2199, %v2286
    %v2334 = vmul.f32 %v2204, %v2286
    %v2335 = vmul.f32 %v2209, %v2286
    %v2336 = vmul.f32 %v2214, %v2286
    %v2337 = vmul.f32 %v2219, %v2286
    %v2338 = vmul.f32 %v2224, %v2286
    %v2339 = vmul.f32 %v2229, %v2286
    %v2340 = vmul.f32 %v2234, %v2286
    %v2341 = vmul.f32 %v2239, %v2286
    %v2342 = vmul.f32 %v2244, %v2286
    %v2343 = vmul.f32 %v2249, %v2286
    %v2344 = vmul.f32 %v2254, %v2286
    %v2345 = vmul.f32 %v2259, %v2286
    %v2346 = vmul.f32 %v2264, %v2286
    %v2347 = vmul.f32 %v2269, %v2286
    %v2348 = vmul.f32 %v2274, %v2286
    %v2349 = vmul.f32 %v2279, %v2286
    %v2350 = vmul.f32 %v2284, %v2286
    %2352 = vset.pattern.permute.xlu0 0
    %2353 = vperm.xlu0 %2352, %v1387
    %v2354 = vpop.permute.xlu0 %2353
    %2357 = vset.pattern.permute.xlu0 0
    %2358 = vperm.xlu0 %2357, %v1388
    %v2359 = vpop.permute.xlu0 %2358
    %2362 = vset.pattern.permute.xlu0 0
    %2363 = vperm.xlu0 %2362, %v1389
    %v2364 = vpop.permute.xlu0 %2363
    %2367 = vset.pattern.permute.xlu0 0
    %2368 = vperm.xlu0 %2367, %v1390
    %v2369 = vpop.permute.xlu0 %2368
    %2372 = vset.pattern.permute.xlu0 0
    %2373 = vperm.xlu0 %2372, %v1391
    %v2374 = vpop.permute.xlu0 %2373
    %2377 = vset.pattern.permute.xlu0 0
    %2378 = vperm.xlu0 %2377, %v1392
    %v2379 = vpop.permute.xlu0 %2378
    %2382 = vset.pattern.permute.xlu0 0
    %2383 = vperm.xlu0 %2382, %v1393
    %v2384 = vpop.permute.xlu0 %2383
    %2387 = vset.pattern.permute.xlu0 0
    %2388 = vperm.xlu0 %2387, %v1394
    %v2389 = vpop.permute.xlu0 %2388
    %2392 = vset.pattern.permute.xlu0 0
    %2393 = vperm.xlu0 %2392, %v1395
    %v2394 = vpop.permute.xlu0 %2393
    %2397 = vset.pattern.permute.xlu0 0
    %2398 = vperm.xlu0 %2397, %v1396
    %v2399 = vpop.permute.xlu0 %2398
    %2402 = vset.pattern.permute.xlu0 0
    %2403 = vperm.xlu0 %2402, %v1397
    %v2404 = vpop.permute.xlu0 %2403
    %2407 = vset.pattern.permute.xlu0 0
    %2408 = vperm.xlu0 %2407, %v1398
    %v2409 = vpop.permute.xlu0 %2408
    %2412 = vset.pattern.permute.xlu0 0
    %2413 = vperm.xlu0 %2412, %v1399
    %v2414 = vpop.permute.xlu0 %2413
    %2417 = vset.pattern.permute.xlu0 0
    %2418 = vperm.xlu0 %2417, %v1400
    %v2419 = vpop.permute.xlu0 %2418
    %2422 = vset.pattern.permute.xlu0 0
    %2423 = vperm.xlu0 %2422, %v1401
    %v2424 = vpop.permute.xlu0 %2423
    %2427 = vset.pattern.permute.xlu0 0
    %2428 = vperm.xlu0 %2427, %v1402
    %v2429 = vpop.permute.xlu0 %2428
    %2432 = vset.pattern.permute.xlu0 0
    %2433 = vperm.xlu0 %2432, %v1403
    %v2434 = vpop.permute.xlu0 %2433
    %2437 = vset.pattern.permute.xlu0 0
    %2438 = vperm.xlu0 %2437, %v1404
    %v2439 = vpop.permute.xlu0 %2438
    %2442 = vset.pattern.permute.xlu0 0
    %2443 = vperm.xlu0 %2442, %v1405
    %v2444 = vpop.permute.xlu0 %2443
    %2447 = vset.pattern.permute.xlu0 0
    %2448 = vperm.xlu0 %2447, %v1406
    %v2449 = vpop.permute.xlu0 %2448
    %2452 = vset.pattern.permute.xlu0 0
    %2453 = vperm.xlu0 %2452, %v1407
    %v2454 = vpop.permute.xlu0 %2453
    %2457 = vset.pattern.permute.xlu0 0
    %2458 = vperm.xlu0 %2457, %v1408
    %v2459 = vpop.permute.xlu0 %2458
    %2462 = vset.pattern.permute.xlu0 0
    %2463 = vperm.xlu0 %2462, %v1409
    %v2464 = vpop.permute.xlu0 %2463
    %2467 = vset.pattern.permute.xlu0 0
    %2468 = vperm.xlu0 %2467, %v1410
    %v2469 = vpop.permute.xlu0 %2468
    %2472 = vset.pattern.permute.xlu0 0
    %2473 = vperm.xlu0 %2472, %v1411
    %v2474 = vpop.permute.xlu0 %2473
    %2477 = vset.pattern.permute.xlu0 0
    %2478 = vperm.xlu0 %2477, %v1412
    %v2479 = vpop.permute.xlu0 %2478
    %2482 = vset.pattern.permute.xlu0 0
    %2483 = vperm.xlu0 %2482, %v1413
    %v2484 = vpop.permute.xlu0 %2483
    %2487 = vset.pattern.permute.xlu0 0
    %2488 = vperm.xlu0 %2487, %v1414
    %v2489 = vpop.permute.xlu0 %2488
    %2492 = vset.pattern.permute.xlu0 0
    %2493 = vperm.xlu0 %2492, %v1415
    %v2494 = vpop.permute.xlu0 %2493
    %2497 = vset.pattern.permute.xlu0 0
    %2498 = vperm.xlu0 %2497, %v1416
    %v2499 = vpop.permute.xlu0 %2498
    %2502 = vset.pattern.permute.xlu0 0
    %2503 = vperm.xlu0 %2502, %v1417
    %v2504 = vpop.permute.xlu0 %2503
    %2507 = vset.pattern.permute.xlu0 0
    %2508 = vperm.xlu0 %2507, %v1418
    %v2509 = vpop.permute.xlu0 %2508
    %2512 = vset.pattern.permute.xlu0 0
    %2513 = vperm.xlu0 %2512, %v1419
    %v2514 = vpop.permute.xlu0 %2513
    %2517 = vset.pattern.permute.xlu0 0
    %2518 = vperm.xlu0 %2517, %v1420
    %v2519 = vpop.permute.xlu0 %2518
    %2522 = vset.pattern.permute.xlu0 0
    %2523 = vperm.xlu0 %2522, %v1421
    %v2524 = vpop.permute.xlu0 %2523
    %2527 = vset.pattern.permute.xlu0 0
    %2528 = vperm.xlu0 %2527, %v1422
    %v2529 = vpop.permute.xlu0 %2528
    %2532 = vset.pattern.permute.xlu0 0
    %2533 = vperm.xlu0 %2532, %v1423
    %v2534 = vpop.permute.xlu0 %2533
    %2537 = vset.pattern.permute.xlu0 0
    %2538 = vperm.xlu0 %2537, %v1424
    %v2539 = vpop.permute.xlu0 %2538
    %2542 = vset.pattern.permute.xlu0 0
    %2543 = vperm.xlu0 %2542, %v1425
    %v2544 = vpop.permute.xlu0 %2543
    %2547 = vset.pattern.permute.xlu0 0
    %2548 = vperm.xlu0 %2547, %v1426
    %v2549 = vpop.permute.xlu0 %2548
    %2552 = vset.pattern.permute.xlu0 0
    %2553 = vperm.xlu0 %2552, %v1427
    %v2554 = vpop.permute.xlu0 %2553
    %2557 = vset.pattern.permute.xlu0 0
    %2558 = vperm.xlu0 %2557, %v1428
    %v2559 = vpop.permute.xlu0 %2558
    %2562 = vset.pattern.permute.xlu0 0
    %2563 = vperm.xlu0 %2562, %v1429
    %v2564 = vpop.permute.xlu0 %2563
    %2567 = vset.pattern.permute.xlu0 0
    %2568 = vperm.xlu0 %2567, %v1430
    %v2569 = vpop.permute.xlu0 %2568
    %2572 = vset.pattern.permute.xlu0 0
    %2573 = vperm.xlu0 %2572, %v1431
    %v2574 = vpop.permute.xlu0 %2573
    %2577 = vset.pattern.permute.xlu0 0
    %2578 = vperm.xlu0 %2577, %v1432
    %v2579 = vpop.permute.xlu0 %2578
    %2582 = vset.pattern.permute.xlu0 0
    %2583 = vperm.xlu0 %2582, %v1433
    %v2584 = vpop.permute.xlu0 %2583
    %2587 = vset.pattern.permute.xlu0 0
    %2588 = vperm.xlu0 %2587, %v1434
    %v2589 = vpop.permute.xlu0 %2588
    %2592 = vset.pattern.permute.xlu0 0
    %2593 = vperm.xlu0 %2592, %v1435
    %v2594 = vpop.permute.xlu0 %2593
    %2597 = vset.pattern.permute.xlu0 0
    %2598 = vperm.xlu0 %2597, %v1436
    %v2599 = vpop.permute.xlu0 %2598
    %2602 = vset.pattern.permute.xlu0 0
    %2603 = vperm.xlu0 %2602, %v1437
    %v2604 = vpop.permute.xlu0 %2603
    %2607 = vset.pattern.permute.xlu0 0
    %2608 = vperm.xlu0 %2607, %v1438
    %v2609 = vpop.permute.xlu0 %2608
    %2612 = vset.pattern.permute.xlu0 0
    %2613 = vperm.xlu0 %2612, %v1439
    %v2614 = vpop.permute.xlu0 %2613
    %2617 = vset.pattern.permute.xlu0 0
    %2618 = vperm.xlu0 %2617, %v1440
    %v2619 = vpop.permute.xlu0 %2618
    %2622 = vset.pattern.permute.xlu0 0
    %2623 = vperm.xlu0 %2622, %v1441
    %v2624 = vpop.permute.xlu0 %2623
    %2627 = vset.pattern.permute.xlu0 0
    %2628 = vperm.xlu0 %2627, %v1442
    %v2629 = vpop.permute.xlu0 %2628
    %2632 = vset.pattern.permute.xlu0 0
    %2633 = vperm.xlu0 %2632, %v1443
    %v2634 = vpop.permute.xlu0 %2633
    %2637 = vset.pattern.permute.xlu0 0
    %2638 = vperm.xlu0 %2637, %v1444
    %v2639 = vpop.permute.xlu0 %2638
    %2642 = vset.pattern.permute.xlu0 0
    %2643 = vperm.xlu0 %2642, %v1445
    %v2644 = vpop.permute.xlu0 %2643
    %2647 = vset.pattern.permute.xlu0 0
    %2648 = vperm.xlu0 %2647, %v1446
    %v2649 = vpop.permute.xlu0 %2648
    %2652 = vset.pattern.permute.xlu0 0
    %2653 = vperm.xlu0 %2652, %v1447
    %v2654 = vpop.permute.xlu0 %2653
    %2657 = vset.pattern.permute.xlu0 0
    %2658 = vperm.xlu0 %2657, %v1448
    %v2659 = vpop.permute.xlu0 %2658
    %2662 = vset.pattern.permute.xlu0 0
    %2663 = vperm.xlu0 %2662, %v1449
    %v2664 = vpop.permute.xlu0 %2663
    %2667 = vset.pattern.permute.xlu0 0
    %2668 = vperm.xlu0 %2667, %v1450
    %v2669 = vpop.permute.xlu0 %2668
    %v2671 = vperm.slane %v1965, 1
    %v2672 = vmul.f32 %v2354, %v2671
    %v2673 = vmul.f32 %v2359, %v2671
    %v2674 = vmul.f32 %v2364, %v2671
    %v2675 = vmul.f32 %v2369, %v2671
    %v2676 = vmul.f32 %v2374, %v2671
    %v2677 = vmul.f32 %v2379, %v2671
    %v2678 = vmul.f32 %v2384, %v2671
    %v2679 = vmul.f32 %v2389, %v2671
    %v2680 = vmul.f32 %v2394, %v2671
    %v2681 = vmul.f32 %v2399, %v2671
    %v2682 = vmul.f32 %v2404, %v2671
    %v2683 = vmul.f32 %v2409, %v2671
    %v2684 = vmul.f32 %v2414, %v2671
    %v2685 = vmul.f32 %v2419, %v2671
    %v2686 = vmul.f32 %v2424, %v2671
    %v2687 = vmul.f32 %v2429, %v2671
    %v2688 = vmul.f32 %v2434, %v2671
    %v2689 = vmul.f32 %v2439, %v2671
    %v2690 = vmul.f32 %v2444, %v2671
    %v2691 = vmul.f32 %v2449, %v2671
    %v2692 = vmul.f32 %v2454, %v2671
    %v2693 = vmul.f32 %v2459, %v2671
    %v2694 = vmul.f32 %v2464, %v2671
    %v2695 = vmul.f32 %v2469, %v2671
    %v2696 = vmul.f32 %v2474, %v2671
    %v2697 = vmul.f32 %v2479, %v2671
    %v2698 = vmul.f32 %v2484, %v2671
    %v2699 = vmul.f32 %v2489, %v2671
    %v2700 = vmul.f32 %v2494, %v2671
    %v2701 = vmul.f32 %v2499, %v2671
    %v2702 = vmul.f32 %v2504, %v2671
    %v2703 = vmul.f32 %v2509, %v2671
    %v2704 = vmul.f32 %v2514, %v2671
    %v2705 = vmul.f32 %v2519, %v2671
    %v2706 = vmul.f32 %v2524, %v2671
    %v2707 = vmul.f32 %v2529, %v2671
    %v2708 = vmul.f32 %v2534, %v2671
    %v2709 = vmul.f32 %v2539, %v2671
    %v2710 = vmul.f32 %v2544, %v2671
    %v2711 = vmul.f32 %v2549, %v2671
    %v2712 = vmul.f32 %v2554, %v2671
    %v2713 = vmul.f32 %v2559, %v2671
    %v2714 = vmul.f32 %v2564, %v2671
    %v2715 = vmul.f32 %v2569, %v2671
    %v2716 = vmul.f32 %v2574, %v2671
    %v2717 = vmul.f32 %v2579, %v2671
    %v2718 = vmul.f32 %v2584, %v2671
    %v2719 = vmul.f32 %v2589, %v2671
    %v2720 = vmul.f32 %v2594, %v2671
    %v2721 = vmul.f32 %v2599, %v2671
    %v2722 = vmul.f32 %v2604, %v2671
    %v2723 = vmul.f32 %v2609, %v2671
    %v2724 = vmul.f32 %v2614, %v2671
    %v2725 = vmul.f32 %v2619, %v2671
    %v2726 = vmul.f32 %v2624, %v2671
    %v2727 = vmul.f32 %v2629, %v2671
    %v2728 = vmul.f32 %v2634, %v2671
    %v2729 = vmul.f32 %v2639, %v2671
    %v2730 = vmul.f32 %v2644, %v2671
    %v2731 = vmul.f32 %v2649, %v2671
    %v2732 = vmul.f32 %v2654, %v2671
    %v2733 = vmul.f32 %v2659, %v2671
    %v2734 = vmul.f32 %v2664, %v2671
    %v2735 = vmul.f32 %v2669, %v2671
    %v2736 = vadd.f32 %v2287, %v2672
    %v2737 = vadd.f32 %v2288, %v2673
    %v2738 = vadd.f32 %v2289, %v2674
    %v2739 = vadd.f32 %v2290, %v2675
    %v2740 = vadd.f32 %v2291, %v2676
    %v2741 = vadd.f32 %v2292, %v2677
    %v2742 = vadd.f32 %v2293, %v2678
    %v2743 = vadd.f32 %v2294, %v2679
    %v2744 = vadd.f32 %v2295, %v2680
    %v2745 = vadd.f32 %v2296, %v2681
    %v2746 = vadd.f32 %v2297, %v2682
    %v2747 = vadd.f32 %v2298, %v2683
    %v2748 = vadd.f32 %v2299, %v2684
    %v2749 = vadd.f32 %v2300, %v2685
    %v2750 = vadd.f32 %v2301, %v2686
    %v2751 = vadd.f32 %v2302, %v2687
    %v2752 = vadd.f32 %v2303, %v2688
    %v2753 = vadd.f32 %v2304, %v2689
    %v2754 = vadd.f32 %v2305, %v2690
    %v2755 = vadd.f32 %v2306, %v2691
    %v2756 = vadd.f32 %v2307, %v2692
    %v2757 = vadd.f32 %v2308, %v2693
    %v2758 = vadd.f32 %v2309, %v2694
    %v2759 = vadd.f32 %v2310, %v2695
    %v2760 = vadd.f32 %v2311, %v2696
    %v2761 = vadd.f32 %v2312, %v2697
    %v2762 = vadd.f32 %v2313, %v2698
    %v2763 = vadd.f32 %v2314, %v2699
    %v2764 = vadd.f32 %v2315, %v2700
    %v2765 = vadd.f32 %v2316, %v2701
    %v2766 = vadd.f32 %v2317, %v2702
    %v2767 = vadd.f32 %v2318, %v2703
    %v2768 = vadd.f32 %v2319, %v2704
    %v2769 = vadd.f32 %v2320, %v2705
    %v2770 = vadd.f32 %v2321, %v2706
    %v2771 = vadd.f32 %v2322, %v2707
    %v2772 = vadd.f32 %v2323, %v2708
    %v2773 = vadd.f32 %v2324, %v2709
    %v2774 = vadd.f32 %v2325, %v2710
    %v2775 = vadd.f32 %v2326, %v2711
    %v2776 = vadd.f32 %v2327, %v2712
    %v2777 = vadd.f32 %v2328, %v2713
    %v2778 = vadd.f32 %v2329, %v2714
    %v2779 = vadd.f32 %v2330, %v2715
    %v2780 = vadd.f32 %v2331, %v2716
    %v2781 = vadd.f32 %v2332, %v2717
    %v2782 = vadd.f32 %v2333, %v2718
    %v2783 = vadd.f32 %v2334, %v2719
    %v2784 = vadd.f32 %v2335, %v2720
    %v2785 = vadd.f32 %v2336, %v2721
    %v2786 = vadd.f32 %v2337, %v2722
    %v2787 = vadd.f32 %v2338, %v2723
    %v2788 = vadd.f32 %v2339, %v2724
    %v2789 = vadd.f32 %v2340, %v2725
    %v2790 = vadd.f32 %v2341, %v2726
    %v2791 = vadd.f32 %v2342, %v2727
    %v2792 = vadd.f32 %v2343, %v2728
    %v2793 = vadd.f32 %v2344, %v2729
    %v2794 = vadd.f32 %v2345, %v2730
    %v2795 = vadd.f32 %v2346, %v2731
    %v2796 = vadd.f32 %v2347, %v2732
    %v2797 = vadd.f32 %v2348, %v2733
    %v2798 = vadd.f32 %v2349, %v2734
    %v2799 = vadd.f32 %v2350, %v2735
    %2801 = vset.pattern.permute.xlu0 0
    %2802 = vperm.xlu0 %2801, %v1130
    %v2803 = vpop.permute.xlu0 %2802
    %2806 = vset.pattern.permute.xlu0 0
    %2807 = vperm.xlu0 %2806, %v1131
    %v2808 = vpop.permute.xlu0 %2807
    %2811 = vset.pattern.permute.xlu0 0
    %2812 = vperm.xlu0 %2811, %v1132
    %v2813 = vpop.permute.xlu0 %2812
    %2816 = vset.pattern.permute.xlu0 0
    %2817 = vperm.xlu0 %2816, %v1133
    %v2818 = vpop.permute.xlu0 %2817
    %2821 = vset.pattern.permute.xlu0 0
    %2822 = vperm.xlu0 %2821, %v1134
    %v2823 = vpop.permute.xlu0 %2822
    %2826 = vset.pattern.permute.xlu0 0
    %2827 = vperm.xlu0 %2826, %v1135
    %v2828 = vpop.permute.xlu0 %2827
    %2831 = vset.pattern.permute.xlu0 0
    %2832 = vperm.xlu0 %2831, %v1136
    %v2833 = vpop.permute.xlu0 %2832
    %2836 = vset.pattern.permute.xlu0 0
    %2837 = vperm.xlu0 %2836, %v1137
    %v2838 = vpop.permute.xlu0 %2837
    %2841 = vset.pattern.permute.xlu0 0
    %2842 = vperm.xlu0 %2841, %v1138
    %v2843 = vpop.permute.xlu0 %2842
    %2846 = vset.pattern.permute.xlu0 0
    %2847 = vperm.xlu0 %2846, %v1139
    %v2848 = vpop.permute.xlu0 %2847
    %2851 = vset.pattern.permute.xlu0 0
    %2852 = vperm.xlu0 %2851, %v1140
    %v2853 = vpop.permute.xlu0 %2852
    %2856 = vset.pattern.permute.xlu0 0
    %2857 = vperm.xlu0 %2856, %v1141
    %v2858 = vpop.permute.xlu0 %2857
    %2861 = vset.pattern.permute.xlu0 0
    %2862 = vperm.xlu0 %2861, %v1142
    %v2863 = vpop.permute.xlu0 %2862
    %2866 = vset.pattern.permute.xlu0 0
    %2867 = vperm.xlu0 %2866, %v1143
    %v2868 = vpop.permute.xlu0 %2867
    %2871 = vset.pattern.permute.xlu0 0
    %2872 = vperm.xlu0 %2871, %v1144
    %v2873 = vpop.permute.xlu0 %2872
    %2876 = vset.pattern.permute.xlu0 0
    %2877 = vperm.xlu0 %2876, %v1145
    %v2878 = vpop.permute.xlu0 %2877
    %2881 = vset.pattern.permute.xlu0 0
    %2882 = vperm.xlu0 %2881, %v1146
    %v2883 = vpop.permute.xlu0 %2882
    %2886 = vset.pattern.permute.xlu0 0
    %2887 = vperm.xlu0 %2886, %v1147
    %v2888 = vpop.permute.xlu0 %2887
    %2891 = vset.pattern.permute.xlu0 0
    %2892 = vperm.xlu0 %2891, %v1148
    %v2893 = vpop.permute.xlu0 %2892
    %2896 = vset.pattern.permute.xlu0 0
    %2897 = vperm.xlu0 %2896, %v1149
    %v2898 = vpop.permute.xlu0 %2897
    %2901 = vset.pattern.permute.xlu0 0
    %2902 = vperm.xlu0 %2901, %v1150
    %v2903 = vpop.permute.xlu0 %2902
    %2906 = vset.pattern.permute.xlu0 0
    %2907 = vperm.xlu0 %2906, %v1151
    %v2908 = vpop.permute.xlu0 %2907
    %2911 = vset.pattern.permute.xlu0 0
    %2912 = vperm.xlu0 %2911, %v1152
    %v2913 = vpop.permute.xlu0 %2912
    %2916 = vset.pattern.permute.xlu0 0
    %2917 = vperm.xlu0 %2916, %v1153
    %v2918 = vpop.permute.xlu0 %2917
    %2921 = vset.pattern.permute.xlu0 0
    %2922 = vperm.xlu0 %2921, %v1154
    %v2923 = vpop.permute.xlu0 %2922
    %2926 = vset.pattern.permute.xlu0 0
    %2927 = vperm.xlu0 %2926, %v1155
    %v2928 = vpop.permute.xlu0 %2927
    %2931 = vset.pattern.permute.xlu0 0
    %2932 = vperm.xlu0 %2931, %v1156
    %v2933 = vpop.permute.xlu0 %2932
    %2936 = vset.pattern.permute.xlu0 0
    %2937 = vperm.xlu0 %2936, %v1157
    %v2938 = vpop.permute.xlu0 %2937
    %2941 = vset.pattern.permute.xlu0 0
    %2942 = vperm.xlu0 %2941, %v1158
    %v2943 = vpop.permute.xlu0 %2942
    %2946 = vset.pattern.permute.xlu0 0
    %2947 = vperm.xlu0 %2946, %v1159
    %v2948 = vpop.permute.xlu0 %2947
    %2951 = vset.pattern.permute.xlu0 0
    %2952 = vperm.xlu0 %2951, %v1160
    %v2953 = vpop.permute.xlu0 %2952
    %2956 = vset.pattern.permute.xlu0 0
    %2957 = vperm.xlu0 %2956, %v1161
    %v2958 = vpop.permute.xlu0 %2957
    %2961 = vset.pattern.permute.xlu0 0
    %2962 = vperm.xlu0 %2961, %v1162
    %v2963 = vpop.permute.xlu0 %2962
    %2966 = vset.pattern.permute.xlu0 0
    %2967 = vperm.xlu0 %2966, %v1163
    %v2968 = vpop.permute.xlu0 %2967
    %2971 = vset.pattern.permute.xlu0 0
    %2972 = vperm.xlu0 %2971, %v1164
    %v2973 = vpop.permute.xlu0 %2972
    %2976 = vset.pattern.permute.xlu0 0
    %2977 = vperm.xlu0 %2976, %v1165
    %v2978 = vpop.permute.xlu0 %2977
    %2981 = vset.pattern.permute.xlu0 0
    %2982 = vperm.xlu0 %2981, %v1166
    %v2983 = vpop.permute.xlu0 %2982
    %2986 = vset.pattern.permute.xlu0 0
    %2987 = vperm.xlu0 %2986, %v1167
    %v2988 = vpop.permute.xlu0 %2987
    %2991 = vset.pattern.permute.xlu0 0
    %2992 = vperm.xlu0 %2991, %v1168
    %v2993 = vpop.permute.xlu0 %2992
    %2996 = vset.pattern.permute.xlu0 0
    %2997 = vperm.xlu0 %2996, %v1169
    %v2998 = vpop.permute.xlu0 %2997
    %3001 = vset.pattern.permute.xlu0 0
    %3002 = vperm.xlu0 %3001, %v1170
    %v3003 = vpop.permute.xlu0 %3002
    %3006 = vset.pattern.permute.xlu0 0
    %3007 = vperm.xlu0 %3006, %v1171
    %v3008 = vpop.permute.xlu0 %3007
    %3011 = vset.pattern.permute.xlu0 0
    %3012 = vperm.xlu0 %3011, %v1172
    %v3013 = vpop.permute.xlu0 %3012
    %3016 = vset.pattern.permute.xlu0 0
    %3017 = vperm.xlu0 %3016, %v1173
    %v3018 = vpop.permute.xlu0 %3017
    %3021 = vset.pattern.permute.xlu0 0
    %3022 = vperm.xlu0 %3021, %v1174
    %v3023 = vpop.permute.xlu0 %3022
    %3026 = vset.pattern.permute.xlu0 0
    %3027 = vperm.xlu0 %3026, %v1175
    %v3028 = vpop.permute.xlu0 %3027
    %3031 = vset.pattern.permute.xlu0 0
    %3032 = vperm.xlu0 %3031, %v1176
    %v3033 = vpop.permute.xlu0 %3032
    %3036 = vset.pattern.permute.xlu0 0
    %3037 = vperm.xlu0 %3036, %v1177
    %v3038 = vpop.permute.xlu0 %3037
    %3041 = vset.pattern.permute.xlu0 0
    %3042 = vperm.xlu0 %3041, %v1178
    %v3043 = vpop.permute.xlu0 %3042
    %3046 = vset.pattern.permute.xlu0 0
    %3047 = vperm.xlu0 %3046, %v1179
    %v3048 = vpop.permute.xlu0 %3047
    %3051 = vset.pattern.permute.xlu0 0
    %3052 = vperm.xlu0 %3051, %v1180
    %v3053 = vpop.permute.xlu0 %3052
    %3056 = vset.pattern.permute.xlu0 0
    %3057 = vperm.xlu0 %3056, %v1181
    %v3058 = vpop.permute.xlu0 %3057
    %3061 = vset.pattern.permute.xlu0 0
    %3062 = vperm.xlu0 %3061, %v1182
    %v3063 = vpop.permute.xlu0 %3062
    %3066 = vset.pattern.permute.xlu0 0
    %3067 = vperm.xlu0 %3066, %v1183
    %v3068 = vpop.permute.xlu0 %3067
    %3071 = vset.pattern.permute.xlu0 0
    %3072 = vperm.xlu0 %3071, %v1184
    %v3073 = vpop.permute.xlu0 %3072
    %3076 = vset.pattern.permute.xlu0 0
    %3077 = vperm.xlu0 %3076, %v1185
    %v3078 = vpop.permute.xlu0 %3077
    %3081 = vset.pattern.permute.xlu0 0
    %3082 = vperm.xlu0 %3081, %v1186
    %v3083 = vpop.permute.xlu0 %3082
    %3086 = vset.pattern.permute.xlu0 0
    %3087 = vperm.xlu0 %3086, %v1187
    %v3088 = vpop.permute.xlu0 %3087
    %3091 = vset.pattern.permute.xlu0 0
    %3092 = vperm.xlu0 %3091, %v1188
    %v3093 = vpop.permute.xlu0 %3092
    %3096 = vset.pattern.permute.xlu0 0
    %3097 = vperm.xlu0 %3096, %v1189
    %v3098 = vpop.permute.xlu0 %3097
    %3101 = vset.pattern.permute.xlu0 0
    %3102 = vperm.xlu0 %3101, %v1190
    %v3103 = vpop.permute.xlu0 %3102
    %3106 = vset.pattern.permute.xlu0 0
    %3107 = vperm.xlu0 %3106, %v1191
    %v3108 = vpop.permute.xlu0 %3107
    %3111 = vset.pattern.permute.xlu0 0
    %3112 = vperm.xlu0 %3111, %v1192
    %v3113 = vpop.permute.xlu0 %3112
    %3116 = vset.pattern.permute.xlu0 0
    %3117 = vperm.xlu0 %3116, %v1193
    %v3118 = vpop.permute.xlu0 %3117
    %v3120 = vperm.slane %v1965, 0
    %v3121 = vmul.f32 %v2803, %v3120
    %v3122 = vmul.f32 %v2808, %v3120
    %v3123 = vmul.f32 %v2813, %v3120
    %v3124 = vmul.f32 %v2818, %v3120
    %v3125 = vmul.f32 %v2823, %v3120
    %v3126 = vmul.f32 %v2828, %v3120
    %v3127 = vmul.f32 %v2833, %v3120
    %v3128 = vmul.f32 %v2838, %v3120
    %v3129 = vmul.f32 %v2843, %v3120
    %v3130 = vmul.f32 %v2848, %v3120
    %v3131 = vmul.f32 %v2853, %v3120
    %v3132 = vmul.f32 %v2858, %v3120
    %v3133 = vmul.f32 %v2863, %v3120
    %v3134 = vmul.f32 %v2868, %v3120
    %v3135 = vmul.f32 %v2873, %v3120
    %v3136 = vmul.f32 %v2878, %v3120
    %v3137 = vmul.f32 %v2883, %v3120
    %v3138 = vmul.f32 %v2888, %v3120
    %v3139 = vmul.f32 %v2893, %v3120
    %v3140 = vmul.f32 %v2898, %v3120
    %v3141 = vmul.f32 %v2903, %v3120
    %v3142 = vmul.f32 %v2908, %v3120
    %v3143 = vmul.f32 %v2913, %v3120
    %v3144 = vmul.f32 %v2918, %v3120
    %v3145 = vmul.f32 %v2923, %v3120
    %v3146 = vmul.f32 %v2928, %v3120
    %v3147 = vmul.f32 %v2933, %v3120
    %v3148 = vmul.f32 %v2938, %v3120
    %v3149 = vmul.f32 %v2943, %v3120
    %v3150 = vmul.f32 %v2948, %v3120
    %v3151 = vmul.f32 %v2953, %v3120
    %v3152 = vmul.f32 %v2958, %v3120
    %v3153 = vmul.f32 %v2963, %v3120
    %v3154 = vmul.f32 %v2968, %v3120
    %v3155 = vmul.f32 %v2973, %v3120
    %v3156 = vmul.f32 %v2978, %v3120
    %v3157 = vmul.f32 %v2983, %v3120
    %v3158 = vmul.f32 %v2988, %v3120
    %v3159 = vmul.f32 %v2993, %v3120
    %v3160 = vmul.f32 %v2998, %v3120
    %v3161 = vmul.f32 %v3003, %v3120
    %v3162 = vmul.f32 %v3008, %v3120
    %v3163 = vmul.f32 %v3013, %v3120
    %v3164 = vmul.f32 %v3018, %v3120
    %v3165 = vmul.f32 %v3023, %v3120
    %v3166 = vmul.f32 %v3028, %v3120
    %v3167 = vmul.f32 %v3033, %v3120
    %v3168 = vmul.f32 %v3038, %v3120
    %v3169 = vmul.f32 %v3043, %v3120
    %v3170 = vmul.f32 %v3048, %v3120
    %v3171 = vmul.f32 %v3053, %v3120
    %v3172 = vmul.f32 %v3058, %v3120
    %v3173 = vmul.f32 %v3063, %v3120
    %v3174 = vmul.f32 %v3068, %v3120
    %v3175 = vmul.f32 %v3073, %v3120
    %v3176 = vmul.f32 %v3078, %v3120
    %v3177 = vmul.f32 %v3083, %v3120
    %v3178 = vmul.f32 %v3088, %v3120
    %v3179 = vmul.f32 %v3093, %v3120
    %v3180 = vmul.f32 %v3098, %v3120
    %v3181 = vmul.f32 %v3103, %v3120
    %v3182 = vmul.f32 %v3108, %v3120
    %v3183 = vmul.f32 %v3113, %v3120
    %v3184 = vmul.f32 %v3118, %v3120
    %v3185 = vadd.f32 %v2736, %v3121
    %v3186 = vadd.f32 %v2737, %v3122
    %v3187 = vadd.f32 %v2738, %v3123
    %v3188 = vadd.f32 %v2739, %v3124
    %v3189 = vadd.f32 %v2740, %v3125
    %v3190 = vadd.f32 %v2741, %v3126
    %v3191 = vadd.f32 %v2742, %v3127
    %v3192 = vadd.f32 %v2743, %v3128
    %v3193 = vadd.f32 %v2744, %v3129
    %v3194 = vadd.f32 %v2745, %v3130
    %v3195 = vadd.f32 %v2746, %v3131
    %v3196 = vadd.f32 %v2747, %v3132
    %v3197 = vadd.f32 %v2748, %v3133
    %v3198 = vadd.f32 %v2749, %v3134
    %v3199 = vadd.f32 %v2750, %v3135
    %v3200 = vadd.f32 %v2751, %v3136
    %v3201 = vadd.f32 %v2752, %v3137
    %v3202 = vadd.f32 %v2753, %v3138
    %v3203 = vadd.f32 %v2754, %v3139
    %v3204 = vadd.f32 %v2755, %v3140
    %v3205 = vadd.f32 %v2756, %v3141
    %v3206 = vadd.f32 %v2757, %v3142
    %v3207 = vadd.f32 %v2758, %v3143
    %v3208 = vadd.f32 %v2759, %v3144
    %v3209 = vadd.f32 %v2760, %v3145
    %v3210 = vadd.f32 %v2761, %v3146
    %v3211 = vadd.f32 %v2762, %v3147
    %v3212 = vadd.f32 %v2763, %v3148
    %v3213 = vadd.f32 %v2764, %v3149
    %v3214 = vadd.f32 %v2765, %v3150
    %v3215 = vadd.f32 %v2766, %v3151
    %v3216 = vadd.f32 %v2767, %v3152
    %v3217 = vadd.f32 %v2768, %v3153
    %v3218 = vadd.f32 %v2769, %v3154
    %v3219 = vadd.f32 %v2770, %v3155
    %v3220 = vadd.f32 %v2771, %v3156
    %v3221 = vadd.f32 %v2772, %v3157
    %v3222 = vadd.f32 %v2773, %v3158
    %v3223 = vadd.f32 %v2774, %v3159
    %v3224 = vadd.f32 %v2775, %v3160
    %v3225 = vadd.f32 %v2776, %v3161
    %v3226 = vadd.f32 %v2777, %v3162
    %v3227 = vadd.f32 %v2778, %v3163
    %v3228 = vadd.f32 %v2779, %v3164
    %v3229 = vadd.f32 %v2780, %v3165
    %v3230 = vadd.f32 %v2781, %v3166
    %v3231 = vadd.f32 %v2782, %v3167
    %v3232 = vadd.f32 %v2783, %v3168
    %v3233 = vadd.f32 %v2784, %v3169
    %v3234 = vadd.f32 %v2785, %v3170
    %v3235 = vadd.f32 %v2786, %v3171
    %v3236 = vadd.f32 %v2787, %v3172
    %v3237 = vadd.f32 %v2788, %v3173
    %v3238 = vadd.f32 %v2789, %v3174
    %v3239 = vadd.f32 %v2790, %v3175
    %v3240 = vadd.f32 %v2791, %v3176
    %v3241 = vadd.f32 %v2792, %v3177
    %v3242 = vadd.f32 %v2793, %v3178
    %v3243 = vadd.f32 %v2794, %v3179
    %v3244 = vadd.f32 %v2795, %v3180
    %v3245 = vadd.f32 %v2796, %v3181
    %v3246 = vadd.f32 %v2797, %v3182
    %v3247 = vadd.f32 %v2798, %v3183
    %v3248 = vadd.f32 %v2799, %v3184
    %3250 = vset.pattern.permute.xlu0 0
    %3251 = vperm.xlu0 %3250, %v1644
    %v3252 = vpop.permute.xlu0 %3251
    %3255 = vset.pattern.permute.xlu0 0
    %3256 = vperm.xlu0 %3255, %v1645
    %v3257 = vpop.permute.xlu0 %3256
    %3260 = vset.pattern.permute.xlu0 0
    %3261 = vperm.xlu0 %3260, %v1646
    %v3262 = vpop.permute.xlu0 %3261
    %3265 = vset.pattern.permute.xlu0 0
    %3266 = vperm.xlu0 %3265, %v1647
    %v3267 = vpop.permute.xlu0 %3266
    %3270 = vset.pattern.permute.xlu0 0
    %3271 = vperm.xlu0 %3270, %v1648
    %v3272 = vpop.permute.xlu0 %3271
    %3275 = vset.pattern.permute.xlu0 0
    %3276 = vperm.xlu0 %3275, %v1649
    %v3277 = vpop.permute.xlu0 %3276
    %3280 = vset.pattern.permute.xlu0 0
    %3281 = vperm.xlu0 %3280, %v1650
    %v3282 = vpop.permute.xlu0 %3281
    %3285 = vset.pattern.permute.xlu0 0
    %3286 = vperm.xlu0 %3285, %v1651
    %v3287 = vpop.permute.xlu0 %3286
    %3290 = vset.pattern.permute.xlu0 0
    %3291 = vperm.xlu0 %3290, %v1652
    %v3292 = vpop.permute.xlu0 %3291
    %3295 = vset.pattern.permute.xlu0 0
    %3296 = vperm.xlu0 %3295, %v1653
    %v3297 = vpop.permute.xlu0 %3296
    %3300 = vset.pattern.permute.xlu0 0
    %3301 = vperm.xlu0 %3300, %v1654
    %v3302 = vpop.permute.xlu0 %3301
    %3305 = vset.pattern.permute.xlu0 0
    %3306 = vperm.xlu0 %3305, %v1655
    %v3307 = vpop.permute.xlu0 %3306
    %3310 = vset.pattern.permute.xlu0 0
    %3311 = vperm.xlu0 %3310, %v1656
    %v3312 = vpop.permute.xlu0 %3311
    %3315 = vset.pattern.permute.xlu0 0
    %3316 = vperm.xlu0 %3315, %v1657
    %v3317 = vpop.permute.xlu0 %3316
    %3320 = vset.pattern.permute.xlu0 0
    %3321 = vperm.xlu0 %3320, %v1658
    %v3322 = vpop.permute.xlu0 %3321
    %3325 = vset.pattern.permute.xlu0 0
    %3326 = vperm.xlu0 %3325, %v1659
    %v3327 = vpop.permute.xlu0 %3326
    %3330 = vset.pattern.permute.xlu0 0
    %3331 = vperm.xlu0 %3330, %v1660
    %v3332 = vpop.permute.xlu0 %3331
    %3335 = vset.pattern.permute.xlu0 0
    %3336 = vperm.xlu0 %3335, %v1661
    %v3337 = vpop.permute.xlu0 %3336
    %3340 = vset.pattern.permute.xlu0 0
    %3341 = vperm.xlu0 %3340, %v1662
    %v3342 = vpop.permute.xlu0 %3341
    %3345 = vset.pattern.permute.xlu0 0
    %3346 = vperm.xlu0 %3345, %v1663
    %v3347 = vpop.permute.xlu0 %3346
    %3350 = vset.pattern.permute.xlu0 0
    %3351 = vperm.xlu0 %3350, %v1664
    %v3352 = vpop.permute.xlu0 %3351
    %3355 = vset.pattern.permute.xlu0 0
    %3356 = vperm.xlu0 %3355, %v1665
    %v3357 = vpop.permute.xlu0 %3356
    %3360 = vset.pattern.permute.xlu0 0
    %3361 = vperm.xlu0 %3360, %v1666
    %v3362 = vpop.permute.xlu0 %3361
    %3365 = vset.pattern.permute.xlu0 0
    %3366 = vperm.xlu0 %3365, %v1667
    %v3367 = vpop.permute.xlu0 %3366
    %3370 = vset.pattern.permute.xlu0 0
    %3371 = vperm.xlu0 %3370, %v1668
    %v3372 = vpop.permute.xlu0 %3371
    %3375 = vset.pattern.permute.xlu0 0
    %3376 = vperm.xlu0 %3375, %v1669
    %v3377 = vpop.permute.xlu0 %3376
    %3380 = vset.pattern.permute.xlu0 0
    %3381 = vperm.xlu0 %3380, %v1670
    %v3382 = vpop.permute.xlu0 %3381
    %3385 = vset.pattern.permute.xlu0 0
    %3386 = vperm.xlu0 %3385, %v1671
    %v3387 = vpop.permute.xlu0 %3386
    %3390 = vset.pattern.permute.xlu0 0
    %3391 = vperm.xlu0 %3390, %v1672
    %v3392 = vpop.permute.xlu0 %3391
    %3395 = vset.pattern.permute.xlu0 0
    %3396 = vperm.xlu0 %3395, %v1673
    %v3397 = vpop.permute.xlu0 %3396
    %3400 = vset.pattern.permute.xlu0 0
    %3401 = vperm.xlu0 %3400, %v1674
    %v3402 = vpop.permute.xlu0 %3401
    %3405 = vset.pattern.permute.xlu0 0
    %3406 = vperm.xlu0 %3405, %v1675
    %v3407 = vpop.permute.xlu0 %3406
    %3410 = vset.pattern.permute.xlu0 0
    %3411 = vperm.xlu0 %3410, %v1676
    %v3412 = vpop.permute.xlu0 %3411
    %3415 = vset.pattern.permute.xlu0 0
    %3416 = vperm.xlu0 %3415, %v1677
    %v3417 = vpop.permute.xlu0 %3416
    %3420 = vset.pattern.permute.xlu0 0
    %3421 = vperm.xlu0 %3420, %v1678
    %v3422 = vpop.permute.xlu0 %3421
    %3425 = vset.pattern.permute.xlu0 0
    %3426 = vperm.xlu0 %3425, %v1679
    %v3427 = vpop.permute.xlu0 %3426
    %3430 = vset.pattern.permute.xlu0 0
    %3431 = vperm.xlu0 %3430, %v1680
    %v3432 = vpop.permute.xlu0 %3431
    %3435 = vset.pattern.permute.xlu0 0
    %3436 = vperm.xlu0 %3435, %v1681
    %v3437 = vpop.permute.xlu0 %3436
    %3440 = vset.pattern.permute.xlu0 0
    %3441 = vperm.xlu0 %3440, %v1682
    %v3442 = vpop.permute.xlu0 %3441
    %3445 = vset.pattern.permute.xlu0 0
    %3446 = vperm.xlu0 %3445, %v1683
    %v3447 = vpop.permute.xlu0 %3446
    %3450 = vset.pattern.permute.xlu0 0
    %3451 = vperm.xlu0 %3450, %v1684
    %v3452 = vpop.permute.xlu0 %3451
    %3455 = vset.pattern.permute.xlu0 0
    %3456 = vperm.xlu0 %3455, %v1685
    %v3457 = vpop.permute.xlu0 %3456
    %3460 = vset.pattern.permute.xlu0 0
    %3461 = vperm.xlu0 %3460, %v1686
    %v3462 = vpop.permute.xlu0 %3461
    %3465 = vset.pattern.permute.xlu0 0
    %3466 = vperm.xlu0 %3465, %v1687
    %v3467 = vpop.permute.xlu0 %3466
    %3470 = vset.pattern.permute.xlu0 0
    %3471 = vperm.xlu0 %3470, %v1688
    %v3472 = vpop.permute.xlu0 %3471
    %3475 = vset.pattern.permute.xlu0 0
    %3476 = vperm.xlu0 %3475, %v1689
    %v3477 = vpop.permute.xlu0 %3476
    %3480 = vset.pattern.permute.xlu0 0
    %3481 = vperm.xlu0 %3480, %v1690
    %v3482 = vpop.permute.xlu0 %3481
    %3485 = vset.pattern.permute.xlu0 0
    %3486 = vperm.xlu0 %3485, %v1691
    %v3487 = vpop.permute.xlu0 %3486
    %3490 = vset.pattern.permute.xlu0 0
    %3491 = vperm.xlu0 %3490, %v1692
    %v3492 = vpop.permute.xlu0 %3491
    %3495 = vset.pattern.permute.xlu0 0
    %3496 = vperm.xlu0 %3495, %v1693
    %v3497 = vpop.permute.xlu0 %3496
    %3500 = vset.pattern.permute.xlu0 0
    %3501 = vperm.xlu0 %3500, %v1694
    %v3502 = vpop.permute.xlu0 %3501
    %3505 = vset.pattern.permute.xlu0 0
    %3506 = vperm.xlu0 %3505, %v1695
    %v3507 = vpop.permute.xlu0 %3506
    %3510 = vset.pattern.permute.xlu0 0
    %3511 = vperm.xlu0 %3510, %v1696
    %v3512 = vpop.permute.xlu0 %3511
    %3515 = vset.pattern.permute.xlu0 0
    %3516 = vperm.xlu0 %3515, %v1697
    %v3517 = vpop.permute.xlu0 %3516
    %3520 = vset.pattern.permute.xlu0 0
    %3521 = vperm.xlu0 %3520, %v1698
    %v3522 = vpop.permute.xlu0 %3521
    %3525 = vset.pattern.permute.xlu0 0
    %3526 = vperm.xlu0 %3525, %v1699
    %v3527 = vpop.permute.xlu0 %3526
    %3530 = vset.pattern.permute.xlu0 0
    %3531 = vperm.xlu0 %3530, %v1700
    %v3532 = vpop.permute.xlu0 %3531
    %3535 = vset.pattern.permute.xlu0 0
    %3536 = vperm.xlu0 %3535, %v1701
    %v3537 = vpop.permute.xlu0 %3536
    %3540 = vset.pattern.permute.xlu0 0
    %3541 = vperm.xlu0 %3540, %v1702
    %v3542 = vpop.permute.xlu0 %3541
    %3545 = vset.pattern.permute.xlu0 0
    %3546 = vperm.xlu0 %3545, %v1703
    %v3547 = vpop.permute.xlu0 %3546
    %3550 = vset.pattern.permute.xlu0 0
    %3551 = vperm.xlu0 %3550, %v1704
    %v3552 = vpop.permute.xlu0 %3551
    %3555 = vset.pattern.permute.xlu0 0
    %3556 = vperm.xlu0 %3555, %v1705
    %v3557 = vpop.permute.xlu0 %3556
    %3560 = vset.pattern.permute.xlu0 0
    %3561 = vperm.xlu0 %3560, %v1706
    %v3562 = vpop.permute.xlu0 %3561
    %3565 = vset.pattern.permute.xlu0 0
    %3566 = vperm.xlu0 %3565, %v1707
    %v3567 = vpop.permute.xlu0 %3566
    %v3569 = vperm.slane %v1965, 3
    %v3570 = vmul.f32 %v3252, %v3569
    %v3571 = vmul.f32 %v3257, %v3569
    %v3572 = vmul.f32 %v3262, %v3569
    %v3573 = vmul.f32 %v3267, %v3569
    %v3574 = vmul.f32 %v3272, %v3569
    %v3575 = vmul.f32 %v3277, %v3569
    %v3576 = vmul.f32 %v3282, %v3569
    %v3577 = vmul.f32 %v3287, %v3569
    %v3578 = vmul.f32 %v3292, %v3569
    %v3579 = vmul.f32 %v3297, %v3569
    %v3580 = vmul.f32 %v3302, %v3569
    %v3581 = vmul.f32 %v3307, %v3569
    %v3582 = vmul.f32 %v3312, %v3569
    %v3583 = vmul.f32 %v3317, %v3569
    %v3584 = vmul.f32 %v3322, %v3569
    %v3585 = vmul.f32 %v3327, %v3569
    %v3586 = vmul.f32 %v3332, %v3569
    %v3587 = vmul.f32 %v3337, %v3569
    %v3588 = vmul.f32 %v3342, %v3569
    %v3589 = vmul.f32 %v3347, %v3569
    %v3590 = vmul.f32 %v3352, %v3569
    %v3591 = vmul.f32 %v3357, %v3569
    %v3592 = vmul.f32 %v3362, %v3569
    %v3593 = vmul.f32 %v3367, %v3569
    %v3594 = vmul.f32 %v3372, %v3569
    %v3595 = vmul.f32 %v3377, %v3569
    %v3596 = vmul.f32 %v3382, %v3569
    %v3597 = vmul.f32 %v3387, %v3569
    %v3598 = vmul.f32 %v3392, %v3569
    %v3599 = vmul.f32 %v3397, %v3569
    %v3600 = vmul.f32 %v3402, %v3569
    %v3601 = vmul.f32 %v3407, %v3569
    %v3602 = vmul.f32 %v3412, %v3569
    %v3603 = vmul.f32 %v3417, %v3569
    %v3604 = vmul.f32 %v3422, %v3569
    %v3605 = vmul.f32 %v3427, %v3569
    %v3606 = vmul.f32 %v3432, %v3569
    %v3607 = vmul.f32 %v3437, %v3569
    %v3608 = vmul.f32 %v3442, %v3569
    %v3609 = vmul.f32 %v3447, %v3569
    %v3610 = vmul.f32 %v3452, %v3569
    %v3611 = vmul.f32 %v3457, %v3569
    %v3612 = vmul.f32 %v3462, %v3569
    %v3613 = vmul.f32 %v3467, %v3569
    %v3614 = vmul.f32 %v3472, %v3569
    %v3615 = vmul.f32 %v3477, %v3569
    %v3616 = vmul.f32 %v3482, %v3569
    %v3617 = vmul.f32 %v3487, %v3569
    %v3618 = vmul.f32 %v3492, %v3569
    %v3619 = vmul.f32 %v3497, %v3569
    %v3620 = vmul.f32 %v3502, %v3569
    %v3621 = vmul.f32 %v3507, %v3569
    %v3622 = vmul.f32 %v3512, %v3569
    %v3623 = vmul.f32 %v3517, %v3569
    %v3624 = vmul.f32 %v3522, %v3569
    %v3625 = vmul.f32 %v3527, %v3569
    %v3626 = vmul.f32 %v3532, %v3569
    %v3627 = vmul.f32 %v3537, %v3569
    %v3628 = vmul.f32 %v3542, %v3569
    %v3629 = vmul.f32 %v3547, %v3569
    %v3630 = vmul.f32 %v3552, %v3569
    %v3631 = vmul.f32 %v3557, %v3569
    %v3632 = vmul.f32 %v3562, %v3569
    %v3633 = vmul.f32 %v3567, %v3569
    %v3634 = vadd.f32 %v3185, %v3570
    %v3635 = vadd.f32 %v3186, %v3571
    %v3636 = vadd.f32 %v3187, %v3572
    %v3637 = vadd.f32 %v3188, %v3573
    %v3638 = vadd.f32 %v3189, %v3574
    %v3639 = vadd.f32 %v3190, %v3575
    %v3640 = vadd.f32 %v3191, %v3576
    %v3641 = vadd.f32 %v3192, %v3577
    %v3642 = vadd.f32 %v3193, %v3578
    %v3643 = vadd.f32 %v3194, %v3579
    %v3644 = vadd.f32 %v3195, %v3580
    %v3645 = vadd.f32 %v3196, %v3581
    %v3646 = vadd.f32 %v3197, %v3582
    %v3647 = vadd.f32 %v3198, %v3583
    %v3648 = vadd.f32 %v3199, %v3584
    %v3649 = vadd.f32 %v3200, %v3585
    %v3650 = vadd.f32 %v3201, %v3586
    %v3651 = vadd.f32 %v3202, %v3587
    %v3652 = vadd.f32 %v3203, %v3588
    %v3653 = vadd.f32 %v3204, %v3589
    %v3654 = vadd.f32 %v3205, %v3590
    %v3655 = vadd.f32 %v3206, %v3591
    %v3656 = vadd.f32 %v3207, %v3592
    %v3657 = vadd.f32 %v3208, %v3593
    %v3658 = vadd.f32 %v3209, %v3594
    %v3659 = vadd.f32 %v3210, %v3595
    %v3660 = vadd.f32 %v3211, %v3596
    %v3661 = vadd.f32 %v3212, %v3597
    %v3662 = vadd.f32 %v3213, %v3598
    %v3663 = vadd.f32 %v3214, %v3599
    %v3664 = vadd.f32 %v3215, %v3600
    %v3665 = vadd.f32 %v3216, %v3601
    %v3666 = vadd.f32 %v3217, %v3602
    %v3667 = vadd.f32 %v3218, %v3603
    %v3668 = vadd.f32 %v3219, %v3604
    %v3669 = vadd.f32 %v3220, %v3605
    %v3670 = vadd.f32 %v3221, %v3606
    %v3671 = vadd.f32 %v3222, %v3607
    %v3672 = vadd.f32 %v3223, %v3608
    %v3673 = vadd.f32 %v3224, %v3609
    %v3674 = vadd.f32 %v3225, %v3610
    %v3675 = vadd.f32 %v3226, %v3611
    %v3676 = vadd.f32 %v3227, %v3612
    %v3677 = vadd.f32 %v3228, %v3613
    %v3678 = vadd.f32 %v3229, %v3614
    %v3679 = vadd.f32 %v3230, %v3615
    %v3680 = vadd.f32 %v3231, %v3616
    %v3681 = vadd.f32 %v3232, %v3617
    %v3682 = vadd.f32 %v3233, %v3618
    %v3683 = vadd.f32 %v3234, %v3619
    %v3684 = vadd.f32 %v3235, %v3620
    %v3685 = vadd.f32 %v3236, %v3621
    %v3686 = vadd.f32 %v3237, %v3622
    %v3687 = vadd.f32 %v3238, %v3623
    %v3688 = vadd.f32 %v3239, %v3624
    %v3689 = vadd.f32 %v3240, %v3625
    %v3690 = vadd.f32 %v3241, %v3626
    %v3691 = vadd.f32 %v3242, %v3627
    %v3692 = vadd.f32 %v3243, %v3628
    %v3693 = vadd.f32 %v3244, %v3629
    %v3694 = vadd.f32 %v3245, %v3630
    %v3695 = vadd.f32 %v3246, %v3631
    %v3696 = vadd.f32 %v3247, %v3632
    %v3697 = vadd.f32 %v3248, %v3633
    %3699 = vset.pattern.permute.xlu0 0
    %3700 = vperm.xlu0 %3699, %v1901
    %v3701 = vpop.permute.xlu0 %3700
    %3704 = vset.pattern.permute.xlu0 0
    %3705 = vperm.xlu0 %3704, %v1902
    %v3706 = vpop.permute.xlu0 %3705
    %3709 = vset.pattern.permute.xlu0 0
    %3710 = vperm.xlu0 %3709, %v1903
    %v3711 = vpop.permute.xlu0 %3710
    %3714 = vset.pattern.permute.xlu0 0
    %3715 = vperm.xlu0 %3714, %v1904
    %v3716 = vpop.permute.xlu0 %3715
    %3719 = vset.pattern.permute.xlu0 0
    %3720 = vperm.xlu0 %3719, %v1905
    %v3721 = vpop.permute.xlu0 %3720
    %3724 = vset.pattern.permute.xlu0 0
    %3725 = vperm.xlu0 %3724, %v1906
    %v3726 = vpop.permute.xlu0 %3725
    %3729 = vset.pattern.permute.xlu0 0
    %3730 = vperm.xlu0 %3729, %v1907
    %v3731 = vpop.permute.xlu0 %3730
    %3734 = vset.pattern.permute.xlu0 0
    %3735 = vperm.xlu0 %3734, %v1908
    %v3736 = vpop.permute.xlu0 %3735
    %3739 = vset.pattern.permute.xlu0 0
    %3740 = vperm.xlu0 %3739, %v1909
    %v3741 = vpop.permute.xlu0 %3740
    %3744 = vset.pattern.permute.xlu0 0
    %3745 = vperm.xlu0 %3744, %v1910
    %v3746 = vpop.permute.xlu0 %3745
    %3749 = vset.pattern.permute.xlu0 0
    %3750 = vperm.xlu0 %3749, %v1911
    %v3751 = vpop.permute.xlu0 %3750
    %3754 = vset.pattern.permute.xlu0 0
    %3755 = vperm.xlu0 %3754, %v1912
    %v3756 = vpop.permute.xlu0 %3755
    %3759 = vset.pattern.permute.xlu0 0
    %3760 = vperm.xlu0 %3759, %v1913
    %v3761 = vpop.permute.xlu0 %3760
    %3764 = vset.pattern.permute.xlu0 0
    %3765 = vperm.xlu0 %3764, %v1914
    %v3766 = vpop.permute.xlu0 %3765
    %3769 = vset.pattern.permute.xlu0 0
    %3770 = vperm.xlu0 %3769, %v1915
    %v3771 = vpop.permute.xlu0 %3770
    %3774 = vset.pattern.permute.xlu0 0
    %3775 = vperm.xlu0 %3774, %v1916
    %v3776 = vpop.permute.xlu0 %3775
    %3779 = vset.pattern.permute.xlu0 0
    %3780 = vperm.xlu0 %3779, %v1917
    %v3781 = vpop.permute.xlu0 %3780
    %3784 = vset.pattern.permute.xlu0 0
    %3785 = vperm.xlu0 %3784, %v1918
    %v3786 = vpop.permute.xlu0 %3785
    %3789 = vset.pattern.permute.xlu0 0
    %3790 = vperm.xlu0 %3789, %v1919
    %v3791 = vpop.permute.xlu0 %3790
    %3794 = vset.pattern.permute.xlu0 0
    %3795 = vperm.xlu0 %3794, %v1920
    %v3796 = vpop.permute.xlu0 %3795
    %3799 = vset.pattern.permute.xlu0 0
    %3800 = vperm.xlu0 %3799, %v1921
    %v3801 = vpop.permute.xlu0 %3800
    %3804 = vset.pattern.permute.xlu0 0
    %3805 = vperm.xlu0 %3804, %v1922
    %v3806 = vpop.permute.xlu0 %3805
    %3809 = vset.pattern.permute.xlu0 0
    %3810 = vperm.xlu0 %3809, %v1923
    %v3811 = vpop.permute.xlu0 %3810
    %3814 = vset.pattern.permute.xlu0 0
    %3815 = vperm.xlu0 %3814, %v1924
    %v3816 = vpop.permute.xlu0 %3815
    %3819 = vset.pattern.permute.xlu0 0
    %3820 = vperm.xlu0 %3819, %v1925
    %v3821 = vpop.permute.xlu0 %3820
    %3824 = vset.pattern.permute.xlu0 0
    %3825 = vperm.xlu0 %3824, %v1926
    %v3826 = vpop.permute.xlu0 %3825
    %3829 = vset.pattern.permute.xlu0 0
    %3830 = vperm.xlu0 %3829, %v1927
    %v3831 = vpop.permute.xlu0 %3830
    %3834 = vset.pattern.permute.xlu0 0
    %3835 = vperm.xlu0 %3834, %v1928
    %v3836 = vpop.permute.xlu0 %3835
    %3839 = vset.pattern.permute.xlu0 0
    %3840 = vperm.xlu0 %3839, %v1929
    %v3841 = vpop.permute.xlu0 %3840
    %3844 = vset.pattern.permute.xlu0 0
    %3845 = vperm.xlu0 %3844, %v1930
    %v3846 = vpop.permute.xlu0 %3845
    %3849 = vset.pattern.permute.xlu0 0
    %3850 = vperm.xlu0 %3849, %v1931
    %v3851 = vpop.permute.xlu0 %3850
    %3854 = vset.pattern.permute.xlu0 0
    %3855 = vperm.xlu0 %3854, %v1932
    %v3856 = vpop.permute.xlu0 %3855
    %3859 = vset.pattern.permute.xlu0 0
    %3860 = vperm.xlu0 %3859, %v1933
    %v3861 = vpop.permute.xlu0 %3860
    %3864 = vset.pattern.permute.xlu0 0
    %3865 = vperm.xlu0 %3864, %v1934
    %v3866 = vpop.permute.xlu0 %3865
    %3869 = vset.pattern.permute.xlu0 0
    %3870 = vperm.xlu0 %3869, %v1935
    %v3871 = vpop.permute.xlu0 %3870
    %3874 = vset.pattern.permute.xlu0 0
    %3875 = vperm.xlu0 %3874, %v1936
    %v3876 = vpop.permute.xlu0 %3875
    %3879 = vset.pattern.permute.xlu0 0
    %3880 = vperm.xlu0 %3879, %v1937
    %v3881 = vpop.permute.xlu0 %3880
    %3884 = vset.pattern.permute.xlu0 0
    %3885 = vperm.xlu0 %3884, %v1938
    %v3886 = vpop.permute.xlu0 %3885
    %3889 = vset.pattern.permute.xlu0 0
    %3890 = vperm.xlu0 %3889, %v1939
    %v3891 = vpop.permute.xlu0 %3890
    %3894 = vset.pattern.permute.xlu0 0
    %3895 = vperm.xlu0 %3894, %v1940
    %v3896 = vpop.permute.xlu0 %3895
    %3899 = vset.pattern.permute.xlu0 0
    %3900 = vperm.xlu0 %3899, %v1941
    %v3901 = vpop.permute.xlu0 %3900
    %3904 = vset.pattern.permute.xlu0 0
    %3905 = vperm.xlu0 %3904, %v1942
    %v3906 = vpop.permute.xlu0 %3905
    %3909 = vset.pattern.permute.xlu0 0
    %3910 = vperm.xlu0 %3909, %v1943
    %v3911 = vpop.permute.xlu0 %3910
    %3914 = vset.pattern.permute.xlu0 0
    %3915 = vperm.xlu0 %3914, %v1944
    %v3916 = vpop.permute.xlu0 %3915
    %3919 = vset.pattern.permute.xlu0 0
    %3920 = vperm.xlu0 %3919, %v1945
    %v3921 = vpop.permute.xlu0 %3920
    %3924 = vset.pattern.permute.xlu0 0
    %3925 = vperm.xlu0 %3924, %v1946
    %v3926 = vpop.permute.xlu0 %3925
    %3929 = vset.pattern.permute.xlu0 0
    %3930 = vperm.xlu0 %3929, %v1947
    %v3931 = vpop.permute.xlu0 %3930
    %3934 = vset.pattern.permute.xlu0 0
    %3935 = vperm.xlu0 %3934, %v1948
    %v3936 = vpop.permute.xlu0 %3935
    %3939 = vset.pattern.permute.xlu0 0
    %3940 = vperm.xlu0 %3939, %v1949
    %v3941 = vpop.permute.xlu0 %3940
    %3944 = vset.pattern.permute.xlu0 0
    %3945 = vperm.xlu0 %3944, %v1950
    %v3946 = vpop.permute.xlu0 %3945
    %3949 = vset.pattern.permute.xlu0 0
    %3950 = vperm.xlu0 %3949, %v1951
    %v3951 = vpop.permute.xlu0 %3950
    %3954 = vset.pattern.permute.xlu0 0
    %3955 = vperm.xlu0 %3954, %v1952
    %v3956 = vpop.permute.xlu0 %3955
    %3959 = vset.pattern.permute.xlu0 0
    %3960 = vperm.xlu0 %3959, %v1953
    %v3961 = vpop.permute.xlu0 %3960
    %3964 = vset.pattern.permute.xlu0 0
    %3965 = vperm.xlu0 %3964, %v1954
    %v3966 = vpop.permute.xlu0 %3965
    %3969 = vset.pattern.permute.xlu0 0
    %3970 = vperm.xlu0 %3969, %v1955
    %v3971 = vpop.permute.xlu0 %3970
    %3974 = vset.pattern.permute.xlu0 0
    %3975 = vperm.xlu0 %3974, %v1956
    %v3976 = vpop.permute.xlu0 %3975
    %3979 = vset.pattern.permute.xlu0 0
    %3980 = vperm.xlu0 %3979, %v1957
    %v3981 = vpop.permute.xlu0 %3980
    %3984 = vset.pattern.permute.xlu0 0
    %3985 = vperm.xlu0 %3984, %v1958
    %v3986 = vpop.permute.xlu0 %3985
    %3989 = vset.pattern.permute.xlu0 0
    %3990 = vperm.xlu0 %3989, %v1959
    %v3991 = vpop.permute.xlu0 %3990
    %3994 = vset.pattern.permute.xlu0 0
    %3995 = vperm.xlu0 %3994, %v1960
    %v3996 = vpop.permute.xlu0 %3995
    %3999 = vset.pattern.permute.xlu0 0
    %4000 = vperm.xlu0 %3999, %v1961
    %v4001 = vpop.permute.xlu0 %4000
    %4004 = vset.pattern.permute.xlu0 0
    %4005 = vperm.xlu0 %4004, %v1962
    %v4006 = vpop.permute.xlu0 %4005
    %4009 = vset.pattern.permute.xlu0 0
    %4010 = vperm.xlu0 %4009, %v1963
    %v4011 = vpop.permute.xlu0 %4010
    %4014 = vset.pattern.permute.xlu0 0
    %4015 = vperm.xlu0 %4014, %v1964
    %v4016 = vpop.permute.xlu0 %4015
    %v4018 = vperm.slane %v1965, 4
    %v4019 = vmul.f32 %v3701, %v4018
    %v4020 = vmul.f32 %v3706, %v4018
    %v4021 = vmul.f32 %v3711, %v4018
    %v4022 = vmul.f32 %v3716, %v4018
    %v4023 = vmul.f32 %v3721, %v4018
    %v4024 = vmul.f32 %v3726, %v4018
    %v4025 = vmul.f32 %v3731, %v4018
    %v4026 = vmul.f32 %v3736, %v4018
    %v4027 = vmul.f32 %v3741, %v4018
    %v4028 = vmul.f32 %v3746, %v4018
    %v4029 = vmul.f32 %v3751, %v4018
    %v4030 = vmul.f32 %v3756, %v4018
    %v4031 = vmul.f32 %v3761, %v4018
    %v4032 = vmul.f32 %v3766, %v4018
    %v4033 = vmul.f32 %v3771, %v4018
    %v4034 = vmul.f32 %v3776, %v4018
    %v4035 = vmul.f32 %v3781, %v4018
    %v4036 = vmul.f32 %v3786, %v4018
    %v4037 = vmul.f32 %v3791, %v4018
    %v4038 = vmul.f32 %v3796, %v4018
    %v4039 = vmul.f32 %v3801, %v4018
    %v4040 = vmul.f32 %v3806, %v4018
    %v4041 = vmul.f32 %v3811, %v4018
    %v4042 = vmul.f32 %v3816, %v4018
    %v4043 = vmul.f32 %v3821, %v4018
    %v4044 = vmul.f32 %v3826, %v4018
    %v4045 = vmul.f32 %v3831, %v4018
    %v4046 = vmul.f32 %v3836, %v4018
    %v4047 = vmul.f32 %v3841, %v4018
    %v4048 = vmul.f32 %v3846, %v4018
    %v4049 = vmul.f32 %v3851, %v4018
    %v4050 = vmul.f32 %v3856, %v4018
    %v4051 = vmul.f32 %v3861, %v4018
    %v4052 = vmul.f32 %v3866, %v4018
    %v4053 = vmul.f32 %v3871, %v4018
    %v4054 = vmul.f32 %v3876, %v4018
    %v4055 = vmul.f32 %v3881, %v4018
    %v4056 = vmul.f32 %v3886, %v4018
    %v4057 = vmul.f32 %v3891, %v4018
    %v4058 = vmul.f32 %v3896, %v4018
    %v4059 = vmul.f32 %v3901, %v4018
    %v4060 = vmul.f32 %v3906, %v4018
    %v4061 = vmul.f32 %v3911, %v4018
    %v4062 = vmul.f32 %v3916, %v4018
    %v4063 = vmul.f32 %v3921, %v4018
    %v4064 = vmul.f32 %v3926, %v4018
    %v4065 = vmul.f32 %v3931, %v4018
    %v4066 = vmul.f32 %v3936, %v4018
    %v4067 = vmul.f32 %v3941, %v4018
    %v4068 = vmul.f32 %v3946, %v4018
    %v4069 = vmul.f32 %v3951, %v4018
    %v4070 = vmul.f32 %v3956, %v4018
    %v4071 = vmul.f32 %v3961, %v4018
    %v4072 = vmul.f32 %v3966, %v4018
    %v4073 = vmul.f32 %v3971, %v4018
    %v4074 = vmul.f32 %v3976, %v4018
    %v4075 = vmul.f32 %v3981, %v4018
    %v4076 = vmul.f32 %v3986, %v4018
    %v4077 = vmul.f32 %v3991, %v4018
    %v4078 = vmul.f32 %v3996, %v4018
    %v4079 = vmul.f32 %v4001, %v4018
    %v4080 = vmul.f32 %v4006, %v4018
    %v4081 = vmul.f32 %v4011, %v4018
    %v4082 = vmul.f32 %v4016, %v4018
    %v4083 = vadd.f32 %v3634, %v4019
    %v4084 = vadd.f32 %v3635, %v4020
    %v4085 = vadd.f32 %v3636, %v4021
    %v4086 = vadd.f32 %v3637, %v4022
    %v4087 = vadd.f32 %v3638, %v4023
    %v4088 = vadd.f32 %v3639, %v4024
    %v4089 = vadd.f32 %v3640, %v4025
    %v4090 = vadd.f32 %v3641, %v4026
    %v4091 = vadd.f32 %v3642, %v4027
    %v4092 = vadd.f32 %v3643, %v4028
    %v4093 = vadd.f32 %v3644, %v4029
    %v4094 = vadd.f32 %v3645, %v4030
    %v4095 = vadd.f32 %v3646, %v4031
    %v4096 = vadd.f32 %v3647, %v4032
    %v4097 = vadd.f32 %v3648, %v4033
    %v4098 = vadd.f32 %v3649, %v4034
    %v4099 = vadd.f32 %v3650, %v4035
    %v4100 = vadd.f32 %v3651, %v4036
    %v4101 = vadd.f32 %v3652, %v4037
    %v4102 = vadd.f32 %v3653, %v4038
    %v4103 = vadd.f32 %v3654, %v4039
    %v4104 = vadd.f32 %v3655, %v4040
    %v4105 = vadd.f32 %v3656, %v4041
    %v4106 = vadd.f32 %v3657, %v4042
    %v4107 = vadd.f32 %v3658, %v4043
    %v4108 = vadd.f32 %v3659, %v4044
    %v4109 = vadd.f32 %v3660, %v4045
    %v4110 = vadd.f32 %v3661, %v4046
    %v4111 = vadd.f32 %v3662, %v4047
    %v4112 = vadd.f32 %v3663, %v4048
    %v4113 = vadd.f32 %v3664, %v4049
    %v4114 = vadd.f32 %v3665, %v4050
    %v4115 = vadd.f32 %v3666, %v4051
    %v4116 = vadd.f32 %v3667, %v4052
    %v4117 = vadd.f32 %v3668, %v4053
    %v4118 = vadd.f32 %v3669, %v4054
    %v4119 = vadd.f32 %v3670, %v4055
    %v4120 = vadd.f32 %v3671, %v4056
    %v4121 = vadd.f32 %v3672, %v4057
    %v4122 = vadd.f32 %v3673, %v4058
    %v4123 = vadd.f32 %v3674, %v4059
    %v4124 = vadd.f32 %v3675, %v4060
    %v4125 = vadd.f32 %v3676, %v4061
    %v4126 = vadd.f32 %v3677, %v4062
    %v4127 = vadd.f32 %v3678, %v4063
    %v4128 = vadd.f32 %v3679, %v4064
    %v4129 = vadd.f32 %v3680, %v4065
    %v4130 = vadd.f32 %v3681, %v4066
    %v4131 = vadd.f32 %v3682, %v4067
    %v4132 = vadd.f32 %v3683, %v4068
    %v4133 = vadd.f32 %v3684, %v4069
    %v4134 = vadd.f32 %v3685, %v4070
    %v4135 = vadd.f32 %v3686, %v4071
    %v4136 = vadd.f32 %v3687, %v4072
    %v4137 = vadd.f32 %v3688, %v4073
    %v4138 = vadd.f32 %v3689, %v4074
    %v4139 = vadd.f32 %v3690, %v4075
    %v4140 = vadd.f32 %v3691, %v4076
    %v4141 = vadd.f32 %v3692, %v4077
    %v4142 = vadd.f32 %v3693, %v4078
    %v4143 = vadd.f32 %v3694, %v4079
    %v4144 = vadd.f32 %v3695, %v4080
    %v4145 = vadd.f32 %v3696, %v4081
    %v4146 = vadd.f32 %v3697, %v4082
    %v4147 = vld [vmem:[%s2] sm:$0x1]
    %v4149 = vperm.slane %v4147, 0
    %v4151 = vadd.f32 %v4083, %v4149
    %v4152 = vadd.f32 %v4084, %v4149
    %v4153 = vadd.f32 %v4085, %v4149
    %v4154 = vadd.f32 %v4086, %v4149
    %v4155 = vadd.f32 %v4087, %v4149
    %v4156 = vadd.f32 %v4088, %v4149
    %v4157 = vadd.f32 %v4089, %v4149
    %v4158 = vadd.f32 %v4090, %v4149
    %v4159 = vadd.f32 %v4091, %v4149
    %v4160 = vadd.f32 %v4092, %v4149
    %v4161 = vadd.f32 %v4093, %v4149
    %v4162 = vadd.f32 %v4094, %v4149
    %v4163 = vadd.f32 %v4095, %v4149
    %v4164 = vadd.f32 %v4096, %v4149
    %v4165 = vadd.f32 %v4097, %v4149
    %v4166 = vadd.f32 %v4098, %v4149
    %v4167 = vadd.f32 %v4099, %v4149
    %v4168 = vadd.f32 %v4100, %v4149
    %v4169 = vadd.f32 %v4101, %v4149
    %v4170 = vadd.f32 %v4102, %v4149
    %v4171 = vadd.f32 %v4103, %v4149
    %v4172 = vadd.f32 %v4104, %v4149
    %v4173 = vadd.f32 %v4105, %v4149
    %v4174 = vadd.f32 %v4106, %v4149
    %v4175 = vadd.f32 %v4107, %v4149
    %v4176 = vadd.f32 %v4108, %v4149
    %v4177 = vadd.f32 %v4109, %v4149
    %v4178 = vadd.f32 %v4110, %v4149
    %v4179 = vadd.f32 %v4111, %v4149
    %v4180 = vadd.f32 %v4112, %v4149
    %v4181 = vadd.f32 %v4113, %v4149
    %v4182 = vadd.f32 %v4114, %v4149
    %v4183 = vadd.f32 %v4115, %v4149
    %v4184 = vadd.f32 %v4116, %v4149
    %v4185 = vadd.f32 %v4117, %v4149
    %v4186 = vadd.f32 %v4118, %v4149
    %v4187 = vadd.f32 %v4119, %v4149
    %v4188 = vadd.f32 %v4120, %v4149
    %v4189 = vadd.f32 %v4121, %v4149
    %v4190 = vadd.f32 %v4122, %v4149
    %v4191 = vadd.f32 %v4123, %v4149
    %v4192 = vadd.f32 %v4124, %v4149
    %v4193 = vadd.f32 %v4125, %v4149
    %v4194 = vadd.f32 %v4126, %v4149
    %v4195 = vadd.f32 %v4127, %v4149
    %v4196 = vadd.f32 %v4128, %v4149
    %v4197 = vadd.f32 %v4129, %v4149
    %v4198 = vadd.f32 %v4130, %v4149
    %v4199 = vadd.f32 %v4131, %v4149
    %v4200 = vadd.f32 %v4132, %v4149
    %v4201 = vadd.f32 %v4133, %v4149
    %v4202 = vadd.f32 %v4134, %v4149
    %v4203 = vadd.f32 %v4135, %v4149
    %v4204 = vadd.f32 %v4136, %v4149
    %v4205 = vadd.f32 %v4137, %v4149
    %v4206 = vadd.f32 %v4138, %v4149
    %v4207 = vadd.f32 %v4139, %v4149
    %v4208 = vadd.f32 %v4140, %v4149
    %v4209 = vadd.f32 %v4141, %v4149
    %v4210 = vadd.f32 %v4142, %v4149
    %v4211 = vadd.f32 %v4143, %v4149
    %v4212 = vadd.f32 %v4144, %v4149
    %v4213 = vadd.f32 %v4145, %v4149
    %v4214 = vadd.f32 %v4146, %v4149
    %v4215 = vmax.f32 %v4151, 0.0
    %v4216 = vmax.f32 %v4152, 0.0
    %v4217 = vmax.f32 %v4153, 0.0
    %v4218 = vmax.f32 %v4154, 0.0
    %v4219 = vmax.f32 %v4155, 0.0
    %v4220 = vmax.f32 %v4156, 0.0
    %v4221 = vmax.f32 %v4157, 0.0
    %v4222 = vmax.f32 %v4158, 0.0
    %v4223 = vmax.f32 %v4159, 0.0
    %v4224 = vmax.f32 %v4160, 0.0
    %v4225 = vmax.f32 %v4161, 0.0
    %v4226 = vmax.f32 %v4162, 0.0
    %v4227 = vmax.f32 %v4163, 0.0
    %v4228 = vmax.f32 %v4164, 0.0
    %v4229 = vmax.f32 %v4165, 0.0
    %v4230 = vmax.f32 %v4166, 0.0
    %v4231 = vmax.f32 %v4167, 0.0
    %v4232 = vmax.f32 %v4168, 0.0
    %v4233 = vmax.f32 %v4169, 0.0
    %v4234 = vmax.f32 %v4170, 0.0
    %v4235 = vmax.f32 %v4171, 0.0
    %v4236 = vmax.f32 %v4172, 0.0
    %v4237 = vmax.f32 %v4173, 0.0
    %v4238 = vmax.f32 %v4174, 0.0
    %v4239 = vmax.f32 %v4175, 0.0
    %v4240 = vmax.f32 %v4176, 0.0
    %v4241 = vmax.f32 %v4177, 0.0
    %v4242 = vmax.f32 %v4178, 0.0
    %v4243 = vmax.f32 %v4179, 0.0
    %v4244 = vmax.f32 %v4180, 0.0
    %v4245 = vmax.f32 %v4181, 0.0
    %v4246 = vmax.f32 %v4182, 0.0
    %v4247 = vmax.f32 %v4183, 0.0
    %v4248 = vmax.f32 %v4184, 0.0
    %v4249 = vmax.f32 %v4185, 0.0
    %v4250 = vmax.f32 %v4186, 0.0
    %v4251 = vmax.f32 %v4187, 0.0
    %v4252 = vmax.f32 %v4188, 0.0
    %v4253 = vmax.f32 %v4189, 0.0
    %v4254 = vmax.f32 %v4190, 0.0
    %v4255 = vmax.f32 %v4191, 0.0
    %v4256 = vmax.f32 %v4192, 0.0
    %v4257 = vmax.f32 %v4193, 0.0
    %v4258 = vmax.f32 %v4194, 0.0
    %v4259 = vmax.f32 %v4195, 0.0
    %v4260 = vmax.f32 %v4196, 0.0
    %v4261 = vmax.f32 %v4197, 0.0
    %v4262 = vmax.f32 %v4198, 0.0
    %v4263 = vmax.f32 %v4199, 0.0
    %v4264 = vmax.f32 %v4200, 0.0
    %v4265 = vmax.f32 %v4201, 0.0
    %v4266 = vmax.f32 %v4202, 0.0
    %v4267 = vmax.f32 %v4203, 0.0
    %v4268 = vmax.f32 %v4204, 0.0
    %v4269 = vmax.f32 %v4205, 0.0
    %v4270 = vmax.f32 %v4206, 0.0
    %v4271 = vmax.f32 %v4207, 0.0
    %v4272 = vmax.f32 %v4208, 0.0
    %v4273 = vmax.f32 %v4209, 0.0
    %v4274 = vmax.f32 %v4210, 0.0
    %v4275 = vmax.f32 %v4211, 0.0
    %v4276 = vmax.f32 %v4212, 0.0
    %v4277 = vmax.f32 %v4213, 0.0
    %v4278 = vmax.f32 %v4214, 0.0
    %vm4279 = vcmp.eq.s32.totalorder %v873, 0
    %vm4280 = vcmp.eq.s32.totalorder %v874, 0
    %vm4281 = vcmp.eq.s32.totalorder %v875, 0
    %vm4282 = vcmp.eq.s32.totalorder %v876, 0
    %vm4283 = vcmp.eq.s32.totalorder %v877, 0
    %vm4284 = vcmp.eq.s32.totalorder %v878, 0
    %vm4285 = vcmp.eq.s32.totalorder %v879, 0
    %vm4286 = vcmp.eq.s32.totalorder %v880, 0
    %vm4287 = vcmp.eq.s32.totalorder %v881, 0
    %vm4288 = vcmp.eq.s32.totalorder %v882, 0
    %vm4289 = vcmp.eq.s32.totalorder %v883, 0
    %vm4290 = vcmp.eq.s32.totalorder %v884, 0
    %vm4291 = vcmp.eq.s32.totalorder %v885, 0
    %vm4292 = vcmp.eq.s32.totalorder %v886, 0
    %vm4293 = vcmp.eq.s32.totalorder %v887, 0
    %vm4294 = vcmp.eq.s32.totalorder %v888, 0
    %vm4295 = vcmp.eq.s32.totalorder %v889, 0
    %vm4296 = vcmp.eq.s32.totalorder %v890, 0
    %vm4297 = vcmp.eq.s32.totalorder %v891, 0
    %vm4298 = vcmp.eq.s32.totalorder %v892, 0
    %vm4299 = vcmp.eq.s32.totalorder %v893, 0
    %vm4300 = vcmp.eq.s32.totalorder %v894, 0
    %vm4301 = vcmp.eq.s32.totalorder %v895, 0
    %vm4302 = vcmp.eq.s32.totalorder %v896, 0
    %vm4303 = vcmp.eq.s32.totalorder %v897, 0
    %vm4304 = vcmp.eq.s32.totalorder %v898, 0
    %vm4305 = vcmp.eq.s32.totalorder %v899, 0
    %vm4306 = vcmp.eq.s32.totalorder %v900, 0
    %vm4307 = vcmp.eq.s32.totalorder %v901, 0
    %vm4308 = vcmp.eq.s32.totalorder %v902, 0
    %vm4309 = vcmp.eq.s32.totalorder %v903, 0
    %vm4310 = vcmp.eq.s32.totalorder %v904, 0
    %vm4311 = vcmp.eq.s32.totalorder %v905, 0
    %vm4312 = vcmp.eq.s32.totalorder %v906, 0
    %vm4313 = vcmp.eq.s32.totalorder %v907, 0
    %vm4314 = vcmp.eq.s32.totalorder %v908, 0
    %vm4315 = vcmp.eq.s32.totalorder %v909, 0
    %vm4316 = vcmp.eq.s32.totalorder %v910, 0
    %vm4317 = vcmp.eq.s32.totalorder %v911, 0
    %vm4318 = vcmp.eq.s32.totalorder %v912, 0
    %vm4319 = vcmp.eq.s32.totalorder %v913, 0
    %vm4320 = vcmp.eq.s32.totalorder %v914, 0
    %vm4321 = vcmp.eq.s32.totalorder %v915, 0
    %vm4322 = vcmp.eq.s32.totalorder %v916, 0
    %vm4323 = vcmp.eq.s32.totalorder %v917, 0
    %vm4324 = vcmp.eq.s32.totalorder %v918, 0
    %vm4325 = vcmp.eq.s32.totalorder %v919, 0
    %vm4326 = vcmp.eq.s32.totalorder %v920, 0
    %vm4327 = vcmp.eq.s32.totalorder %v921, 0
    %vm4328 = vcmp.eq.s32.totalorder %v922, 0
    %vm4329 = vcmp.eq.s32.totalorder %v923, 0
    %vm4330 = vcmp.eq.s32.totalorder %v924, 0
    %vm4331 = vcmp.eq.s32.totalorder %v925, 0
    %vm4332 = vcmp.eq.s32.totalorder %v926, 0
    %vm4333 = vcmp.eq.s32.totalorder %v927, 0
    %vm4334 = vcmp.eq.s32.totalorder %v928, 0
    %vm4335 = vcmp.eq.s32.totalorder %v929, 0
    %vm4336 = vcmp.eq.s32.totalorder %v930, 0
    %vm4337 = vcmp.eq.s32.totalorder %v931, 0
    %vm4338 = vcmp.eq.s32.totalorder %v932, 0
    %vm4339 = vcmp.eq.s32.totalorder %v933, 0
    %vm4340 = vcmp.eq.s32.totalorder %v934, 0
    %vm4341 = vcmp.eq.s32.totalorder %v935, 0
    %vm4342 = vcmp.eq.s32.totalorder %v936, 0
    %v4343 = vrot.slane %v4215, 7
    %v4344 = vrot.slane %v4216, 7
    %v4345 = vrot.slane %v4217, 7
    %v4346 = vrot.slane %v4218, 7
    %v4347 = vrot.slane %v4219, 7
    %v4348 = vrot.slane %v4220, 7
    %v4349 = vrot.slane %v4221, 7
    %v4350 = vrot.slane %v4222, 7
    %v4351 = vrot.slane %v4223, 7
    %v4352 = vrot.slane %v4224, 7
    %v4353 = vrot.slane %v4225, 7
    %v4354 = vrot.slane %v4226, 7
    %v4355 = vrot.slane %v4227, 7
    %v4356 = vrot.slane %v4228, 7
    %v4357 = vrot.slane %v4229, 7
    %v4358 = vrot.slane %v4230, 7
    %v4359 = vrot.slane %v4231, 7
    %v4360 = vrot.slane %v4232, 7
    %v4361 = vrot.slane %v4233, 7
    %v4362 = vrot.slane %v4234, 7
    %v4363 = vrot.slane %v4235, 7
    %v4364 = vrot.slane %v4236, 7
    %v4365 = vrot.slane %v4237, 7
    %v4366 = vrot.slane %v4238, 7
    %v4367 = vrot.slane %v4239, 7
    %v4368 = vrot.slane %v4240, 7
    %v4369 = vrot.slane %v4241, 7
    %v4370 = vrot.slane %v4242, 7
    %v4371 = vrot.slane %v4243, 7
    %v4372 = vrot.slane %v4244, 7
    %v4373 = vrot.slane %v4245, 7
    %v4374 = vrot.slane %v4246, 7
    %v4375 = vrot.slane %v4247, 7
    %v4376 = vrot.slane %v4248, 7
    %v4377 = vrot.slane %v4249, 7
    %v4378 = vrot.slane %v4250, 7
    %v4379 = vrot.slane %v4251, 7
    %v4380 = vrot.slane %v4252, 7
    %v4381 = vrot.slane %v4253, 7
    %v4382 = vrot.slane %v4254, 7
    %v4383 = vrot.slane %v4255, 7
    %v4384 = vrot.slane %v4256, 7
    %v4385 = vrot.slane %v4257, 7
    %v4386 = vrot.slane %v4258, 7
    %v4387 = vrot.slane %v4259, 7
    %v4388 = vrot.slane %v4260, 7
    %v4389 = vrot.slane %v4261, 7
    %v4390 = vrot.slane %v4262, 7
    %v4391 = vrot.slane %v4263, 7
    %v4392 = vrot.slane %v4264, 7
    %v4393 = vrot.slane %v4265, 7
    %v4394 = vrot.slane %v4266, 7
    %v4395 = vrot.slane %v4267, 7
    %v4396 = vrot.slane %v4268, 7
    %v4397 = vrot.slane %v4269, 7
    %v4398 = vrot.slane %v4270, 7
    %v4399 = vrot.slane %v4271, 7
    %v4400 = vrot.slane %v4272, 7
    %v4401 = vrot.slane %v4273, 7
    %v4402 = vrot.slane %v4274, 7
    %v4403 = vrot.slane %v4275, 7
    %v4404 = vrot.slane %v4276, 7
    %v4405 = vrot.slane %v4277, 7
    %v4406 = vrot.slane %v4278, 7
    %v4407 = vsel %vm1322, %v4405, %v4406
    %v4408 = vsel %vm1322, %v4404, %v4405
    %v4409 = vsel %vm1322, %v4403, %v4404
    %v4410 = vsel %vm1322, %v4402, %v4403
    %v4411 = vsel %vm1322, %v4401, %v4402
    %v4412 = vsel %vm1322, %v4400, %v4401
    %v4413 = vsel %vm1322, %v4399, %v4400
    %v4414 = vsel %vm1322, %v4398, %v4399
    %v4415 = vsel %vm1322, %v4397, %v4398
    %v4416 = vsel %vm1322, %v4396, %v4397
    %v4417 = vsel %vm1322, %v4395, %v4396
    %v4418 = vsel %vm1322, %v4394, %v4395
    %v4419 = vsel %vm1322, %v4393, %v4394
    %v4420 = vsel %vm1322, %v4392, %v4393
    %v4421 = vsel %vm1322, %v4391, %v4392
    %v4422 = vsel %vm1322, %v4390, %v4391
    %v4423 = vsel %vm1322, %v4389, %v4390
    %v4424 = vsel %vm1322, %v4388, %v4389
    %v4425 = vsel %vm1322, %v4387, %v4388
    %v4426 = vsel %vm1322, %v4386, %v4387
    %v4427 = vsel %vm1322, %v4385, %v4386
    %v4428 = vsel %vm1322, %v4384, %v4385
    %v4429 = vsel %vm1322, %v4383, %v4384
    %v4430 = vsel %vm1322, %v4382, %v4383
    %v4431 = vsel %vm1322, %v4381, %v4382
    %v4432 = vsel %vm1322, %v4380, %v4381
    %v4433 = vsel %vm1322, %v4379, %v4380
    %v4434 = vsel %vm1322, %v4378, %v4379
    %v4435 = vsel %vm1322, %v4377, %v4378
    %v4436 = vsel %vm1322, %v4376, %v4377
    %v4437 = vsel %vm1322, %v4375, %v4376
    %v4438 = vsel %vm1322, %v4374, %v4375
    %v4439 = vsel %vm1322, %v4373, %v4374
    %v4440 = vsel %vm1322, %v4372, %v4373
    %v4441 = vsel %vm1322, %v4371, %v4372
    %v4442 = vsel %vm1322, %v4370, %v4371
    %v4443 = vsel %vm1322, %v4369, %v4370
    %v4444 = vsel %vm1322, %v4368, %v4369
    %v4445 = vsel %vm1322, %v4367, %v4368
    %v4446 = vsel %vm1322, %v4366, %v4367
    %v4447 = vsel %vm1322, %v4365, %v4366
    %v4448 = vsel %vm1322, %v4364, %v4365
    %v4449 = vsel %vm1322, %v4363, %v4364
    %v4450 = vsel %vm1322, %v4362, %v4363
    %v4451 = vsel %vm1322, %v4361, %v4362
    %v4452 = vsel %vm1322, %v4360, %v4361
    %v4453 = vsel %vm1322, %v4359, %v4360
    %v4454 = vsel %vm1322, %v4358, %v4359
    %v4455 = vsel %vm1322, %v4357, %v4358
    %v4456 = vsel %vm1322, %v4356, %v4357
    %v4457 = vsel %vm1322, %v4355, %v4356
    %v4458 = vsel %vm1322, %v4354, %v4355
    %v4459 = vsel %vm1322, %v4353, %v4354
    %v4460 = vsel %vm1322, %v4352, %v4353
    %v4461 = vsel %vm1322, %v4351, %v4352
    %v4462 = vsel %vm1322, %v4350, %v4351
    %v4463 = vsel %vm1322, %v4349, %v4350
    %v4464 = vsel %vm1322, %v4348, %v4349
    %v4465 = vsel %vm1322, %v4347, %v4348
    %v4466 = vsel %vm1322, %v4346, %v4347
    %v4467 = vsel %vm1322, %v4345, %v4346
    %v4468 = vsel %vm1322, %v4344, %v4345
    %v4469 = vsel %vm1322, %v4343, %v4344
    %v4470 = vsel %vm1322, %v4406, %v4343
    %v4471 = vsel %vm4279, 1, 0
    %v4472 = vsel %vm4280, 1, 0
    %v4473 = vsel %vm4281, 1, 0
    %v4474 = vsel %vm4282, 1, 0
    %v4475 = vsel %vm4283, 1, 0
    %v4476 = vsel %vm4284, 1, 0
    %v4477 = vsel %vm4285, 1, 0
    %v4478 = vsel %vm4286, 1, 0
    %v4479 = vsel %vm4287, 1, 0
    %v4480 = vsel %vm4288, 1, 0
    %v4481 = vsel %vm4289, 1, 0
    %v4482 = vsel %vm4290, 1, 0
    %v4483 = vsel %vm4291, 1, 0
    %v4484 = vsel %vm4292, 1, 0
    %v4485 = vsel %vm4293, 1, 0
    %v4486 = vsel %vm4294, 1, 0
    %v4487 = vsel %vm4295, 1, 0
    %v4488 = vsel %vm4296, 1, 0
    %v4489 = vsel %vm4297, 1, 0
    %v4490 = vsel %vm4298, 1, 0
    %v4491 = vsel %vm4299, 1, 0
    %v4492 = vsel %vm4300, 1, 0
    %v4493 = vsel %vm4301, 1, 0
    %v4494 = vsel %vm4302, 1, 0
    %v4495 = vsel %vm4303, 1, 0
    %v4496 = vsel %vm4304, 1, 0
    %v4497 = vsel %vm4305, 1, 0
    %v4498 = vsel %vm4306, 1, 0
    %v4499 = vsel %vm4307, 1, 0
    %v4500 = vsel %vm4308, 1, 0
    %v4501 = vsel %vm4309, 1, 0
    %v4502 = vsel %vm4310, 1, 0
    %v4503 = vsel %vm4311, 1, 0
    %v4504 = vsel %vm4312, 1, 0
    %v4505 = vsel %vm4313, 1, 0
    %v4506 = vsel %vm4314, 1, 0
    %v4507 = vsel %vm4315, 1, 0
    %v4508 = vsel %vm4316, 1, 0
    %v4509 = vsel %vm4317, 1, 0
    %v4510 = vsel %vm4318, 1, 0
    %v4511 = vsel %vm4319, 1, 0
    %v4512 = vsel %vm4320, 1, 0
    %v4513 = vsel %vm4321, 1, 0
    %v4514 = vsel %vm4322, 1, 0
    %v4515 = vsel %vm4323, 1, 0
    %v4516 = vsel %vm4324, 1, 0
    %v4517 = vsel %vm4325, 1, 0
    %v4518 = vsel %vm4326, 1, 0
    %v4519 = vsel %vm4327, 1, 0
    %v4520 = vsel %vm4328, 1, 0
    %v4521 = vsel %vm4329, 1, 0
    %v4522 = vsel %vm4330, 1, 0
    %v4523 = vsel %vm4331, 1, 0
    %v4524 = vsel %vm4332, 1, 0
    %v4525 = vsel %vm4333, 1, 0
    %v4526 = vsel %vm4334, 1, 0
    %v4527 = vsel %vm4335, 1, 0
    %v4528 = vsel %vm4336, 1, 0
    %v4529 = vsel %vm4337, 1, 0
    %v4530 = vsel %vm4338, 1, 0
    %v4531 = vsel %vm4339, 1, 0
    %v4532 = vsel %vm4340, 1, 0
    %v4533 = vsel %vm4341, 1, 0
    %v4534 = vsel %vm4342, 1, 0
    %vm4535 = vcmp.eq.s32.totalorder %v4471, 1
    %vm4536 = vcmp.eq.s32.totalorder %v4472, 1
    %vm4537 = vcmp.eq.s32.totalorder %v4473, 1
    %vm4538 = vcmp.eq.s32.totalorder %v4474, 1
    %vm4539 = vcmp.eq.s32.totalorder %v4475, 1
    %vm4540 = vcmp.eq.s32.totalorder %v4476, 1
    %vm4541 = vcmp.eq.s32.totalorder %v4477, 1
    %vm4542 = vcmp.eq.s32.totalorder %v4478, 1
    %vm4543 = vcmp.eq.s32.totalorder %v4479, 1
    %vm4544 = vcmp.eq.s32.totalorder %v4480, 1
    %vm4545 = vcmp.eq.s32.totalorder %v4481, 1
    %vm4546 = vcmp.eq.s32.totalorder %v4482, 1
    %vm4547 = vcmp.eq.s32.totalorder %v4483, 1
    %vm4548 = vcmp.eq.s32.totalorder %v4484, 1
    %vm4549 = vcmp.eq.s32.totalorder %v4485, 1
    %vm4550 = vcmp.eq.s32.totalorder %v4486, 1
    %vm4551 = vcmp.eq.s32.totalorder %v4487, 1
    %vm4552 = vcmp.eq.s32.totalorder %v4488, 1
    %vm4553 = vcmp.eq.s32.totalorder %v4489, 1
    %vm4554 = vcmp.eq.s32.totalorder %v4490, 1
    %vm4555 = vcmp.eq.s32.totalorder %v4491, 1
    %vm4556 = vcmp.eq.s32.totalorder %v4492, 1
    %vm4557 = vcmp.eq.s32.totalorder %v4493, 1
    %vm4558 = vcmp.eq.s32.totalorder %v4494, 1
    %vm4559 = vcmp.eq.s32.totalorder %v4495, 1
    %vm4560 = vcmp.eq.s32.totalorder %v4496, 1
    %vm4561 = vcmp.eq.s32.totalorder %v4497, 1
    %vm4562 = vcmp.eq.s32.totalorder %v4498, 1
    %vm4563 = vcmp.eq.s32.totalorder %v4499, 1
    %vm4564 = vcmp.eq.s32.totalorder %v4500, 1
    %vm4565 = vcmp.eq.s32.totalorder %v4501, 1
    %vm4566 = vcmp.eq.s32.totalorder %v4502, 1
    %vm4567 = vcmp.eq.s32.totalorder %v4503, 1
    %vm4568 = vcmp.eq.s32.totalorder %v4504, 1
    %vm4569 = vcmp.eq.s32.totalorder %v4505, 1
    %vm4570 = vcmp.eq.s32.totalorder %v4506, 1
    %vm4571 = vcmp.eq.s32.totalorder %v4507, 1
    %vm4572 = vcmp.eq.s32.totalorder %v4508, 1
    %vm4573 = vcmp.eq.s32.totalorder %v4509, 1
    %vm4574 = vcmp.eq.s32.totalorder %v4510, 1
    %vm4575 = vcmp.eq.s32.totalorder %v4511, 1
    %vm4576 = vcmp.eq.s32.totalorder %v4512, 1
    %vm4577 = vcmp.eq.s32.totalorder %v4513, 1
    %vm4578 = vcmp.eq.s32.totalorder %v4514, 1
    %vm4579 = vcmp.eq.s32.totalorder %v4515, 1
    %vm4580 = vcmp.eq.s32.totalorder %v4516, 1
    %vm4581 = vcmp.eq.s32.totalorder %v4517, 1
    %vm4582 = vcmp.eq.s32.totalorder %v4518, 1
    %vm4583 = vcmp.eq.s32.totalorder %v4519, 1
    %vm4584 = vcmp.eq.s32.totalorder %v4520, 1
    %vm4585 = vcmp.eq.s32.totalorder %v4521, 1
    %vm4586 = vcmp.eq.s32.totalorder %v4522, 1
    %vm4587 = vcmp.eq.s32.totalorder %v4523, 1
    %vm4588 = vcmp.eq.s32.totalorder %v4524, 1
    %vm4589 = vcmp.eq.s32.totalorder %v4525, 1
    %vm4590 = vcmp.eq.s32.totalorder %v4526, 1
    %vm4591 = vcmp.eq.s32.totalorder %v4527, 1
    %vm4592 = vcmp.eq.s32.totalorder %v4528, 1
    %vm4593 = vcmp.eq.s32.totalorder %v4529, 1
    %vm4594 = vcmp.eq.s32.totalorder %v4530, 1
    %vm4595 = vcmp.eq.s32.totalorder %v4531, 1
    %vm4596 = vcmp.eq.s32.totalorder %v4532, 1
    %vm4597 = vcmp.eq.s32.totalorder %v4533, 1
    %vm4598 = vcmp.eq.s32.totalorder %v4534, 1
    %v4599 = vsel %vm4535, 0.0, %v4470
    %v4600 = vsel %vm4536, 0.0, %v4469
    %v4601 = vsel %vm4537, 0.0, %v4468
    %v4602 = vsel %vm4538, 0.0, %v4467
    %v4603 = vsel %vm4539, 0.0, %v4466
    %v4604 = vsel %vm4540, 0.0, %v4465
    %v4605 = vsel %vm4541, 0.0, %v4464
    %v4606 = vsel %vm4542, 0.0, %v4463
    %v4607 = vsel %vm4543, 0.0, %v4462
    %v4608 = vsel %vm4544, 0.0, %v4461
    %v4609 = vsel %vm4545, 0.0, %v4460
    %v4610 = vsel %vm4546, 0.0, %v4459
    %v4611 = vsel %vm4547, 0.0, %v4458
    %v4612 = vsel %vm4548, 0.0, %v4457
    %v4613 = vsel %vm4549, 0.0, %v4456
    %v4614 = vsel %vm4550, 0.0, %v4455
    %v4615 = vsel %vm4551, 0.0, %v4454
    %v4616 = vsel %vm4552, 0.0, %v4453
    %v4617 = vsel %vm4553, 0.0, %v4452
    %v4618 = vsel %vm4554, 0.0, %v4451
    %v4619 = vsel %vm4555, 0.0, %v4450
    %v4620 = vsel %vm4556, 0.0, %v4449
    %v4621 = vsel %vm4557, 0.0, %v4448
    %v4622 = vsel %vm4558, 0.0, %v4447
    %v4623 = vsel %vm4559, 0.0, %v4446
    %v4624 = vsel %vm4560, 0.0, %v4445
    %v4625 = vsel %vm4561, 0.0, %v4444
    %v4626 = vsel %vm4562, 0.0, %v4443
    %v4627 = vsel %vm4563, 0.0, %v4442
    %v4628 = vsel %vm4564, 0.0, %v4441
    %v4629 = vsel %vm4565, 0.0, %v4440
    %v4630 = vsel %vm4566, 0.0, %v4439
    %v4631 = vsel %vm4567, 0.0, %v4438
    %v4632 = vsel %vm4568, 0.0, %v4437
    %v4633 = vsel %vm4569, 0.0, %v4436
    %v4634 = vsel %vm4570, 0.0, %v4435
    %v4635 = vsel %vm4571, 0.0, %v4434
    %v4636 = vsel %vm4572, 0.0, %v4433
    %v4637 = vsel %vm4573, 0.0, %v4432
    %v4638 = vsel %vm4574, 0.0, %v4431
    %v4639 = vsel %vm4575, 0.0, %v4430
    %v4640 = vsel %vm4576, 0.0, %v4429
    %v4641 = vsel %vm4577, 0.0, %v4428
    %v4642 = vsel %vm4578, 0.0, %v4427
    %v4643 = vsel %vm4579, 0.0, %v4426
    %v4644 = vsel %vm4580, 0.0, %v4425
    %v4645 = vsel %vm4581, 0.0, %v4424
    %v4646 = vsel %vm4582, 0.0, %v4423
    %v4647 = vsel %vm4583, 0.0, %v4422
    %v4648 = vsel %vm4584, 0.0, %v4421
    %v4649 = vsel %vm4585, 0.0, %v4420
    %v4650 = vsel %vm4586, 0.0, %v4419
    %v4651 = vsel %vm4587, 0.0, %v4418
    %v4652 = vsel %vm4588, 0.0, %v4417
    %v4653 = vsel %vm4589, 0.0, %v4416
    %v4654 = vsel %vm4590, 0.0, %v4415
    %v4655 = vsel %vm4591, 0.0, %v4414
    %v4656 = vsel %vm4592, 0.0, %v4413
    %v4657 = vsel %vm4593, 0.0, %v4412
    %v4658 = vsel %vm4594, 0.0, %v4411
    %v4659 = vsel %vm4595, 0.0, %v4410
    %v4660 = vsel %vm4596, 0.0, %v4409
    %v4661 = vsel %vm4597, 0.0, %v4408
    %v4662 = vsel %vm4598, 0.0, %v4407
    %v4663 = vpack.c.bf16 %v4600, %v4599
    %v4664 = vpack.c.bf16 %v4602, %v4601
    %v4665 = vpack.c.bf16 %v4604, %v4603
    %v4666 = vpack.c.bf16 %v4606, %v4605
    %v4667 = vpack.c.bf16 %v4608, %v4607
    %v4668 = vpack.c.bf16 %v4610, %v4609
    %v4669 = vpack.c.bf16 %v4612, %v4611
    %v4670 = vpack.c.bf16 %v4614, %v4613
    %v4671 = vpack.c.bf16 %v4616, %v4615
    %v4672 = vpack.c.bf16 %v4618, %v4617
    %v4673 = vpack.c.bf16 %v4620, %v4619
    %v4674 = vpack.c.bf16 %v4622, %v4621
    %v4675 = vpack.c.bf16 %v4624, %v4623
    %v4676 = vpack.c.bf16 %v4626, %v4625
    %v4677 = vpack.c.bf16 %v4628, %v4627
    %v4678 = vpack.c.bf16 %v4630, %v4629
    %v4679 = vpack.c.bf16 %v4632, %v4631
    %v4680 = vpack.c.bf16 %v4634, %v4633
    %v4681 = vpack.c.bf16 %v4636, %v4635
    %v4682 = vpack.c.bf16 %v4638, %v4637
    %v4683 = vpack.c.bf16 %v4640, %v4639
    %v4684 = vpack.c.bf16 %v4642, %v4641
    %v4685 = vpack.c.bf16 %v4644, %v4643
    %v4686 = vpack.c.bf16 %v4646, %v4645
    %v4687 = vpack.c.bf16 %v4648, %v4647
    %v4688 = vpack.c.bf16 %v4650, %v4649
    %v4689 = vpack.c.bf16 %v4652, %v4651
    %v4690 = vpack.c.bf16 %v4654, %v4653
    %v4691 = vpack.c.bf16 %v4656, %v4655
    %v4692 = vpack.c.bf16 %v4658, %v4657
    %v4693 = vpack.c.bf16 %v4660, %v4659
    %v4694 = vpack.c.bf16 %v4662, %v4661
    %vm4695 = vcmp.eq.s32.totalorder %v873, 31
    %vm4696 = vcmp.eq.s32.totalorder %v874, 31
    %vm4697 = vcmp.eq.s32.totalorder %v875, 31
    %vm4698 = vcmp.eq.s32.totalorder %v876, 31
    %vm4699 = vcmp.eq.s32.totalorder %v877, 31
    %vm4700 = vcmp.eq.s32.totalorder %v878, 31
    %vm4701 = vcmp.eq.s32.totalorder %v879, 31
    %vm4702 = vcmp.eq.s32.totalorder %v880, 31
    %vm4703 = vcmp.eq.s32.totalorder %v881, 31
    %vm4704 = vcmp.eq.s32.totalorder %v882, 31
    %vm4705 = vcmp.eq.s32.totalorder %v883, 31
    %vm4706 = vcmp.eq.s32.totalorder %v884, 31
    %vm4707 = vcmp.eq.s32.totalorder %v885, 31
    %vm4708 = vcmp.eq.s32.totalorder %v886, 31
    %vm4709 = vcmp.eq.s32.totalorder %v887, 31
    %vm4710 = vcmp.eq.s32.totalorder %v888, 31
    %vm4711 = vcmp.eq.s32.totalorder %v889, 31
    %vm4712 = vcmp.eq.s32.totalorder %v890, 31
    %vm4713 = vcmp.eq.s32.totalorder %v891, 31
    %vm4714 = vcmp.eq.s32.totalorder %v892, 31
    %vm4715 = vcmp.eq.s32.totalorder %v893, 31
    %vm4716 = vcmp.eq.s32.totalorder %v894, 31
    %vm4717 = vcmp.eq.s32.totalorder %v895, 31
    %vm4718 = vcmp.eq.s32.totalorder %v896, 31
    %vm4719 = vcmp.eq.s32.totalorder %v897, 31
    %vm4720 = vcmp.eq.s32.totalorder %v898, 31
    %vm4721 = vcmp.eq.s32.totalorder %v899, 31
    %vm4722 = vcmp.eq.s32.totalorder %v900, 31
    %vm4723 = vcmp.eq.s32.totalorder %v901, 31
    %vm4724 = vcmp.eq.s32.totalorder %v902, 31
    %vm4725 = vcmp.eq.s32.totalorder %v903, 31
    %vm4726 = vcmp.eq.s32.totalorder %v904, 31
    %vm4727 = vcmp.eq.s32.totalorder %v905, 31
    %vm4728 = vcmp.eq.s32.totalorder %v906, 31
    %vm4729 = vcmp.eq.s32.totalorder %v907, 31
    %vm4730 = vcmp.eq.s32.totalorder %v908, 31
    %vm4731 = vcmp.eq.s32.totalorder %v909, 31
    %vm4732 = vcmp.eq.s32.totalorder %v910, 31
    %vm4733 = vcmp.eq.s32.totalorder %v911, 31
    %vm4734 = vcmp.eq.s32.totalorder %v912, 31
    %vm4735 = vcmp.eq.s32.totalorder %v913, 31
    %vm4736 = vcmp.eq.s32.totalorder %v914, 31
    %vm4737 = vcmp.eq.s32.totalorder %v915, 31
    %vm4738 = vcmp.eq.s32.totalorder %v916, 31
    %vm4739 = vcmp.eq.s32.totalorder %v917, 31
    %vm4740 = vcmp.eq.s32.totalorder %v918, 31
    %vm4741 = vcmp.eq.s32.totalorder %v919, 31
    %vm4742 = vcmp.eq.s32.totalorder %v920, 31
    %vm4743 = vcmp.eq.s32.totalorder %v921, 31
    %vm4744 = vcmp.eq.s32.totalorder %v922, 31
    %vm4745 = vcmp.eq.s32.totalorder %v923, 31
    %vm4746 = vcmp.eq.s32.totalorder %v924, 31
    %vm4747 = vcmp.eq.s32.totalorder %v925, 31
    %vm4748 = vcmp.eq.s32.totalorder %v926, 31
    %vm4749 = vcmp.eq.s32.totalorder %v927, 31
    %vm4750 = vcmp.eq.s32.totalorder %v928, 31
    %vm4751 = vcmp.eq.s32.totalorder %v929, 31
    %vm4752 = vcmp.eq.s32.totalorder %v930, 31
    %vm4753 = vcmp.eq.s32.totalorder %v931, 31
    %vm4754 = vcmp.eq.s32.totalorder %v932, 31
    %vm4755 = vcmp.eq.s32.totalorder %v933, 31
    %vm4756 = vcmp.eq.s32.totalorder %v934, 31
    %vm4757 = vcmp.eq.s32.totalorder %v935, 31
    %vm4758 = vcmp.eq.s32.totalorder %v936, 31
    %v4759 = vrot.slane %v4215, 1
    %v4760 = vrot.slane %v4216, 1
    %v4761 = vrot.slane %v4217, 1
    %v4762 = vrot.slane %v4218, 1
    %v4763 = vrot.slane %v4219, 1
    %v4764 = vrot.slane %v4220, 1
    %v4765 = vrot.slane %v4221, 1
    %v4766 = vrot.slane %v4222, 1
    %v4767 = vrot.slane %v4223, 1
    %v4768 = vrot.slane %v4224, 1
    %v4769 = vrot.slane %v4225, 1
    %v4770 = vrot.slane %v4226, 1
    %v4771 = vrot.slane %v4227, 1
    %v4772 = vrot.slane %v4228, 1
    %v4773 = vrot.slane %v4229, 1
    %v4774 = vrot.slane %v4230, 1
    %v4775 = vrot.slane %v4231, 1
    %v4776 = vrot.slane %v4232, 1
    %v4777 = vrot.slane %v4233, 1
    %v4778 = vrot.slane %v4234, 1
    %v4779 = vrot.slane %v4235, 1
    %v4780 = vrot.slane %v4236, 1
    %v4781 = vrot.slane %v4237, 1
    %v4782 = vrot.slane %v4238, 1
    %v4783 = vrot.slane %v4239, 1
    %v4784 = vrot.slane %v4240, 1
    %v4785 = vrot.slane %v4241, 1
    %v4786 = vrot.slane %v4242, 1
    %v4787 = vrot.slane %v4243, 1
    %v4788 = vrot.slane %v4244, 1
    %v4789 = vrot.slane %v4245, 1
    %v4790 = vrot.slane %v4246, 1
    %v4791 = vrot.slane %v4247, 1
    %v4792 = vrot.slane %v4248, 1
    %v4793 = vrot.slane %v4249, 1
    %v4794 = vrot.slane %v4250, 1
    %v4795 = vrot.slane %v4251, 1
    %v4796 = vrot.slane %v4252, 1
    %v4797 = vrot.slane %v4253, 1
    %v4798 = vrot.slane %v4254, 1
    %v4799 = vrot.slane %v4255, 1
    %v4800 = vrot.slane %v4256, 1
    %v4801 = vrot.slane %v4257, 1
    %v4802 = vrot.slane %v4258, 1
    %v4803 = vrot.slane %v4259, 1
    %v4804 = vrot.slane %v4260, 1
    %v4805 = vrot.slane %v4261, 1
    %v4806 = vrot.slane %v4262, 1
    %v4807 = vrot.slane %v4263, 1
    %v4808 = vrot.slane %v4264, 1
    %v4809 = vrot.slane %v4265, 1
    %v4810 = vrot.slane %v4266, 1
    %v4811 = vrot.slane %v4267, 1
    %v4812 = vrot.slane %v4268, 1
    %v4813 = vrot.slane %v4269, 1
    %v4814 = vrot.slane %v4270, 1
    %v4815 = vrot.slane %v4271, 1
    %v4816 = vrot.slane %v4272, 1
    %v4817 = vrot.slane %v4273, 1
    %v4818 = vrot.slane %v4274, 1
    %v4819 = vrot.slane %v4275, 1
    %v4820 = vrot.slane %v4276, 1
    %v4821 = vrot.slane %v4277, 1
    %v4822 = vrot.slane %v4278, 1
    %v4823 = vsel %vm1579, %v4821, %v4822
    %v4824 = vsel %vm1579, %v4820, %v4821
    %v4825 = vsel %vm1579, %v4819, %v4820
    %v4826 = vsel %vm1579, %v4818, %v4819
    %v4827 = vsel %vm1579, %v4817, %v4818
    %v4828 = vsel %vm1579, %v4816, %v4817
    %v4829 = vsel %vm1579, %v4815, %v4816
    %v4830 = vsel %vm1579, %v4814, %v4815
    %v4831 = vsel %vm1579, %v4813, %v4814
    %v4832 = vsel %vm1579, %v4812, %v4813
    %v4833 = vsel %vm1579, %v4811, %v4812
    %v4834 = vsel %vm1579, %v4810, %v4811
    %v4835 = vsel %vm1579, %v4809, %v4810
    %v4836 = vsel %vm1579, %v4808, %v4809
    %v4837 = vsel %vm1579, %v4807, %v4808
    %v4838 = vsel %vm1579, %v4806, %v4807
    %v4839 = vsel %vm1579, %v4805, %v4806
    %v4840 = vsel %vm1579, %v4804, %v4805
    %v4841 = vsel %vm1579, %v4803, %v4804
    %v4842 = vsel %vm1579, %v4802, %v4803
    %v4843 = vsel %vm1579, %v4801, %v4802
    %v4844 = vsel %vm1579, %v4800, %v4801
    %v4845 = vsel %vm1579, %v4799, %v4800
    %v4846 = vsel %vm1579, %v4798, %v4799
    %v4847 = vsel %vm1579, %v4797, %v4798
    %v4848 = vsel %vm1579, %v4796, %v4797
    %v4849 = vsel %vm1579, %v4795, %v4796
    %v4850 = vsel %vm1579, %v4794, %v4795
    %v4851 = vsel %vm1579, %v4793, %v4794
    %v4852 = vsel %vm1579, %v4792, %v4793
    %v4853 = vsel %vm1579, %v4791, %v4792
    %v4854 = vsel %vm1579, %v4790, %v4791
    %v4855 = vsel %vm1579, %v4789, %v4790
    %v4856 = vsel %vm1579, %v4788, %v4789
    %v4857 = vsel %vm1579, %v4787, %v4788
    %v4858 = vsel %vm1579, %v4786, %v4787
    %v4859 = vsel %vm1579, %v4785, %v4786
    %v4860 = vsel %vm1579, %v4784, %v4785
    %v4861 = vsel %vm1579, %v4783, %v4784
    %v4862 = vsel %vm1579, %v4782, %v4783
    %v4863 = vsel %vm1579, %v4781, %v4782
    %v4864 = vsel %vm1579, %v4780, %v4781
    %v4865 = vsel %vm1579, %v4779, %v4780
    %v4866 = vsel %vm1579, %v4778, %v4779
    %v4867 = vsel %vm1579, %v4777, %v4778
    %v4868 = vsel %vm1579, %v4776, %v4777
    %v4869 = vsel %vm1579, %v4775, %v4776
    %v4870 = vsel %vm1579, %v4774, %v4775
    %v4871 = vsel %vm1579, %v4773, %v4774
    %v4872 = vsel %vm1579, %v4772, %v4773
    %v4873 = vsel %vm1579, %v4771, %v4772
    %v4874 = vsel %vm1579, %v4770, %v4771
    %v4875 = vsel %vm1579, %v4769, %v4770
    %v4876 = vsel %vm1579, %v4768, %v4769
    %v4877 = vsel %vm1579, %v4767, %v4768
    %v4878 = vsel %vm1579, %v4766, %v4767
    %v4879 = vsel %vm1579, %v4765, %v4766
    %v4880 = vsel %vm1579, %v4764, %v4765
    %v4881 = vsel %vm1579, %v4763, %v4764
    %v4882 = vsel %vm1579, %v4762, %v4763
    %v4883 = vsel %vm1579, %v4761, %v4762
    %v4884 = vsel %vm1579, %v4760, %v4761
    %v4885 = vsel %vm1579, %v4759, %v4760
    %v4886 = vsel %vm1579, %v4822, %v4759
    %v4887 = vsel %vm4695, 1, 0
    %v4888 = vsel %vm4696, 1, 0
    %v4889 = vsel %vm4697, 1, 0
    %v4890 = vsel %vm4698, 1, 0
    %v4891 = vsel %vm4699, 1, 0
    %v4892 = vsel %vm4700, 1, 0
    %v4893 = vsel %vm4701, 1, 0
    %v4894 = vsel %vm4702, 1, 0
    %v4895 = vsel %vm4703, 1, 0
    %v4896 = vsel %vm4704, 1, 0
    %v4897 = vsel %vm4705, 1, 0
    %v4898 = vsel %vm4706, 1, 0
    %v4899 = vsel %vm4707, 1, 0
    %v4900 = vsel %vm4708, 1, 0
    %v4901 = vsel %vm4709, 1, 0
    %v4902 = vsel %vm4710, 1, 0
    %v4903 = vsel %vm4711, 1, 0
    %v4904 = vsel %vm4712, 1, 0
    %v4905 = vsel %vm4713, 1, 0
    %v4906 = vsel %vm4714, 1, 0
    %v4907 = vsel %vm4715, 1, 0
    %v4908 = vsel %vm4716, 1, 0
    %v4909 = vsel %vm4717, 1, 0
    %v4910 = vsel %vm4718, 1, 0
    %v4911 = vsel %vm4719, 1, 0
    %v4912 = vsel %vm4720, 1, 0
    %v4913 = vsel %vm4721, 1, 0
    %v4914 = vsel %vm4722, 1, 0
    %v4915 = vsel %vm4723, 1, 0
    %v4916 = vsel %vm4724, 1, 0
    %v4917 = vsel %vm4725, 1, 0
    %v4918 = vsel %vm4726, 1, 0
    %v4919 = vsel %vm4727, 1, 0
    %v4920 = vsel %vm4728, 1, 0
    %v4921 = vsel %vm4729, 1, 0
    %v4922 = vsel %vm4730, 1, 0
    %v4923 = vsel %vm4731, 1, 0
    %v4924 = vsel %vm4732, 1, 0
    %v4925 = vsel %vm4733, 1, 0
    %v4926 = vsel %vm4734, 1, 0
    %v4927 = vsel %vm4735, 1, 0
    %v4928 = vsel %vm4736, 1, 0
    %v4929 = vsel %vm4737, 1, 0
    %v4930 = vsel %vm4738, 1, 0
    %v4931 = vsel %vm4739, 1, 0
    %v4932 = vsel %vm4740, 1, 0
    %v4933 = vsel %vm4741, 1, 0
    %v4934 = vsel %vm4742, 1, 0
    %v4935 = vsel %vm4743, 1, 0
    %v4936 = vsel %vm4744, 1, 0
    %v4937 = vsel %vm4745, 1, 0
    %v4938 = vsel %vm4746, 1, 0
    %v4939 = vsel %vm4747, 1, 0
    %v4940 = vsel %vm4748, 1, 0
    %v4941 = vsel %vm4749, 1, 0
    %v4942 = vsel %vm4750, 1, 0
    %v4943 = vsel %vm4751, 1, 0
    %v4944 = vsel %vm4752, 1, 0
    %v4945 = vsel %vm4753, 1, 0
    %v4946 = vsel %vm4754, 1, 0
    %v4947 = vsel %vm4755, 1, 0
    %v4948 = vsel %vm4756, 1, 0
    %v4949 = vsel %vm4757, 1, 0
    %v4950 = vsel %vm4758, 1, 0
    %vm4951 = vcmp.eq.s32.totalorder %v4887, 1
    %vm4952 = vcmp.eq.s32.totalorder %v4888, 1
    %vm4953 = vcmp.eq.s32.totalorder %v4889, 1
    %vm4954 = vcmp.eq.s32.totalorder %v4890, 1
    %vm4955 = vcmp.eq.s32.totalorder %v4891, 1
    %vm4956 = vcmp.eq.s32.totalorder %v4892, 1
    %vm4957 = vcmp.eq.s32.totalorder %v4893, 1
    %vm4958 = vcmp.eq.s32.totalorder %v4894, 1
    %vm4959 = vcmp.eq.s32.totalorder %v4895, 1
    %vm4960 = vcmp.eq.s32.totalorder %v4896, 1
    %vm4961 = vcmp.eq.s32.totalorder %v4897, 1
    %vm4962 = vcmp.eq.s32.totalorder %v4898, 1
    %vm4963 = vcmp.eq.s32.totalorder %v4899, 1
    %vm4964 = vcmp.eq.s32.totalorder %v4900, 1
    %vm4965 = vcmp.eq.s32.totalorder %v4901, 1
    %vm4966 = vcmp.eq.s32.totalorder %v4902, 1
    %vm4967 = vcmp.eq.s32.totalorder %v4903, 1
    %vm4968 = vcmp.eq.s32.totalorder %v4904, 1
    %vm4969 = vcmp.eq.s32.totalorder %v4905, 1
    %vm4970 = vcmp.eq.s32.totalorder %v4906, 1
    %vm4971 = vcmp.eq.s32.totalorder %v4907, 1
    %vm4972 = vcmp.eq.s32.totalorder %v4908, 1
    %vm4973 = vcmp.eq.s32.totalorder %v4909, 1
    %vm4974 = vcmp.eq.s32.totalorder %v4910, 1
    %vm4975 = vcmp.eq.s32.totalorder %v4911, 1
    %vm4976 = vcmp.eq.s32.totalorder %v4912, 1
    %vm4977 = vcmp.eq.s32.totalorder %v4913, 1
    %vm4978 = vcmp.eq.s32.totalorder %v4914, 1
    %vm4979 = vcmp.eq.s32.totalorder %v4915, 1
    %vm4980 = vcmp.eq.s32.totalorder %v4916, 1
    %vm4981 = vcmp.eq.s32.totalorder %v4917, 1
    %vm4982 = vcmp.eq.s32.totalorder %v4918, 1
    %vm4983 = vcmp.eq.s32.totalorder %v4919, 1
    %vm4984 = vcmp.eq.s32.totalorder %v4920, 1
    %vm4985 = vcmp.eq.s32.totalorder %v4921, 1
    %vm4986 = vcmp.eq.s32.totalorder %v4922, 1
    %vm4987 = vcmp.eq.s32.totalorder %v4923, 1
    %vm4988 = vcmp.eq.s32.totalorder %v4924, 1
    %vm4989 = vcmp.eq.s32.totalorder %v4925, 1
    %vm4990 = vcmp.eq.s32.totalorder %v4926, 1
    %vm4991 = vcmp.eq.s32.totalorder %v4927, 1
    %vm4992 = vcmp.eq.s32.totalorder %v4928, 1
    %vm4993 = vcmp.eq.s32.totalorder %v4929, 1
    %vm4994 = vcmp.eq.s32.totalorder %v4930, 1
    %vm4995 = vcmp.eq.s32.totalorder %v4931, 1
    %vm4996 = vcmp.eq.s32.totalorder %v4932, 1
    %vm4997 = vcmp.eq.s32.totalorder %v4933, 1
    %vm4998 = vcmp.eq.s32.totalorder %v4934, 1
    %vm4999 = vcmp.eq.s32.totalorder %v4935, 1
    %vm5000 = vcmp.eq.s32.totalorder %v4936, 1
    %vm5001 = vcmp.eq.s32.totalorder %v4937, 1
    %vm5002 = vcmp.eq.s32.totalorder %v4938, 1
    %vm5003 = vcmp.eq.s32.totalorder %v4939, 1
    %vm5004 = vcmp.eq.s32.totalorder %v4940, 1
    %vm5005 = vcmp.eq.s32.totalorder %v4941, 1
    %vm5006 = vcmp.eq.s32.totalorder %v4942, 1
    %vm5007 = vcmp.eq.s32.totalorder %v4943, 1
    %vm5008 = vcmp.eq.s32.totalorder %v4944, 1
    %vm5009 = vcmp.eq.s32.totalorder %v4945, 1
    %vm5010 = vcmp.eq.s32.totalorder %v4946, 1
    %vm5011 = vcmp.eq.s32.totalorder %v4947, 1
    %vm5012 = vcmp.eq.s32.totalorder %v4948, 1
    %vm5013 = vcmp.eq.s32.totalorder %v4949, 1
    %vm5014 = vcmp.eq.s32.totalorder %v4950, 1
    %v5015 = vsel %vm4951, 0.0, %v4885
    %v5016 = vsel %vm4952, 0.0, %v4884
    %v5017 = vsel %vm4953, 0.0, %v4883
    %v5018 = vsel %vm4954, 0.0, %v4882
    %v5019 = vsel %vm4955, 0.0, %v4881
    %v5020 = vsel %vm4956, 0.0, %v4880
    %v5021 = vsel %vm4957, 0.0, %v4879
    %v5022 = vsel %vm4958, 0.0, %v4878
    %v5023 = vsel %vm4959, 0.0, %v4877
    %v5024 = vsel %vm4960, 0.0, %v4876
    %v5025 = vsel %vm4961, 0.0, %v4875
    %v5026 = vsel %vm4962, 0.0, %v4874
    %v5027 = vsel %vm4963, 0.0, %v4873
    %v5028 = vsel %vm4964, 0.0, %v4872
    %v5029 = vsel %vm4965, 0.0, %v4871
    %v5030 = vsel %vm4966, 0.0, %v4870
    %v5031 = vsel %vm4967, 0.0, %v4869
    %v5032 = vsel %vm4968, 0.0, %v4868
    %v5033 = vsel %vm4969, 0.0, %v4867
    %v5034 = vsel %vm4970, 0.0, %v4866
    %v5035 = vsel %vm4971, 0.0, %v4865
    %v5036 = vsel %vm4972, 0.0, %v4864
    %v5037 = vsel %vm4973, 0.0, %v4863
    %v5038 = vsel %vm4974, 0.0, %v4862
    %v5039 = vsel %vm4975, 0.0, %v4861
    %v5040 = vsel %vm4976, 0.0, %v4860
    %v5041 = vsel %vm4977, 0.0, %v4859
    %v5042 = vsel %vm4978, 0.0, %v4858
    %v5043 = vsel %vm4979, 0.0, %v4857
    %v5044 = vsel %vm4980, 0.0, %v4856
    %v5045 = vsel %vm4981, 0.0, %v4855
    %v5046 = vsel %vm4982, 0.0, %v4854
    %v5047 = vsel %vm4983, 0.0, %v4853
    %v5048 = vsel %vm4984, 0.0, %v4852
    %v5049 = vsel %vm4985, 0.0, %v4851
    %v5050 = vsel %vm4986, 0.0, %v4850
    %v5051 = vsel %vm4987, 0.0, %v4849
    %v5052 = vsel %vm4988, 0.0, %v4848
    %v5053 = vsel %vm4989, 0.0, %v4847
    %v5054 = vsel %vm4990, 0.0, %v4846
    %v5055 = vsel %vm4991, 0.0, %v4845
    %v5056 = vsel %vm4992, 0.0, %v4844
    %v5057 = vsel %vm4993, 0.0, %v4843
    %v5058 = vsel %vm4994, 0.0, %v4842
    %v5059 = vsel %vm4995, 0.0, %v4841
    %v5060 = vsel %vm4996, 0.0, %v4840
    %v5061 = vsel %vm4997, 0.0, %v4839
    %v5062 = vsel %vm4998, 0.0, %v4838
    %v5063 = vsel %vm4999, 0.0, %v4837
    %v5064 = vsel %vm5000, 0.0, %v4836
    %v5065 = vsel %vm5001, 0.0, %v4835
    %v5066 = vsel %vm5002, 0.0, %v4834
    %v5067 = vsel %vm5003, 0.0, %v4833
    %v5068 = vsel %vm5004, 0.0, %v4832
    %v5069 = vsel %vm5005, 0.0, %v4831
    %v5070 = vsel %vm5006, 0.0, %v4830
    %v5071 = vsel %vm5007, 0.0, %v4829
    %v5072 = vsel %vm5008, 0.0, %v4828
    %v5073 = vsel %vm5009, 0.0, %v4827
    %v5074 = vsel %vm5010, 0.0, %v4826
    %v5075 = vsel %vm5011, 0.0, %v4825
    %v5076 = vsel %vm5012, 0.0, %v4824
    %v5077 = vsel %vm5013, 0.0, %v4823
    %v5078 = vsel %vm5014, 0.0, %v4886
    %v5079 = vpack.c.bf16 %v5016, %v5015
    %v5080 = vpack.c.bf16 %v5018, %v5017
    %v5081 = vpack.c.bf16 %v5020, %v5019
    %v5082 = vpack.c.bf16 %v5022, %v5021
    %v5083 = vpack.c.bf16 %v5024, %v5023
    %v5084 = vpack.c.bf16 %v5026, %v5025
    %v5085 = vpack.c.bf16 %v5028, %v5027
    %v5086 = vpack.c.bf16 %v5030, %v5029
    %v5087 = vpack.c.bf16 %v5032, %v5031
    %v5088 = vpack.c.bf16 %v5034, %v5033
    %v5089 = vpack.c.bf16 %v5036, %v5035
    %v5090 = vpack.c.bf16 %v5038, %v5037
    %v5091 = vpack.c.bf16 %v5040, %v5039
    %v5092 = vpack.c.bf16 %v5042, %v5041
    %v5093 = vpack.c.bf16 %v5044, %v5043
    %v5094 = vpack.c.bf16 %v5046, %v5045
    %v5095 = vpack.c.bf16 %v5048, %v5047
    %v5096 = vpack.c.bf16 %v5050, %v5049
    %v5097 = vpack.c.bf16 %v5052, %v5051
    %v5098 = vpack.c.bf16 %v5054, %v5053
    %v5099 = vpack.c.bf16 %v5056, %v5055
    %v5100 = vpack.c.bf16 %v5058, %v5057
    %v5101 = vpack.c.bf16 %v5060, %v5059
    %v5102 = vpack.c.bf16 %v5062, %v5061
    %v5103 = vpack.c.bf16 %v5064, %v5063
    %v5104 = vpack.c.bf16 %v5066, %v5065
    %v5105 = vpack.c.bf16 %v5068, %v5067
    %v5106 = vpack.c.bf16 %v5070, %v5069
    %v5107 = vpack.c.bf16 %v5072, %v5071
    %v5108 = vpack.c.bf16 %v5074, %v5073
    %v5109 = vpack.c.bf16 %v5076, %v5075
    %v5110 = vpack.c.bf16 %v5078, %v5077
    %v5111 = vpack.c.bf16 %v4216, %v4215
    %v5112 = vpack.c.bf16 %v4218, %v4217
    %v5113 = vpack.c.bf16 %v4220, %v4219
    %v5114 = vpack.c.bf16 %v4222, %v4221
    %v5115 = vpack.c.bf16 %v4224, %v4223
    %v5116 = vpack.c.bf16 %v4226, %v4225
    %v5117 = vpack.c.bf16 %v4228, %v4227
    %v5118 = vpack.c.bf16 %v4230, %v4229
    %v5119 = vpack.c.bf16 %v4232, %v4231
    %v5120 = vpack.c.bf16 %v4234, %v4233
    %v5121 = vpack.c.bf16 %v4236, %v4235
    %v5122 = vpack.c.bf16 %v4238, %v4237
    %v5123 = vpack.c.bf16 %v4240, %v4239
    %v5124 = vpack.c.bf16 %v4242, %v4241
    %v5125 = vpack.c.bf16 %v4244, %v4243
    %v5126 = vpack.c.bf16 %v4246, %v4245
    %v5127 = vpack.c.bf16 %v4248, %v4247
    %v5128 = vpack.c.bf16 %v4250, %v4249
    %v5129 = vpack.c.bf16 %v4252, %v4251
    %v5130 = vpack.c.bf16 %v4254, %v4253
    %v5131 = vpack.c.bf16 %v4256, %v4255
    %v5132 = vpack.c.bf16 %v4258, %v4257
    %v5133 = vpack.c.bf16 %v4260, %v4259
    %v5134 = vpack.c.bf16 %v4262, %v4261
    %v5135 = vpack.c.bf16 %v4264, %v4263
    %v5136 = vpack.c.bf16 %v4266, %v4265
    %v5137 = vpack.c.bf16 %v4268, %v4267
    %v5138 = vpack.c.bf16 %v4270, %v4269
    %v5139 = vpack.c.bf16 %v4272, %v4271
    %v5140 = vpack.c.bf16 %v4274, %v4273
    %v5141 = vpack.c.bf16 %v4276, %v4275
    %v5142 = vpack.c.bf16 %v4278, %v4277
    %v5143 = vld [vmem:[%s3] sm:$0xf]
    %v5144 = vld [vmem:[%s3 + $0x4] sm:$0xf]
    %v5145 = vld [vmem:[%s3 + $0x8] sm:$0xf]
    %v5146 = vld [vmem:[%s3 + $0xc] sm:$0xf]
    %v5147 = vld [vmem:[%s3 + $0x10] sm:$0xf]
    %v5148 = vld [vmem:[%s3 + $0x14] sm:$0xf]
    %v5149 = vld [vmem:[%s3 + $0x18] sm:$0xf]
    %v5150 = vld [vmem:[%s3 + $0x1c] sm:$0xf]
    %v5151 = vld [vmem:[%s4] sm:$0xf]
    %v5152 = vld [vmem:[%s4 + $0x4] sm:$0xf]
    %v5153 = vld [vmem:[%s4 + $0x8] sm:$0xf]
    %v5154 = vld [vmem:[%s4 + $0xc] sm:$0xf]
    %v5155 = vld [vmem:[%s4 + $0x10] sm:$0xf]
    %v5156 = vld [vmem:[%s4 + $0x14] sm:$0xf]
    %v5157 = vld [vmem:[%s4 + $0x18] sm:$0xf]
    %v5158 = vld [vmem:[%s4 + $0x1c] sm:$0xf]
    %v5167 = vunpack.c.l.b16 %v5151
    %v5168 = vunpack.c.l.b16 %v5152
    %v5169 = vunpack.c.l.b16 %v5153
    %v5170 = vunpack.c.l.b16 %v5154
    %v5171 = vunpack.c.l.b16 %v5155
    %v5172 = vunpack.c.l.b16 %v5156
    %v5173 = vunpack.c.l.b16 %v5157
    %v5174 = vunpack.c.l.b16 %v5158
    %v5175 = vpack.c.b16 %v5168, %v5167
    %v5176 = vpack.c.b16 %v5170, %v5169
    %v5177 = vpack.c.b16 %v5172, %v5171
    %v5178 = vpack.c.b16 %v5174, %v5173
    %vm5183 = vcmask 523264
    %v5185 = vsel %vm5183, %v5111, 0
    %v5188 = vsel %vm5183, %v5112, 0
    %v5191 = vsel %vm5183, %v5113, 0
    %v5194 = vsel %vm5183, %v5114, 0
    %v5197 = vsel %vm5183, %v5115, 0
    %v5200 = vsel %vm5183, %v5116, 0
    %v5203 = vsel %vm5183, %v5117, 0
    %v5206 = vsel %vm5183, %v5118, 0
    %v5209 = vsel %vm5183, %v5119, 0
    %v5212 = vsel %vm5183, %v5120, 0
    %v5215 = vsel %vm5183, %v5121, 0
    %v5218 = vsel %vm5183, %v5122, 0
    %v5221 = vsel %vm5183, %v5123, 0
    %v5224 = vsel %vm5183, %v5124, 0
    %v5227 = vsel %vm5183, %v5125, 0
    %v5230 = vsel %vm5183, %v5126, 0
    %v5233 = vsel %vm5183, %v5127, 0
    %v5236 = vsel %vm5183, %v5128, 0
    %v5239 = vsel %vm5183, %v5129, 0
    %v5242 = vsel %vm5183, %v5130, 0
    %v5245 = vsel %vm5183, %v5131, 0
    %v5248 = vsel %vm5183, %v5132, 0
    %v5251 = vsel %vm5183, %v5133, 0
    %v5254 = vsel %vm5183, %v5134, 0
    %v5257 = vsel %vm5183, %v5135, 0
    %v5260 = vsel %vm5183, %v5136, 0
    %v5263 = vsel %vm5183, %v5137, 0
    %v5266 = vsel %vm5183, %v5138, 0
    %v5269 = vsel %vm5183, %v5139, 0
    %v5272 = vsel %vm5183, %v5140, 0
    %v5275 = vsel %vm5183, %v5141, 0
    %v5278 = vsel %vm5183, %v5142, 0
    %5280 = vmatpush.bf16.msra.mxu0 0
    %5281 = vmatpush.bf16.msra.mxu0 0
    %5282 = vmatpush.bf16.msra.mxu0 0
    %5283 = vmatpush.bf16.msra.mxu0 0
    %5284 = vmatpush.bf16.msra.mxu0 %v5178
    %5285 = vmatpush.bf16.msra.mxu0 %v5177
    %5286 = vmatpush.bf16.msra.mxu0 %v5176
    %5287 = vmatpush.bf16.msra.mxu0 %v5175
    %5288 = vmatmul.bf16.gmra.mxu0 %v5185
    %v5289 = vpop.f32.mrf.mxu0
    %v5290 = vadd.f32 0.0, %v5289
    %v5291 = vpop.f32.mrf.mxu0
    %v5292 = vadd.f32 0.0, %v5291
    %5293 = vmatmul.bf16.gmra.mxu0 %v5188
    %v5294 = vpop.f32.mrf.mxu0
    %v5295 = vadd.f32 0.0, %v5294
    %v5296 = vpop.f32.mrf.mxu0
    %v5297 = vadd.f32 0.0, %v5296
    %5298 = vmatmul.bf16.gmra.mxu0 %v5191
    %v5299 = vpop.f32.mrf.mxu0
    %v5300 = vadd.f32 0.0, %v5299
    %v5301 = vpop.f32.mrf.mxu0
    %v5302 = vadd.f32 0.0, %v5301
    %5303 = vmatmul.bf16.gmra.mxu0 %v5194
    %v5304 = vpop.f32.mrf.mxu0
    %v5305 = vadd.f32 0.0, %v5304
    %v5306 = vpop.f32.mrf.mxu0
    %v5307 = vadd.f32 0.0, %v5306
    %5308 = vmatmul.bf16.gmra.mxu0 %v5197
    %v5309 = vpop.f32.mrf.mxu0
    %v5310 = vadd.f32 0.0, %v5309
    %v5311 = vpop.f32.mrf.mxu0
    %v5312 = vadd.f32 0.0, %v5311
    %5313 = vmatmul.bf16.gmra.mxu0 %v5200
    %v5314 = vpop.f32.mrf.mxu0
    %v5315 = vadd.f32 0.0, %v5314
    %v5316 = vpop.f32.mrf.mxu0
    %v5317 = vadd.f32 0.0, %v5316
    %5318 = vmatmul.bf16.gmra.mxu0 %v5203
    %v5319 = vpop.f32.mrf.mxu0
    %v5320 = vadd.f32 0.0, %v5319
    %v5321 = vpop.f32.mrf.mxu0
    %v5322 = vadd.f32 0.0, %v5321
    %5323 = vmatmul.bf16.gmra.mxu0 %v5206
    %v5324 = vpop.f32.mrf.mxu0
    %v5325 = vadd.f32 0.0, %v5324
    %v5326 = vpop.f32.mrf.mxu0
    %v5327 = vadd.f32 0.0, %v5326
    %5328 = vmatmul.bf16.gmra.mxu0 %v5209
    %v5329 = vpop.f32.mrf.mxu0
    %v5330 = vadd.f32 0.0, %v5329
    %v5331 = vpop.f32.mrf.mxu0
    %v5332 = vadd.f32 0.0, %v5331
    %5333 = vmatmul.bf16.gmra.mxu0 %v5212
    %v5334 = vpop.f32.mrf.mxu0
    %v5335 = vadd.f32 0.0, %v5334
    %v5336 = vpop.f32.mrf.mxu0
    %v5337 = vadd.f32 0.0, %v5336
    %5338 = vmatmul.bf16.gmra.mxu0 %v5215
    %v5339 = vpop.f32.mrf.mxu0
    %v5340 = vadd.f32 0.0, %v5339
    %v5341 = vpop.f32.mrf.mxu0
    %v5342 = vadd.f32 0.0, %v5341
    %5343 = vmatmul.bf16.gmra.mxu0 %v5218
    %v5344 = vpop.f32.mrf.mxu0
    %v5345 = vadd.f32 0.0, %v5344
    %v5346 = vpop.f32.mrf.mxu0
    %v5347 = vadd.f32 0.0, %v5346
    %5348 = vmatmul.bf16.gmra.mxu0 %v5221
    %v5349 = vpop.f32.mrf.mxu0
    %v5350 = vadd.f32 0.0, %v5349
    %v5351 = vpop.f32.mrf.mxu0
    %v5352 = vadd.f32 0.0, %v5351
    %5353 = vmatmul.bf16.gmra.mxu0 %v5224
    %v5354 = vpop.f32.mrf.mxu0
    %v5355 = vadd.f32 0.0, %v5354
    %v5356 = vpop.f32.mrf.mxu0
    %v5357 = vadd.f32 0.0, %v5356
    %5358 = vmatmul.bf16.gmra.mxu0 %v5227
    %v5359 = vpop.f32.mrf.mxu0
    %v5360 = vadd.f32 0.0, %v5359
    %v5361 = vpop.f32.mrf.mxu0
    %v5362 = vadd.f32 0.0, %v5361
    %5363 = vmatmul.bf16.gmra.mxu0 %v5230
    %v5364 = vpop.f32.mrf.mxu0
    %v5365 = vadd.f32 0.0, %v5364
    %v5366 = vpop.f32.mrf.mxu0
    %v5367 = vadd.f32 0.0, %v5366
    %5368 = vmatmul.bf16.gmra.mxu0 %v5233
    %v5369 = vpop.f32.mrf.mxu0
    %v5370 = vadd.f32 0.0, %v5369
    %v5371 = vpop.f32.mrf.mxu0
    %v5372 = vadd.f32 0.0, %v5371
    %5373 = vmatmul.bf16.gmra.mxu0 %v5236
    %v5374 = vpop.f32.mrf.mxu0
    %v5375 = vadd.f32 0.0, %v5374
    %v5376 = vpop.f32.mrf.mxu0
    %v5377 = vadd.f32 0.0, %v5376
    %5378 = vmatmul.bf16.gmra.mxu0 %v5239
    %v5379 = vpop.f32.mrf.mxu0
    %v5380 = vadd.f32 0.0, %v5379
    %v5381 = vpop.f32.mrf.mxu0
    %v5382 = vadd.f32 0.0, %v5381
    %5383 = vmatmul.bf16.gmra.mxu0 %v5242
    %v5384 = vpop.f32.mrf.mxu0
    %v5385 = vadd.f32 0.0, %v5384
    %v5386 = vpop.f32.mrf.mxu0
    %v5387 = vadd.f32 0.0, %v5386
    %5388 = vmatmul.bf16.gmra.mxu0 %v5245
    %v5389 = vpop.f32.mrf.mxu0
    %v5390 = vadd.f32 0.0, %v5389
    %v5391 = vpop.f32.mrf.mxu0
    %v5392 = vadd.f32 0.0, %v5391
    %5393 = vmatmul.bf16.gmra.mxu0 %v5248
    %v5394 = vpop.f32.mrf.mxu0
    %v5395 = vadd.f32 0.0, %v5394
    %v5396 = vpop.f32.mrf.mxu0
    %v5397 = vadd.f32 0.0, %v5396
    %5398 = vmatmul.bf16.gmra.mxu0 %v5251
    %v5399 = vpop.f32.mrf.mxu0
    %v5400 = vadd.f32 0.0, %v5399
    %v5401 = vpop.f32.mrf.mxu0
    %v5402 = vadd.f32 0.0, %v5401
    %5403 = vmatmul.bf16.gmra.mxu0 %v5254
    %v5404 = vpop.f32.mrf.mxu0
    %v5405 = vadd.f32 0.0, %v5404
    %v5406 = vpop.f32.mrf.mxu0
    %v5407 = vadd.f32 0.0, %v5406
    %5408 = vmatmul.bf16.gmra.mxu0 %v5257
    %v5409 = vpop.f32.mrf.mxu0
    %v5410 = vadd.f32 0.0, %v5409
    %v5411 = vpop.f32.mrf.mxu0
    %v5412 = vadd.f32 0.0, %v5411
    %5413 = vmatmul.bf16.gmra.mxu0 %v5260
    %v5414 = vpop.f32.mrf.mxu0
    %v5415 = vadd.f32 0.0, %v5414
    %v5416 = vpop.f32.mrf.mxu0
    %v5417 = vadd.f32 0.0, %v5416
    %5418 = vmatmul.bf16.gmra.mxu0 %v5263
    %v5419 = vpop.f32.mrf.mxu0
    %v5420 = vadd.f32 0.0, %v5419
    %v5421 = vpop.f32.mrf.mxu0
    %v5422 = vadd.f32 0.0, %v5421
    %5423 = vmatmul.bf16.gmra.mxu0 %v5266
    %v5424 = vpop.f32.mrf.mxu0
    %v5425 = vadd.f32 0.0, %v5424
    %v5426 = vpop.f32.mrf.mxu0
    %v5427 = vadd.f32 0.0, %v5426
    %5428 = vmatmul.bf16.gmra.mxu0 %v5269
    %v5429 = vpop.f32.mrf.mxu0
    %v5430 = vadd.f32 0.0, %v5429
    %v5431 = vpop.f32.mrf.mxu0
    %v5432 = vadd.f32 0.0, %v5431
    %5433 = vmatmul.bf16.gmra.mxu0 %v5272
    %v5434 = vpop.f32.mrf.mxu0
    %v5435 = vadd.f32 0.0, %v5434
    %v5436 = vpop.f32.mrf.mxu0
    %v5437 = vadd.f32 0.0, %v5436
    %5438 = vmatmul.bf16.gmra.mxu0 %v5275
    %v5439 = vpop.f32.mrf.mxu0
    %v5440 = vadd.f32 0.0, %v5439
    %v5441 = vpop.f32.mrf.mxu0
    %v5442 = vadd.f32 0.0, %v5441
    %5443 = vmatmul.bf16.gmra.mxu0 %v5278
    %v5444 = vpop.f32.mrf.mxu0
    %v5445 = vadd.f32 0.0, %v5444
    %v5446 = vpop.f32.mrf.mxu0
    %v5447 = vadd.f32 0.0, %v5446
    %5448 = vdwg.mxu0
    %v5457 = vunpack.c.l.b16 %v5143
    %v5458 = vunpack.c.l.b16 %v5144
    %v5459 = vunpack.c.l.b16 %v5145
    %v5460 = vunpack.c.l.b16 %v5146
    %v5461 = vunpack.c.l.b16 %v5147
    %v5462 = vunpack.c.l.b16 %v5148
    %v5463 = vunpack.c.l.b16 %v5149
    %v5464 = vunpack.c.l.b16 %v5150
    %v5465 = vpack.c.b16 %v5458, %v5457
    %v5466 = vpack.c.b16 %v5460, %v5459
    %v5467 = vpack.c.b16 %v5462, %v5461
    %v5468 = vpack.c.b16 %v5464, %v5463
    %v5474 = vsel %vm5183, %v4663, 0
    %v5477 = vsel %vm5183, %v4664, 0
    %v5480 = vsel %vm5183, %v4665, 0
    %v5483 = vsel %vm5183, %v4666, 0
    %v5486 = vsel %vm5183, %v4667, 0
    %v5489 = vsel %vm5183, %v4668, 0
    %v5492 = vsel %vm5183, %v4669, 0
    %v5495 = vsel %vm5183, %v4670, 0
    %v5498 = vsel %vm5183, %v4671, 0
    %v5501 = vsel %vm5183, %v4672, 0
    %v5504 = vsel %vm5183, %v4673, 0
    %v5507 = vsel %vm5183, %v4674, 0
    %v5510 = vsel %vm5183, %v4675, 0
    %v5513 = vsel %vm5183, %v4676, 0
    %v5516 = vsel %vm5183, %v4677, 0
    %v5519 = vsel %vm5183, %v4678, 0
    %v5522 = vsel %vm5183, %v4679, 0
    %v5525 = vsel %vm5183, %v4680, 0
    %v5528 = vsel %vm5183, %v4681, 0
    %v5531 = vsel %vm5183, %v4682, 0
    %v5534 = vsel %vm5183, %v4683, 0
    %v5537 = vsel %vm5183, %v4684, 0
    %v5540 = vsel %vm5183, %v4685, 0
    %v5543 = vsel %vm5183, %v4686, 0
    %v5546 = vsel %vm5183, %v4687, 0
    %v5549 = vsel %vm5183, %v4688, 0
    %v5552 = vsel %vm5183, %v4689, 0
    %v5555 = vsel %vm5183, %v4690, 0
    %v5558 = vsel %vm5183, %v4691, 0
    %v5561 = vsel %vm5183, %v4692, 0
    %v5564 = vsel %vm5183, %v4693, 0
    %v5567 = vsel %vm5183, %v4694, 0
    %5569 = vmatpush.bf16.msra.mxu0 0
    %5570 = vmatpush.bf16.msra.mxu0 0
    %5571 = vmatpush.bf16.msra.mxu0 0
    %5572 = vmatpush.bf16.msra.mxu0 0
    %5573 = vmatpush.bf16.msra.mxu0 %v5468
    %5574 = vmatpush.bf16.msra.mxu0 %v5467
    %5575 = vmatpush.bf16.msra.mxu0 %v5466
    %5576 = vmatpush.bf16.msra.mxu0 %v5465
    %5577 = vmatmul.bf16.gmra.mxu0 %v5474
    %v5578 = vpop.f32.mrf.mxu0
    %v5579 = vadd.f32 %v5290, %v5578
    %v5580 = vpop.f32.mrf.mxu0
    %v5581 = vadd.f32 %v5292, %v5580
    %5582 = vmatmul.bf16.gmra.mxu0 %v5477
    %v5583 = vpop.f32.mrf.mxu0
    %v5584 = vadd.f32 %v5295, %v5583
    %v5585 = vpop.f32.mrf.mxu0
    %v5586 = vadd.f32 %v5297, %v5585
    %5587 = vmatmul.bf16.gmra.mxu0 %v5480
    %v5588 = vpop.f32.mrf.mxu0
    %v5589 = vadd.f32 %v5300, %v5588
    %v5590 = vpop.f32.mrf.mxu0
    %v5591 = vadd.f32 %v5302, %v5590
    %5592 = vmatmul.bf16.gmra.mxu0 %v5483
    %v5593 = vpop.f32.mrf.mxu0
    %v5594 = vadd.f32 %v5305, %v5593
    %v5595 = vpop.f32.mrf.mxu0
    %v5596 = vadd.f32 %v5307, %v5595
    %5597 = vmatmul.bf16.gmra.mxu0 %v5486
    %v5598 = vpop.f32.mrf.mxu0
    %v5599 = vadd.f32 %v5310, %v5598
    %v5600 = vpop.f32.mrf.mxu0
    %v5601 = vadd.f32 %v5312, %v5600
    %5602 = vmatmul.bf16.gmra.mxu0 %v5489
    %v5603 = vpop.f32.mrf.mxu0
    %v5604 = vadd.f32 %v5315, %v5603
    %v5605 = vpop.f32.mrf.mxu0
    %v5606 = vadd.f32 %v5317, %v5605
    %5607 = vmatmul.bf16.gmra.mxu0 %v5492
    %v5608 = vpop.f32.mrf.mxu0
    %v5609 = vadd.f32 %v5320, %v5608
    %v5610 = vpop.f32.mrf.mxu0
    %v5611 = vadd.f32 %v5322, %v5610
    %5612 = vmatmul.bf16.gmra.mxu0 %v5495
    %v5613 = vpop.f32.mrf.mxu0
    %v5614 = vadd.f32 %v5325, %v5613
    %v5615 = vpop.f32.mrf.mxu0
    %v5616 = vadd.f32 %v5327, %v5615
    %5617 = vmatmul.bf16.gmra.mxu0 %v5498
    %v5618 = vpop.f32.mrf.mxu0
    %v5619 = vadd.f32 %v5330, %v5618
    %v5620 = vpop.f32.mrf.mxu0
    %v5621 = vadd.f32 %v5332, %v5620
    %5622 = vmatmul.bf16.gmra.mxu0 %v5501
    %v5623 = vpop.f32.mrf.mxu0
    %v5624 = vadd.f32 %v5335, %v5623
    %v5625 = vpop.f32.mrf.mxu0
    %v5626 = vadd.f32 %v5337, %v5625
    %5627 = vmatmul.bf16.gmra.mxu0 %v5504
    %v5628 = vpop.f32.mrf.mxu0
    %v5629 = vadd.f32 %v5340, %v5628
    %v5630 = vpop.f32.mrf.mxu0
    %v5631 = vadd.f32 %v5342, %v5630
    %5632 = vmatmul.bf16.gmra.mxu0 %v5507
    %v5633 = vpop.f32.mrf.mxu0
    %v5634 = vadd.f32 %v5345, %v5633
    %v5635 = vpop.f32.mrf.mxu0
    %v5636 = vadd.f32 %v5347, %v5635
    %5637 = vmatmul.bf16.gmra.mxu0 %v5510
    %v5638 = vpop.f32.mrf.mxu0
    %v5639 = vadd.f32 %v5350, %v5638
    %v5640 = vpop.f32.mrf.mxu0
    %v5641 = vadd.f32 %v5352, %v5640
    %5642 = vmatmul.bf16.gmra.mxu0 %v5513
    %v5643 = vpop.f32.mrf.mxu0
    %v5644 = vadd.f32 %v5355, %v5643
    %v5645 = vpop.f32.mrf.mxu0
    %v5646 = vadd.f32 %v5357, %v5645
    %5647 = vmatmul.bf16.gmra.mxu0 %v5516
    %v5648 = vpop.f32.mrf.mxu0
    %v5649 = vadd.f32 %v5360, %v5648
    %v5650 = vpop.f32.mrf.mxu0
    %v5651 = vadd.f32 %v5362, %v5650
    %5652 = vmatmul.bf16.gmra.mxu0 %v5519
    %v5653 = vpop.f32.mrf.mxu0
    %v5654 = vadd.f32 %v5365, %v5653
    %v5655 = vpop.f32.mrf.mxu0
    %v5656 = vadd.f32 %v5367, %v5655
    %5657 = vmatmul.bf16.gmra.mxu0 %v5522
    %v5658 = vpop.f32.mrf.mxu0
    %v5659 = vadd.f32 %v5370, %v5658
    %v5660 = vpop.f32.mrf.mxu0
    %v5661 = vadd.f32 %v5372, %v5660
    %5662 = vmatmul.bf16.gmra.mxu0 %v5525
    %v5663 = vpop.f32.mrf.mxu0
    %v5664 = vadd.f32 %v5375, %v5663
    %v5665 = vpop.f32.mrf.mxu0
    %v5666 = vadd.f32 %v5377, %v5665
    %5667 = vmatmul.bf16.gmra.mxu0 %v5528
    %v5668 = vpop.f32.mrf.mxu0
    %v5669 = vadd.f32 %v5380, %v5668
    %v5670 = vpop.f32.mrf.mxu0
    %v5671 = vadd.f32 %v5382, %v5670
    %5672 = vmatmul.bf16.gmra.mxu0 %v5531
    %v5673 = vpop.f32.mrf.mxu0
    %v5674 = vadd.f32 %v5385, %v5673
    %v5675 = vpop.f32.mrf.mxu0
    %v5676 = vadd.f32 %v5387, %v5675
    %5677 = vmatmul.bf16.gmra.mxu0 %v5534
    %v5678 = vpop.f32.mrf.mxu0
    %v5679 = vadd.f32 %v5390, %v5678
    %v5680 = vpop.f32.mrf.mxu0
    %v5681 = vadd.f32 %v5392, %v5680
    %5682 = vmatmul.bf16.gmra.mxu0 %v5537
    %v5683 = vpop.f32.mrf.mxu0
    %v5684 = vadd.f32 %v5395, %v5683
    %v5685 = vpop.f32.mrf.mxu0
    %v5686 = vadd.f32 %v5397, %v5685
    %5687 = vmatmul.bf16.gmra.mxu0 %v5540
    %v5688 = vpop.f32.mrf.mxu0
    %v5689 = vadd.f32 %v5400, %v5688
    %v5690 = vpop.f32.mrf.mxu0
    %v5691 = vadd.f32 %v5402, %v5690
    %5692 = vmatmul.bf16.gmra.mxu0 %v5543
    %v5693 = vpop.f32.mrf.mxu0
    %v5694 = vadd.f32 %v5405, %v5693
    %v5695 = vpop.f32.mrf.mxu0
    %v5696 = vadd.f32 %v5407, %v5695
    %5697 = vmatmul.bf16.gmra.mxu0 %v5546
    %v5698 = vpop.f32.mrf.mxu0
    %v5699 = vadd.f32 %v5410, %v5698
    %v5700 = vpop.f32.mrf.mxu0
    %v5701 = vadd.f32 %v5412, %v5700
    %5702 = vmatmul.bf16.gmra.mxu0 %v5549
    %v5703 = vpop.f32.mrf.mxu0
    %v5704 = vadd.f32 %v5415, %v5703
    %v5705 = vpop.f32.mrf.mxu0
    %v5706 = vadd.f32 %v5417, %v5705
    %5707 = vmatmul.bf16.gmra.mxu0 %v5552
    %v5708 = vpop.f32.mrf.mxu0
    %v5709 = vadd.f32 %v5420, %v5708
    %v5710 = vpop.f32.mrf.mxu0
    %v5711 = vadd.f32 %v5422, %v5710
    %5712 = vmatmul.bf16.gmra.mxu0 %v5555
    %v5713 = vpop.f32.mrf.mxu0
    %v5714 = vadd.f32 %v5425, %v5713
    %v5715 = vpop.f32.mrf.mxu0
    %v5716 = vadd.f32 %v5427, %v5715
    %5717 = vmatmul.bf16.gmra.mxu0 %v5558
    %v5718 = vpop.f32.mrf.mxu0
    %v5719 = vadd.f32 %v5430, %v5718
    %v5720 = vpop.f32.mrf.mxu0
    %v5721 = vadd.f32 %v5432, %v5720
    %5722 = vmatmul.bf16.gmra.mxu0 %v5561
    %v5723 = vpop.f32.mrf.mxu0
    %v5724 = vadd.f32 %v5435, %v5723
    %v5725 = vpop.f32.mrf.mxu0
    %v5726 = vadd.f32 %v5437, %v5725
    %5727 = vmatmul.bf16.gmra.mxu0 %v5564
    %v5728 = vpop.f32.mrf.mxu0
    %v5729 = vadd.f32 %v5440, %v5728
    %v5730 = vpop.f32.mrf.mxu0
    %v5731 = vadd.f32 %v5442, %v5730
    %5732 = vmatmul.bf16.gmra.mxu0 %v5567
    %v5733 = vpop.f32.mrf.mxu0
    %v5734 = vadd.f32 %v5445, %v5733
    %v5735 = vpop.f32.mrf.mxu0
    %v5736 = vadd.f32 %v5447, %v5735
    %5737 = vdwg.mxu0
    %v5738 = vld [vmem:[%s5] sm:$0xf]
    %v5739 = vld [vmem:[%s5 + $0x4] sm:$0xf]
    %v5740 = vld [vmem:[%s5 + $0x8] sm:$0xf]
    %v5741 = vld [vmem:[%s5 + $0xc] sm:$0xf]
    %v5742 = vld [vmem:[%s5 + $0x10] sm:$0xf]
    %v5743 = vld [vmem:[%s5 + $0x14] sm:$0xf]
    %v5744 = vld [vmem:[%s5 + $0x18] sm:$0xf]
    %v5745 = vld [vmem:[%s5 + $0x1c] sm:$0xf]
    %v5754 = vunpack.c.l.b16 %v5738
    %v5755 = vunpack.c.l.b16 %v5739
    %v5756 = vunpack.c.l.b16 %v5740
    %v5757 = vunpack.c.l.b16 %v5741
    %v5758 = vunpack.c.l.b16 %v5742
    %v5759 = vunpack.c.l.b16 %v5743
    %v5760 = vunpack.c.l.b16 %v5744
    %v5761 = vunpack.c.l.b16 %v5745
    %v5762 = vpack.c.b16 %v5755, %v5754
    %v5763 = vpack.c.b16 %v5757, %v5756
    %v5764 = vpack.c.b16 %v5759, %v5758
    %v5765 = vpack.c.b16 %v5761, %v5760
    %v5771 = vsel %vm5183, %v5079, 0
    %v5774 = vsel %vm5183, %v5080, 0
    %v5777 = vsel %vm5183, %v5081, 0
    %v5780 = vsel %vm5183, %v5082, 0
    %v5783 = vsel %vm5183, %v5083, 0
    %v5786 = vsel %vm5183, %v5084, 0
    %v5789 = vsel %vm5183, %v5085, 0
    %v5792 = vsel %vm5183, %v5086, 0
    %v5795 = vsel %vm5183, %v5087, 0
    %v5798 = vsel %vm5183, %v5088, 0
    %v5801 = vsel %vm5183, %v5089, 0
    %v5804 = vsel %vm5183, %v5090, 0
    %v5807 = vsel %vm5183, %v5091, 0
    %v5810 = vsel %vm5183, %v5092, 0
    %v5813 = vsel %vm5183, %v5093, 0
    %v5816 = vsel %vm5183, %v5094, 0
    %v5819 = vsel %vm5183, %v5095, 0
    %v5822 = vsel %vm5183, %v5096, 0
    %v5825 = vsel %vm5183, %v5097, 0
    %v5828 = vsel %vm5183, %v5098, 0
    %v5831 = vsel %vm5183, %v5099, 0
    %v5834 = vsel %vm5183, %v5100, 0
    %v5837 = vsel %vm5183, %v5101, 0
    %v5840 = vsel %vm5183, %v5102, 0
    %v5843 = vsel %vm5183, %v5103, 0
    %v5846 = vsel %vm5183, %v5104, 0
    %v5849 = vsel %vm5183, %v5105, 0
    %v5852 = vsel %vm5183, %v5106, 0
    %v5855 = vsel %vm5183, %v5107, 0
    %v5858 = vsel %vm5183, %v5108, 0
    %v5861 = vsel %vm5183, %v5109, 0
    %v5864 = vsel %vm5183, %v5110, 0
    %5866 = vmatpush.bf16.msra.mxu0 0
    %5867 = vmatpush.bf16.msra.mxu0 0
    %5868 = vmatpush.bf16.msra.mxu0 0
    %5869 = vmatpush.bf16.msra.mxu0 0
    %5870 = vmatpush.bf16.msra.mxu0 %v5765
    %5871 = vmatpush.bf16.msra.mxu0 %v5764
    %5872 = vmatpush.bf16.msra.mxu0 %v5763
    %5873 = vmatpush.bf16.msra.mxu0 %v5762
    %5874 = vmatmul.bf16.gmra.mxu0 %v5771
    %v5875 = vpop.f32.mrf.mxu0
    %v5876 = vadd.f32 0.0, %v5875
    %v5877 = vpop.f32.mrf.mxu0
    %v5878 = vadd.f32 0.0, %v5877
    %5879 = vmatmul.bf16.gmra.mxu0 %v5774
    %v5880 = vpop.f32.mrf.mxu0
    %v5881 = vadd.f32 0.0, %v5880
    %v5882 = vpop.f32.mrf.mxu0
    %v5883 = vadd.f32 0.0, %v5882
    %5884 = vmatmul.bf16.gmra.mxu0 %v5777
    %v5885 = vpop.f32.mrf.mxu0
    %v5886 = vadd.f32 0.0, %v5885
    %v5887 = vpop.f32.mrf.mxu0
    %v5888 = vadd.f32 0.0, %v5887
    %5889 = vmatmul.bf16.gmra.mxu0 %v5780
    %v5890 = vpop.f32.mrf.mxu0
    %v5891 = vadd.f32 0.0, %v5890
    %v5892 = vpop.f32.mrf.mxu0
    %v5893 = vadd.f32 0.0, %v5892
    %5894 = vmatmul.bf16.gmra.mxu0 %v5783
    %v5895 = vpop.f32.mrf.mxu0
    %v5896 = vadd.f32 0.0, %v5895
    %v5897 = vpop.f32.mrf.mxu0
    %v5898 = vadd.f32 0.0, %v5897
    %5899 = vmatmul.bf16.gmra.mxu0 %v5786
    %v5900 = vpop.f32.mrf.mxu0
    %v5901 = vadd.f32 0.0, %v5900
    %v5902 = vpop.f32.mrf.mxu0
    %v5903 = vadd.f32 0.0, %v5902
    %5904 = vmatmul.bf16.gmra.mxu0 %v5789
    %v5905 = vpop.f32.mrf.mxu0
    %v5906 = vadd.f32 0.0, %v5905
    %v5907 = vpop.f32.mrf.mxu0
    %v5908 = vadd.f32 0.0, %v5907
    %5909 = vmatmul.bf16.gmra.mxu0 %v5792
    %v5910 = vpop.f32.mrf.mxu0
    %v5911 = vadd.f32 0.0, %v5910
    %v5912 = vpop.f32.mrf.mxu0
    %v5913 = vadd.f32 0.0, %v5912
    %5914 = vmatmul.bf16.gmra.mxu0 %v5795
    %v5915 = vpop.f32.mrf.mxu0
    %v5916 = vadd.f32 0.0, %v5915
    %v5917 = vpop.f32.mrf.mxu0
    %v5918 = vadd.f32 0.0, %v5917
    %5919 = vmatmul.bf16.gmra.mxu0 %v5798
    %v5920 = vpop.f32.mrf.mxu0
    %v5921 = vadd.f32 0.0, %v5920
    %v5922 = vpop.f32.mrf.mxu0
    %v5923 = vadd.f32 0.0, %v5922
    %5924 = vmatmul.bf16.gmra.mxu0 %v5801
    %v5925 = vpop.f32.mrf.mxu0
    %v5926 = vadd.f32 0.0, %v5925
    %v5927 = vpop.f32.mrf.mxu0
    %v5928 = vadd.f32 0.0, %v5927
    %5929 = vmatmul.bf16.gmra.mxu0 %v5804
    %v5930 = vpop.f32.mrf.mxu0
    %v5931 = vadd.f32 0.0, %v5930
    %v5932 = vpop.f32.mrf.mxu0
    %v5933 = vadd.f32 0.0, %v5932
    %5934 = vmatmul.bf16.gmra.mxu0 %v5807
    %v5935 = vpop.f32.mrf.mxu0
    %v5936 = vadd.f32 0.0, %v5935
    %v5937 = vpop.f32.mrf.mxu0
    %v5938 = vadd.f32 0.0, %v5937
    %5939 = vmatmul.bf16.gmra.mxu0 %v5810
    %v5940 = vpop.f32.mrf.mxu0
    %v5941 = vadd.f32 0.0, %v5940
    %v5942 = vpop.f32.mrf.mxu0
    %v5943 = vadd.f32 0.0, %v5942
    %5944 = vmatmul.bf16.gmra.mxu0 %v5813
    %v5945 = vpop.f32.mrf.mxu0
    %v5946 = vadd.f32 0.0, %v5945
    %v5947 = vpop.f32.mrf.mxu0
    %v5948 = vadd.f32 0.0, %v5947
    %5949 = vmatmul.bf16.gmra.mxu0 %v5816
    %v5950 = vpop.f32.mrf.mxu0
    %v5951 = vadd.f32 0.0, %v5950
    %v5952 = vpop.f32.mrf.mxu0
    %v5953 = vadd.f32 0.0, %v5952
    %5954 = vmatmul.bf16.gmra.mxu0 %v5819
    %v5955 = vpop.f32.mrf.mxu0
    %v5956 = vadd.f32 0.0, %v5955
    %v5957 = vpop.f32.mrf.mxu0
    %v5958 = vadd.f32 0.0, %v5957
    %5959 = vmatmul.bf16.gmra.mxu0 %v5822
    %v5960 = vpop.f32.mrf.mxu0
    %v5961 = vadd.f32 0.0, %v5960
    %v5962 = vpop.f32.mrf.mxu0
    %v5963 = vadd.f32 0.0, %v5962
    %5964 = vmatmul.bf16.gmra.mxu0 %v5825
    %v5965 = vpop.f32.mrf.mxu0
    %v5966 = vadd.f32 0.0, %v5965
    %v5967 = vpop.f32.mrf.mxu0
    %v5968 = vadd.f32 0.0, %v5967
    %5969 = vmatmul.bf16.gmra.mxu0 %v5828
    %v5970 = vpop.f32.mrf.mxu0
    %v5971 = vadd.f32 0.0, %v5970
    %v5972 = vpop.f32.mrf.mxu0
    %v5973 = vadd.f32 0.0, %v5972
    %5974 = vmatmul.bf16.gmra.mxu0 %v5831
    %v5975 = vpop.f32.mrf.mxu0
    %v5976 = vadd.f32 0.0, %v5975
    %v5977 = vpop.f32.mrf.mxu0
    %v5978 = vadd.f32 0.0, %v5977
    %5979 = vmatmul.bf16.gmra.mxu0 %v5834
    %v5980 = vpop.f32.mrf.mxu0
    %v5981 = vadd.f32 0.0, %v5980
    %v5982 = vpop.f32.mrf.mxu0
    %v5983 = vadd.f32 0.0, %v5982
    %5984 = vmatmul.bf16.gmra.mxu0 %v5837
    %v5985 = vpop.f32.mrf.mxu0
    %v5986 = vadd.f32 0.0, %v5985
    %v5987 = vpop.f32.mrf.mxu0
    %v5988 = vadd.f32 0.0, %v5987
    %5989 = vmatmul.bf16.gmra.mxu0 %v5840
    %v5990 = vpop.f32.mrf.mxu0
    %v5991 = vadd.f32 0.0, %v5990
    %v5992 = vpop.f32.mrf.mxu0
    %v5993 = vadd.f32 0.0, %v5992
    %5994 = vmatmul.bf16.gmra.mxu0 %v5843
    %v5995 = vpop.f32.mrf.mxu0
    %v5996 = vadd.f32 0.0, %v5995
    %v5997 = vpop.f32.mrf.mxu0
    %v5998 = vadd.f32 0.0, %v5997
    %5999 = vmatmul.bf16.gmra.mxu0 %v5846
    %v6000 = vpop.f32.mrf.mxu0
    %v6001 = vadd.f32 0.0, %v6000
    %v6002 = vpop.f32.mrf.mxu0
    %v6003 = vadd.f32 0.0, %v6002
    %6004 = vmatmul.bf16.gmra.mxu0 %v5849
    %v6005 = vpop.f32.mrf.mxu0
    %v6006 = vadd.f32 0.0, %v6005
    %v6007 = vpop.f32.mrf.mxu0
    %v6008 = vadd.f32 0.0, %v6007
    %6009 = vmatmul.bf16.gmra.mxu0 %v5852
    %v6010 = vpop.f32.mrf.mxu0
    %v6011 = vadd.f32 0.0, %v6010
    %v6012 = vpop.f32.mrf.mxu0
    %v6013 = vadd.f32 0.0, %v6012
    %6014 = vmatmul.bf16.gmra.mxu0 %v5855
    %v6015 = vpop.f32.mrf.mxu0
    %v6016 = vadd.f32 0.0, %v6015
    %v6017 = vpop.f32.mrf.mxu0
    %v6018 = vadd.f32 0.0, %v6017
    %6019 = vmatmul.bf16.gmra.mxu0 %v5858
    %v6020 = vpop.f32.mrf.mxu0
    %v6021 = vadd.f32 0.0, %v6020
    %v6022 = vpop.f32.mrf.mxu0
    %v6023 = vadd.f32 0.0, %v6022
    %6024 = vmatmul.bf16.gmra.mxu0 %v5861
    %v6025 = vpop.f32.mrf.mxu0
    %v6026 = vadd.f32 0.0, %v6025
    %v6027 = vpop.f32.mrf.mxu0
    %v6028 = vadd.f32 0.0, %v6027
    %6029 = vmatmul.bf16.gmra.mxu0 %v5864
    %v6030 = vpop.f32.mrf.mxu0
    %v6031 = vadd.f32 0.0, %v6030
    %v6032 = vpop.f32.mrf.mxu0
    %v6033 = vadd.f32 0.0, %v6032
    %6034 = vdwg.mxu0
    %v6035 = vadd.f32 %v5579, %v5876
    %v6036 = vadd.f32 %v5581, %v5878
    %v6037 = vadd.f32 %v5584, %v5881
    %v6038 = vadd.f32 %v5586, %v5883
    %v6039 = vadd.f32 %v5589, %v5886
    %v6040 = vadd.f32 %v5591, %v5888
    %v6041 = vadd.f32 %v5594, %v5891
    %v6042 = vadd.f32 %v5596, %v5893
    %v6043 = vadd.f32 %v5599, %v5896
    %v6044 = vadd.f32 %v5601, %v5898
    %v6045 = vadd.f32 %v5604, %v5901
    %v6046 = vadd.f32 %v5606, %v5903
    %v6047 = vadd.f32 %v5609, %v5906
    %v6048 = vadd.f32 %v5611, %v5908
    %v6049 = vadd.f32 %v5614, %v5911
    %v6050 = vadd.f32 %v5616, %v5913
    %v6051 = vadd.f32 %v5619, %v5916
    %v6052 = vadd.f32 %v5621, %v5918
    %v6053 = vadd.f32 %v5624, %v5921
    %v6054 = vadd.f32 %v5626, %v5923
    %v6055 = vadd.f32 %v5629, %v5926
    %v6056 = vadd.f32 %v5631, %v5928
    %v6057 = vadd.f32 %v5634, %v5931
    %v6058 = vadd.f32 %v5636, %v5933
    %v6059 = vadd.f32 %v5639, %v5936
    %v6060 = vadd.f32 %v5641, %v5938
    %v6061 = vadd.f32 %v5644, %v5941
    %v6062 = vadd.f32 %v5646, %v5943
    %v6063 = vadd.f32 %v5649, %v5946
    %v6064 = vadd.f32 %v5651, %v5948
    %v6065 = vadd.f32 %v5654, %v5951
    %v6066 = vadd.f32 %v5656, %v5953
    %v6067 = vadd.f32 %v5659, %v5956
    %v6068 = vadd.f32 %v5661, %v5958
    %v6069 = vadd.f32 %v5664, %v5961
    %v6070 = vadd.f32 %v5666, %v5963
    %v6071 = vadd.f32 %v5669, %v5966
    %v6072 = vadd.f32 %v5671, %v5968
    %v6073 = vadd.f32 %v5674, %v5971
    %v6074 = vadd.f32 %v5676, %v5973
    %v6075 = vadd.f32 %v5679, %v5976
    %v6076 = vadd.f32 %v5681, %v5978
    %v6077 = vadd.f32 %v5684, %v5981
    %v6078 = vadd.f32 %v5686, %v5983
    %v6079 = vadd.f32 %v5689, %v5986
    %v6080 = vadd.f32 %v5691, %v5988
    %v6081 = vadd.f32 %v5694, %v5991
    %v6082 = vadd.f32 %v5696, %v5993
    %v6083 = vadd.f32 %v5699, %v5996
    %v6084 = vadd.f32 %v5701, %v5998
    %v6085 = vadd.f32 %v5704, %v6001
    %v6086 = vadd.f32 %v5706, %v6003
    %v6087 = vadd.f32 %v5709, %v6006
    %v6088 = vadd.f32 %v5711, %v6008
    %v6089 = vadd.f32 %v5714, %v6011
    %v6090 = vadd.f32 %v5716, %v6013
    %v6091 = vadd.f32 %v5719, %v6016
    %v6092 = vadd.f32 %v5721, %v6018
    %v6093 = vadd.f32 %v5724, %v6021
    %v6094 = vadd.f32 %v5726, %v6023
    %v6095 = vadd.f32 %v5729, %v6026
    %v6096 = vadd.f32 %v5731, %v6028
    %v6097 = vadd.f32 %v5734, %v6031
    %v6098 = vadd.f32 %v5736, %v6033
    %v6099 = vld [vmem:[%s6] sm:$0x1]
    %v6101 = vperm.slane %v6099, 0
    %v6103 = vadd.f32 %v6035, %v6101
    %v6104 = vadd.f32 %v6036, %v6101
    %v6105 = vadd.f32 %v6037, %v6101
    %v6106 = vadd.f32 %v6038, %v6101
    %v6107 = vadd.f32 %v6039, %v6101
    %v6108 = vadd.f32 %v6040, %v6101
    %v6109 = vadd.f32 %v6041, %v6101
    %v6110 = vadd.f32 %v6042, %v6101
    %v6111 = vadd.f32 %v6043, %v6101
    %v6112 = vadd.f32 %v6044, %v6101
    %v6113 = vadd.f32 %v6045, %v6101
    %v6114 = vadd.f32 %v6046, %v6101
    %v6115 = vadd.f32 %v6047, %v6101
    %v6116 = vadd.f32 %v6048, %v6101
    %v6117 = vadd.f32 %v6049, %v6101
    %v6118 = vadd.f32 %v6050, %v6101
    %v6119 = vadd.f32 %v6051, %v6101
    %v6120 = vadd.f32 %v6052, %v6101
    %v6121 = vadd.f32 %v6053, %v6101
    %v6122 = vadd.f32 %v6054, %v6101
    %v6123 = vadd.f32 %v6055, %v6101
    %v6124 = vadd.f32 %v6056, %v6101
    %v6125 = vadd.f32 %v6057, %v6101
    %v6126 = vadd.f32 %v6058, %v6101
    %v6127 = vadd.f32 %v6059, %v6101
    %v6128 = vadd.f32 %v6060, %v6101
    %v6129 = vadd.f32 %v6061, %v6101
    %v6130 = vadd.f32 %v6062, %v6101
    %v6131 = vadd.f32 %v6063, %v6101
    %v6132 = vadd.f32 %v6064, %v6101
    %v6133 = vadd.f32 %v6065, %v6101
    %v6134 = vadd.f32 %v6066, %v6101
    %v6135 = vadd.f32 %v6067, %v6101
    %v6136 = vadd.f32 %v6068, %v6101
    %v6137 = vadd.f32 %v6069, %v6101
    %v6138 = vadd.f32 %v6070, %v6101
    %v6139 = vadd.f32 %v6071, %v6101
    %v6140 = vadd.f32 %v6072, %v6101
    %v6141 = vadd.f32 %v6073, %v6101
    %v6142 = vadd.f32 %v6074, %v6101
    %v6143 = vadd.f32 %v6075, %v6101
    %v6144 = vadd.f32 %v6076, %v6101
    %v6145 = vadd.f32 %v6077, %v6101
    %v6146 = vadd.f32 %v6078, %v6101
    %v6147 = vadd.f32 %v6079, %v6101
    %v6148 = vadd.f32 %v6080, %v6101
    %v6149 = vadd.f32 %v6081, %v6101
    %v6150 = vadd.f32 %v6082, %v6101
    %v6151 = vadd.f32 %v6083, %v6101
    %v6152 = vadd.f32 %v6084, %v6101
    %v6153 = vadd.f32 %v6085, %v6101
    %v6154 = vadd.f32 %v6086, %v6101
    %v6155 = vadd.f32 %v6087, %v6101
    %v6156 = vadd.f32 %v6088, %v6101
    %v6157 = vadd.f32 %v6089, %v6101
    %v6158 = vadd.f32 %v6090, %v6101
    %v6159 = vadd.f32 %v6091, %v6101
    %v6160 = vadd.f32 %v6092, %v6101
    %v6161 = vadd.f32 %v6093, %v6101
    %v6162 = vadd.f32 %v6094, %v6101
    %v6163 = vadd.f32 %v6095, %v6101
    %v6164 = vadd.f32 %v6096, %v6101
    %v6165 = vadd.f32 %v6097, %v6101
    %v6166 = vadd.f32 %v6098, %v6101
    %v6167 = vmax.f32 %v6103, 0.0
    %v6168 = vmax.f32 %v6104, 0.0
    %v6169 = vmax.f32 %v6105, 0.0
    %v6170 = vmax.f32 %v6106, 0.0
    %v6171 = vmax.f32 %v6107, 0.0
    %v6172 = vmax.f32 %v6108, 0.0
    %v6173 = vmax.f32 %v6109, 0.0
    %v6174 = vmax.f32 %v6110, 0.0
    %v6175 = vmax.f32 %v6111, 0.0
    %v6176 = vmax.f32 %v6112, 0.0
    %v6177 = vmax.f32 %v6113, 0.0
    %v6178 = vmax.f32 %v6114, 0.0
    %v6179 = vmax.f32 %v6115, 0.0
    %v6180 = vmax.f32 %v6116, 0.0
    %v6181 = vmax.f32 %v6117, 0.0
    %v6182 = vmax.f32 %v6118, 0.0
    %v6183 = vmax.f32 %v6119, 0.0
    %v6184 = vmax.f32 %v6120, 0.0
    %v6185 = vmax.f32 %v6121, 0.0
    %v6186 = vmax.f32 %v6122, 0.0
    %v6187 = vmax.f32 %v6123, 0.0
    %v6188 = vmax.f32 %v6124, 0.0
    %v6189 = vmax.f32 %v6125, 0.0
    %v6190 = vmax.f32 %v6126, 0.0
    %v6191 = vmax.f32 %v6127, 0.0
    %v6192 = vmax.f32 %v6128, 0.0
    %v6193 = vmax.f32 %v6129, 0.0
    %v6194 = vmax.f32 %v6130, 0.0
    %v6195 = vmax.f32 %v6131, 0.0
    %v6196 = vmax.f32 %v6132, 0.0
    %v6197 = vmax.f32 %v6133, 0.0
    %v6198 = vmax.f32 %v6134, 0.0
    %v6199 = vmax.f32 %v6135, 0.0
    %v6200 = vmax.f32 %v6136, 0.0
    %v6201 = vmax.f32 %v6137, 0.0
    %v6202 = vmax.f32 %v6138, 0.0
    %v6203 = vmax.f32 %v6139, 0.0
    %v6204 = vmax.f32 %v6140, 0.0
    %v6205 = vmax.f32 %v6141, 0.0
    %v6206 = vmax.f32 %v6142, 0.0
    %v6207 = vmax.f32 %v6143, 0.0
    %v6208 = vmax.f32 %v6144, 0.0
    %v6209 = vmax.f32 %v6145, 0.0
    %v6210 = vmax.f32 %v6146, 0.0
    %v6211 = vmax.f32 %v6147, 0.0
    %v6212 = vmax.f32 %v6148, 0.0
    %v6213 = vmax.f32 %v6149, 0.0
    %v6214 = vmax.f32 %v6150, 0.0
    %v6215 = vmax.f32 %v6151, 0.0
    %v6216 = vmax.f32 %v6152, 0.0
    %v6217 = vmax.f32 %v6153, 0.0
    %v6218 = vmax.f32 %v6154, 0.0
    %v6219 = vmax.f32 %v6155, 0.0
    %v6220 = vmax.f32 %v6156, 0.0
    %v6221 = vmax.f32 %v6157, 0.0
    %v6222 = vmax.f32 %v6158, 0.0
    %v6223 = vmax.f32 %v6159, 0.0
    %v6224 = vmax.f32 %v6160, 0.0
    %v6225 = vmax.f32 %v6161, 0.0
    %v6226 = vmax.f32 %v6162, 0.0
    %v6227 = vmax.f32 %v6163, 0.0
    %v6228 = vmax.f32 %v6164, 0.0
    %v6229 = vmax.f32 %v6165, 0.0
    %v6230 = vmax.f32 %v6166, 0.0
    %v6231 = vadd.f32 %v6167, %v6168
    %v6232 = vadd.f32 %v6231, %v6169
    %v6233 = vadd.f32 %v6232, %v6170
    %v6234 = vrot.slane %v6233, 4
    %v6235 = vadd.f32 %v6233, %v6234
    %v6236 = vrot.slane %v6235, 2
    %v6237 = vadd.f32 %v6235, %v6236
    %v6238 = vrot.slane %v6237, 1
    %v6239 = vadd.f32 %v6237, %v6238
    %v6240 = vadd.f32 %v6171, %v6172
    %v6241 = vadd.f32 %v6240, %v6173
    %v6242 = vadd.f32 %v6241, %v6174
    %v6243 = vrot.slane %v6242, 4
    %v6244 = vadd.f32 %v6242, %v6243
    %v6245 = vrot.slane %v6244, 2
    %v6246 = vadd.f32 %v6244, %v6245
    %v6247 = vrot.slane %v6246, 1
    %v6248 = vadd.f32 %v6246, %v6247
    %v6249 = vadd.f32 %v6175, %v6176
    %v6250 = vadd.f32 %v6249, %v6177
    %v6251 = vadd.f32 %v6250, %v6178
    %v6252 = vrot.slane %v6251, 4
    %v6253 = vadd.f32 %v6251, %v6252
    %v6254 = vrot.slane %v6253, 2
    %v6255 = vadd.f32 %v6253, %v6254
    %v6256 = vrot.slane %v6255, 1
    %v6257 = vadd.f32 %v6255, %v6256
    %v6258 = vadd.f32 %v6179, %v6180
    %v6259 = vadd.f32 %v6258, %v6181
    %v6260 = vadd.f32 %v6259, %v6182
    %v6261 = vrot.slane %v6260, 4
    %v6262 = vadd.f32 %v6260, %v6261
    %v6263 = vrot.slane %v6262, 2
    %v6264 = vadd.f32 %v6262, %v6263
    %v6265 = vrot.slane %v6264, 1
    %v6266 = vadd.f32 %v6264, %v6265
    %v6267 = vadd.f32 %v6183, %v6184
    %v6268 = vadd.f32 %v6267, %v6185
    %v6269 = vadd.f32 %v6268, %v6186
    %v6270 = vrot.slane %v6269, 4
    %v6271 = vadd.f32 %v6269, %v6270
    %v6272 = vrot.slane %v6271, 2
    %v6273 = vadd.f32 %v6271, %v6272
    %v6274 = vrot.slane %v6273, 1
    %v6275 = vadd.f32 %v6273, %v6274
    %v6276 = vadd.f32 %v6187, %v6188
    %v6277 = vadd.f32 %v6276, %v6189
    %v6278 = vadd.f32 %v6277, %v6190
    %v6279 = vrot.slane %v6278, 4
    %v6280 = vadd.f32 %v6278, %v6279
    %v6281 = vrot.slane %v6280, 2
    %v6282 = vadd.f32 %v6280, %v6281
    %v6283 = vrot.slane %v6282, 1
    %v6284 = vadd.f32 %v6282, %v6283
    %v6285 = vadd.f32 %v6191, %v6192
    %v6286 = vadd.f32 %v6285, %v6193
    %v6287 = vadd.f32 %v6286, %v6194
    %v6288 = vrot.slane %v6287, 4
    %v6289 = vadd.f32 %v6287, %v6288
    %v6290 = vrot.slane %v6289, 2
    %v6291 = vadd.f32 %v6289, %v6290
    %v6292 = vrot.slane %v6291, 1
    %v6293 = vadd.f32 %v6291, %v6292
    %v6294 = vadd.f32 %v6195, %v6196
    %v6295 = vadd.f32 %v6294, %v6197
    %v6296 = vadd.f32 %v6295, %v6198
    %v6297 = vrot.slane %v6296, 4
    %v6298 = vadd.f32 %v6296, %v6297
    %v6299 = vrot.slane %v6298, 2
    %v6300 = vadd.f32 %v6298, %v6299
    %v6301 = vrot.slane %v6300, 1
    %v6302 = vadd.f32 %v6300, %v6301
    %v6303 = vadd.f32 %v6199, %v6200
    %v6304 = vadd.f32 %v6303, %v6201
    %v6305 = vadd.f32 %v6304, %v6202
    %v6306 = vrot.slane %v6305, 4
    %v6307 = vadd.f32 %v6305, %v6306
    %v6308 = vrot.slane %v6307, 2
    %v6309 = vadd.f32 %v6307, %v6308
    %v6310 = vrot.slane %v6309, 1
    %v6311 = vadd.f32 %v6309, %v6310
    %v6312 = vadd.f32 %v6203, %v6204
    %v6313 = vadd.f32 %v6312, %v6205
    %v6314 = vadd.f32 %v6313, %v6206
    %v6315 = vrot.slane %v6314, 4
    %v6316 = vadd.f32 %v6314, %v6315
    %v6317 = vrot.slane %v6316, 2
    %v6318 = vadd.f32 %v6316, %v6317
    %v6319 = vrot.slane %v6318, 1
    %v6320 = vadd.f32 %v6318, %v6319
    %v6321 = vadd.f32 %v6207, %v6208
    %v6322 = vadd.f32 %v6321, %v6209
    %v6323 = vadd.f32 %v6322, %v6210
    %v6324 = vrot.slane %v6323, 4
    %v6325 = vadd.f32 %v6323, %v6324
    %v6326 = vrot.slane %v6325, 2
    %v6327 = vadd.f32 %v6325, %v6326
    %v6328 = vrot.slane %v6327, 1
    %v6329 = vadd.f32 %v6327, %v6328
    %v6330 = vadd.f32 %v6211, %v6212
    %v6331 = vadd.f32 %v6330, %v6213
    %v6332 = vadd.f32 %v6331, %v6214
    %v6333 = vrot.slane %v6332, 4
    %v6334 = vadd.f32 %v6332, %v6333
    %v6335 = vrot.slane %v6334, 2
    %v6336 = vadd.f32 %v6334, %v6335
    %v6337 = vrot.slane %v6336, 1
    %v6338 = vadd.f32 %v6336, %v6337
    %v6339 = vadd.f32 %v6215, %v6216
    %v6340 = vadd.f32 %v6339, %v6217
    %v6341 = vadd.f32 %v6340, %v6218
    %v6342 = vrot.slane %v6341, 4
    %v6343 = vadd.f32 %v6341, %v6342
    %v6344 = vrot.slane %v6343, 2
    %v6345 = vadd.f32 %v6343, %v6344
    %v6346 = vrot.slane %v6345, 1
    %v6347 = vadd.f32 %v6345, %v6346
    %v6348 = vadd.f32 %v6219, %v6220
    %v6349 = vadd.f32 %v6348, %v6221
    %v6350 = vadd.f32 %v6349, %v6222
    %v6351 = vrot.slane %v6350, 4
    %v6352 = vadd.f32 %v6350, %v6351
    %v6353 = vrot.slane %v6352, 2
    %v6354 = vadd.f32 %v6352, %v6353
    %v6355 = vrot.slane %v6354, 1
    %v6356 = vadd.f32 %v6354, %v6355
    %v6357 = vadd.f32 %v6223, %v6224
    %v6358 = vadd.f32 %v6357, %v6225
    %v6359 = vadd.f32 %v6358, %v6226
    %v6360 = vrot.slane %v6359, 4
    %v6361 = vadd.f32 %v6359, %v6360
    %v6362 = vrot.slane %v6361, 2
    %v6363 = vadd.f32 %v6361, %v6362
    %v6364 = vrot.slane %v6363, 1
    %v6365 = vadd.f32 %v6363, %v6364
    %v6366 = vadd.f32 %v6227, %v6228
    %v6367 = vadd.f32 %v6366, %v6229
    %v6368 = vadd.f32 %v6367, %v6230
    %v6369 = vrot.slane %v6368, 4
    %v6370 = vadd.f32 %v6368, %v6369
    %v6371 = vrot.slane %v6370, 2
    %v6372 = vadd.f32 %v6370, %v6371
    %v6373 = vrot.slane %v6372, 1
    %v6374 = vadd.f32 %v6372, %v6373
    %v6375 = vld [vmem:[%s7] sm:$0xff]
    %v6376 = vld [vmem:[%s7 + $0x8] sm:$0xff]
    %v6377 = vld [vmem:[%s7 + $0x10] sm:$0xff]
    %v6378 = vld [vmem:[%s7 + $0x18] sm:$0xff]
    %v6379 = vld [vmem:[%s7 + $0x20] sm:$0xff]
    %v6380 = vld [vmem:[%s7 + $0x28] sm:$0xff]
    %v6381 = vld [vmem:[%s7 + $0x30] sm:$0xff]
    %v6382 = vld [vmem:[%s7 + $0x38] sm:$0xff]
    %v6383 = vld [vmem:[%s7 + $0x40] sm:$0xff]
    %v6384 = vld [vmem:[%s7 + $0x48] sm:$0xff]
    %v6385 = vld [vmem:[%s7 + $0x50] sm:$0xff]
    %v6386 = vld [vmem:[%s7 + $0x58] sm:$0xff]
    %v6387 = vld [vmem:[%s7 + $0x60] sm:$0xff]
    %v6388 = vld [vmem:[%s7 + $0x68] sm:$0xff]
    %v6389 = vld [vmem:[%s7 + $0x70] sm:$0xff]
    %v6390 = vld [vmem:[%s7 + $0x78] sm:$0xff]
    %v6391 = vld [vmem:[%s8] sm:$0x1]
    %v6393 = vperm.slane %v6391, 0
    %vm6411 = vcmask 1041409
    %v6412 = vsel %vm6411, %v6248, %v6239
    %vm6413 = vcmask 1042434
    %v6414 = vsel %vm6413, %v6257, %v6412
    %vm6415 = vcmask 1043459
    %v6416 = vsel %vm6415, %v6266, %v6414
    %vm6417 = vcmask 1044484
    %v6418 = vsel %vm6417, %v6275, %v6416
    %vm6419 = vcmask 1045509
    %v6420 = vsel %vm6419, %v6284, %v6418
    %vm6421 = vcmask 1046534
    %v6422 = vsel %vm6421, %v6293, %v6420
    %vm6423 = vcmask 1047559
    %v6424 = vsel %vm6423, %v6302, %v6422
    %v6425 = vsel %vm6411, %v6320, %v6311
    %v6426 = vsel %vm6413, %v6329, %v6425
    %v6427 = vsel %vm6415, %v6338, %v6426
    %v6428 = vsel %vm6417, %v6347, %v6427
    %v6429 = vsel %vm6419, %v6356, %v6428
    %v6430 = vsel %vm6421, %v6365, %v6429
    %v6431 = vsel %vm6423, %v6374, %v6430
    %6434 = vmatpush.msra.mxu0 %v6390
    %6435 = vmatpush.msra.mxu0 %v6389
    %6436 = vmatpush.msra.mxu0 %v6388
    %6437 = vmatpush.msra.mxu0 %v6387
    %6438 = vmatpush.msra.mxu0 %v6386
    %6439 = vmatpush.msra.mxu0 %v6385
    %6440 = vmatpush.msra.mxu0 %v6384
    %6441 = vmatpush.msra.mxu0 %v6383
    %6442 = vmatpush.msra.mxu0 %v6382
    %6443 = vmatpush.msra.mxu0 %v6381
    %6444 = vmatpush.msra.mxu0 %v6380
    %6445 = vmatpush.msra.mxu0 %v6379
    %6446 = vmatpush.msra.mxu0 %v6378
    %6447 = vmatpush.msra.mxu0 %v6377
    %6448 = vmatpush.msra.mxu0 %v6376
    %6449 = vmatpush.msra.mxu0 %v6375
    %6450 = vmatmul.f32.gmra.mxu0 %v6424
    %v6451 = vpop.f32.mrf.mxu0
    %v6452 = vadd.f32 %v6393, %v6451
    %6453 = vmatmul.f32.gmra.mxu0 %v6431
    %v6454 = vpop.f32.mrf.mxu0
    %v6455 = vadd.f32 %v6393, %v6454
    %6456 = vdwg.mxu0
    %v6457 = vmax.f32 %v6452, 0.0
    %v6458 = vmax.f32 %v6455, 0.0
    %v6459 = vld [vmem:[%s9] sm:$0xff]
    %v6460 = vld [vmem:[%s9 + $0x8] sm:$0xff]
    %v6461 = vld [vmem:[%s9 + $0x10] sm:$0xff]
    %v6462 = vld [vmem:[%s9 + $0x18] sm:$0xff]
    %v6463 = vld [vmem:[%s9 + $0x20] sm:$0xff]
    %v6464 = vld [vmem:[%s9 + $0x28] sm:$0xff]
    %v6465 = vld [vmem:[%s9 + $0x30] sm:$0xff]
    %v6466 = vld [vmem:[%s9 + $0x38] sm:$0xff]
    %v6467 = vld [vmem:[%s10] sm:$0x1]
    %v6469 = vperm.slane %v6467, 0
    %v6472 = vsel %vm5183, %v6457, 0
    %v6475 = vsel %vm5183, %v6458, 0
    %6477 = vmatpush.msra.mxu0 0.0
    %6478 = vmatpush.msra.mxu0 0.0
    %6479 = vmatpush.msra.mxu0 0.0
    %6480 = vmatpush.msra.mxu0 0.0
    %6481 = vmatpush.msra.mxu0 0.0
    %6482 = vmatpush.msra.mxu0 0.0
    %6483 = vmatpush.msra.mxu0 0.0
    %6484 = vmatpush.msra.mxu0 0.0
    %6485 = vmatpush.msra.mxu0 %v6466
    %6486 = vmatpush.msra.mxu0 %v6465
    %6487 = vmatpush.msra.mxu0 %v6464
    %6488 = vmatpush.msra.mxu0 %v6463
    %6489 = vmatpush.msra.mxu0 %v6462
    %6490 = vmatpush.msra.mxu0 %v6461
    %6491 = vmatpush.msra.mxu0 %v6460
    %6492 = vmatpush.msra.mxu0 %v6459
    %6493 = vmatmul.f32.gmra.mxu0 %v6472
    %v6494 = vpop.f32.mrf.mxu0
    %v6495 = vadd.f32 %v6469, %v6494
    %6496 = vmatmul.f32.gmra.mxu0 %v6475
    %v6497 = vpop.f32.mrf.mxu0
    %v6498 = vadd.f32 %v6469, %v6497
    %6499 = vdwg.mxu0
    %6500 = vst [vmem:[#allocation2] sm:$0xff] %v6495
    %6501 = vst [vmem:[#allocation2 + $0x8] sm:$0xff] %v6498
    // Predicated region
    $region46: #{tpu_custom_call.1} parent=1 // pred_check
      _
    $region47: #{tpu_custom_call.1} parent=1 // pred_check_branch
      %6503 = sbr.rel (0) target = $region49
    $region48: #{tpu_custom_call.1} parent=1 // pred_region
      %6505 = vsyncadd [#allocation3], 0
      %s6506 = sshll.u32 [#allocation2], 4
      %s6507 = int_to_ptr.vmem [resolvable:$true] %s6506
      %s6508 = sshll.u32 %s11, 4
      %s6509 = int_to_ptr.hbm [resolvable:$true] %s6508
      %6514 = dma.vmem_to_hbm [thread:$0]  %s6507, 256, %s6509, [#allocation3], 128, 128, 8
    $region49: #{tpu_custom_call.1} parent=1 // pred_fallthru
      _
    // Predicated region
    $region50: #{tpu_custom_call.1} parent=1 // pred_check
      _
    $region51: #{tpu_custom_call.1} parent=1 // pred_check_branch
      %6516 = sbr.rel (0) target = $region53
    $region52: #{tpu_custom_call.1} parent=1 // pred_region
      %6518 = dma.done [#allocation3], 256
    $region53: #{tpu_custom_call.1} parent=1 // pred_fallthru
      _
    %6519 = vsyncpa [#allocation3], 1

</llo_original>
